<compile_context>
chip_gen: v6e
topology: v6e:2x2x1
jax: 0.10.0
libtpu: 0.0.40
codegen_flags: <defaults>
</compile_context>

<pallas_src>
import functools

import jax
import jax.numpy as jnp
from jax.experimental import pallas as pl
from jax.experimental.pallas import tpu as pltpu

_VMEM_LIMIT = 48 * 1024 * 1024   # safe on v5e/v6e (128 MiB) and v7x (64 MiB)


# ----------------------------- config -------------------------------------
class Cfg:
    vocab_size = 128
    hidden_size = 256
    num_attention_heads = 2          # head_dim = 128 -> lane-aligned blocks
    num_key_value_heads = 1          # GQA group = 2
    num_hidden_layers = 2
    intermediate_size = 256          # dense MLP layers
    moe_intermediate_size = 128      # per-expert MLP
    shared_expert_intermediate_size = 128
    num_experts = 4
    num_experts_per_tok = 2
    norm_topk_prob = True
    decoder_sparse_step = 2          # layer 0 dense, layer 1 MoE
    rms_norm_eps = 1e-6
    rope_theta = 10000.0
    qkv_bias = True

    @property
    def head_dim(self):
        return self.hidden_size // self.num_attention_heads


# ----------------------------- in-kernel helpers ---------------------------
def _rmsnorm(x, w, eps):
    var = jnp.mean(x * x, axis=-1, keepdims=True)
    return x * jax.lax.rsqrt(var + eps) * w


def _silu_mul(gu, inter):
    g = gu[:, :inter]
    u = gu[:, inter:]
    return g * (1.0 / (1.0 + jnp.exp(-g))) * u


# ----------------------------- kernels ------------------------------------
def qkv_rope_kernel(h_ref, res_ref, ln_ref, wqkv_ref, bqkv_ref, cos_ref, sin_ref,
                    q_ref, k_ref, v_ref, res_out_ref,
                    *, eps, n_heads, n_kv, head_dim, scale):
    # fused: residual add -> RMSNorm -> qkv matmul(+bias) -> RoPE (pltpu.roll
    # per head, (T, d) tables broadcast across heads) -> lane-dense q/k/v.
    x = h_ref[...].astype(jnp.float32) + res_ref[...]
    res_out_ref[...] = x.astype(res_out_ref.dtype)
    normed = _rmsnorm(x, ln_ref[...], eps)
    qkv = jnp.dot(normed.astype(jnp.bfloat16), wqkv_ref[...],
                  preferred_element_type=jnp.float32) + bqkv_ref[...]

    d = head_dim
    qw = n_heads * d
    kvw = n_kv * d
    cos = cos_ref[...]                  # (tm, d)
    sin = sin_ref[...]                  # (tm, d), signed: [-sin, sin]

    def rope(x2d, n):
        # rotate-half per head via an XLU lane rotation; all slices/concats
        # are at head_dim (lane-group) boundaries -> whole-vreg moves.
        outs = []
        for hh in range(n):
            xh = x2d[:, hh * d:(hh + 1) * d]
            outs.append(xh * cos + pltpu.roll(xh, d // 2, axis=1) * sin)
        return outs[0] if n == 1 else jnp.concatenate(outs, axis=-1)

    q_rot = rope(qkv[:, :qw], n_heads)
    k_rot = rope(qkv[:, qw:qw + kvw], n_kv)
    q_ref[...] = (q_rot * scale).astype(q_ref.dtype)   # fold 1/sqrt(d) into q
    k_ref[...] = k_rot.astype(k_ref.dtype)
    v_ref[...] = qkv[:, qw + kvw:].astype(v_ref.dtype)


def attn_oproj_kernel(q_ref, k_ref, v_ref, wo_ref, o_ref,
                      m_sc, l_sc, acc_sc, oacc_sc, *, tile, group, head_dim):
    # grid = (q_block, kv_head, kv_block).  Online softmax per (q_block, head);
    # K/V fetched once per GQA group; above-diagonal kv blocks skipped.
    # TODO(synk): no KV cache / paged attention (RadixAttention) — causal
    # prefill over the given tokens only.
    qb = pl.program_id(0)
    h = pl.program_id(1)
    kv = pl.program_id(2)
    n_kv_heads = pl.num_programs(1)
    n_kv_blk = pl.num_programs(2)

    @pl.when(jnp.logical_and(h == 0, kv == 0))
    def _():
        oacc_sc[...] = jnp.zeros_like(oacc_sc)

    @pl.when(kv == 0)
    def _():
        # -1e30 (not -inf): every causal row sees its diagonal, so l > 0.
        m_sc[...] = jnp.full(m_sc.shape, -1e30, jnp.float32)
        l_sc[...] = jnp.zeros_like(l_sc)
        acc_sc[...] = jnp.zeros_like(acc_sc)

    @pl.when(kv <= qb)                      # causal block skip
    def _():
        q = q_ref[...]                      # (tile, group*d) bf16, pre-scaled
        k = k_ref[...]                      # (tile, d) bf16
        v = v_ref[...]
        row = qb * tile + jax.lax.broadcasted_iota(jnp.int32, (tile, tile), 0)
        col = kv * tile + jax.lax.broadcasted_iota(jnp.int32, (tile, tile), 1)
        causal = col <= row
        for g in range(group):              # static unroll over GQA group
            q_g = q[:, g * head_dim:(g + 1) * head_dim]
            s = jax.lax.dot_general(q_g, k, (((1,), (1,)), ((), ())),
                                    preferred_element_type=jnp.float32)
            s = jnp.where(causal, s, -1e30)
            m_prev = m_sc[g]
            m_new = jnp.maximum(m_prev, jnp.max(s, axis=-1, keepdims=True))
            alpha = jnp.exp(m_prev - m_new)
            p = jnp.exp(s - m_new)
            l_sc[g] = alpha * l_sc[g] + jnp.sum(p, axis=-1, keepdims=True)
            acc_sc[g] = alpha * acc_sc[g] + jnp.dot(
                p.astype(jnp.bfloat16), v, preferred_element_type=jnp.float32)
            m_sc[g] = m_new

    @pl.when(kv == n_kv_blk - 1)
    def _():
        parts = [acc_sc[g] * pl.reciprocal(l_sc[g], approx=True)
                 for g in range(group)]
        o_grp = jnp.concatenate(parts, axis=-1)          # (tile, group*d)
        oacc_sc[...] += jnp.dot(o_grp.astype(jnp.bfloat16), wo_ref[...],
                                preferred_element_type=jnp.float32)

    @pl.when(jnp.logical_and(h == n_kv_heads - 1, kv == n_kv_blk - 1))
    def _():
        o_ref[...] = oacc_sc[...].astype(o_ref.dtype)    # single bf16 store


def mlp_fused_kernel(h_ref, res_ref, ln_ref, wgu_ref, wd_ref,
                     o_ref, res_out_ref, *, eps, inter):
    # fused: residual add -> RMSNorm -> SwiGLU MLP
    x = h_ref[...].astype(jnp.float32) + res_ref[...]
    res_out_ref[...] = x.astype(res_out_ref.dtype)
    normed = _rmsnorm(x, ln_ref[...], eps)
    gu = jnp.dot(normed.astype(jnp.bfloat16), wgu_ref[...],
                 preferred_element_type=jnp.float32)
    act = _silu_mul(gu, inter)
    o_ref[...] = jnp.dot(act.astype(jnp.bfloat16), wd_ref[...],
                         preferred_element_type=jnp.float32).astype(o_ref.dtype)


def moe_pre_kernel(h_ref, res_ref, ln_ref, gate_ref, swgu_ref, swd_ref,
                   sgate_ref, normed_ref, res_out_ref, logits_ref, shared_ref,
                   *, eps, s_inter):
    # fused: residual add -> RMSNorm -> router logits + gated shared expert
    x = h_ref[...].astype(jnp.float32) + res_ref[...]
    res_out_ref[...] = x.astype(res_out_ref.dtype)
    normed = _rmsnorm(x, ln_ref[...], eps)
    nb = normed.astype(jnp.bfloat16)
    normed_ref[...] = nb
    logits_ref[...] = jnp.dot(nb, gate_ref[...],
                              preferred_element_type=jnp.float32)
    gu = jnp.dot(nb, swgu_ref[...], preferred_element_type=jnp.float32)
    act = _silu_mul(gu, s_inter)
    sh = jnp.dot(act.astype(jnp.bfloat16), swd_ref[...],
                 preferred_element_type=jnp.float32)
    # shared-expert sigmoid gate: (H x 1) matvec as a lane reduction
    sg = 1.0 / (1.0 + jnp.exp(-jnp.sum(normed * sgate_ref[...],
                                       axis=-1, keepdims=True)))
    shared_ref[...] = (sg * sh).astype(shared_ref.dtype)


def moe_experts_kernel(ids_ref, na_ref, x_ref, wgu_ref, wd_ref, rw_ref,
                       shared_ref, o_ref, acc_ref, *, inter):
    # grid = (token_block, expert).  ids_ref remaps the expert axis to active
    # experts (dead experts point at the last active one -> no extra weight
    # DMA); compute is skipped past n_active.  Routing weight folded into the
    # activation before the down-projection; shared expert added on the last
    # grid step (grid always runs to the last expert).
    e = pl.program_id(1)

    @pl.when(e == 0)
    def _():
        acc_ref[...] = jnp.zeros_like(acc_ref)

    @pl.when(e < na_ref[0])
    def _():
        x = x_ref[...]                                   # (tm, H) bf16
        gu = jnp.dot(x, wgu_ref[0], preferred_element_type=jnp.float32)
        act = _silu_mul(gu, inter) * rw_ref[0]           # fold routing weight
        acc_ref[...] += jnp.dot(act.astype(jnp.bfloat16), wd_ref[0],
                                preferred_element_type=jnp.float32)

    @pl.when(e == pl.num_programs(1) - 1)
    def _():
        o_ref[...] = (acc_ref[...] + shared_ref[...]).astype(o_ref.dtype)


def final_norm_kernel(h_ref, res_ref, ln_ref, o_ref, *, eps):
    x = h_ref[...].astype(jnp.float32) + res_ref[...]
    o_ref[...] = _rmsnorm(x, ln_ref[...], eps).astype(o_ref.dtype)


# ----------------------------- wrappers ------------------------------------
def _tok_tile(T):
    tm = min(T, 256)
    assert T % tm == 0
    return tm


def qkv_rope(h, residual, ln_w, wqkv, bqkv, cos_t, sin_t, cfg):
    T, H = h.shape
    nH, nKV, d = cfg.num_attention_heads, cfg.num_key_value_heads, cfg.head_dim
    qw, kvw = nH * d, nKV * d
    W = qw + 2 * kvw
    tm = _tok_tile(T)
    kern = functools.partial(qkv_rope_kernel, eps=cfg.rms_norm_eps, n_heads=nH,
                             n_kv=nKV, head_dim=d, scale=float(d) ** -0.5)
    return pl.pallas_call(
        kern,
        grid=(T // tm,),
        in_specs=[
            pl.BlockSpec((tm, H), lambda i: (i, 0)),
            pl.BlockSpec((tm, H), lambda i: (i, 0)),
            pl.BlockSpec((1, H), lambda i: (0, 0)),
            pl.BlockSpec((H, W), lambda i: (0, 0)),
            pl.BlockSpec((1, W), lambda i: (0, 0)),
            pl.BlockSpec((tm, d), lambda i: (i, 0)),
            pl.BlockSpec((tm, d), lambda i: (i, 0)),
        ],
        out_specs=[
            pl.BlockSpec((tm, qw), lambda i: (i, 0)),
            pl.BlockSpec((tm, kvw), lambda i: (i, 0)),
            pl.BlockSpec((tm, kvw), lambda i: (i, 0)),
            pl.BlockSpec((tm, H), lambda i: (i, 0)),
        ],
        out_shape=(
            jax.ShapeDtypeStruct((T, qw), jnp.bfloat16),
            jax.ShapeDtypeStruct((T, kvw), jnp.bfloat16),
            jax.ShapeDtypeStruct((T, kvw), jnp.bfloat16),
            jax.ShapeDtypeStruct((T, H), jnp.float32),
        ),
        compiler_params=pltpu.CompilerParams(
            dimension_semantics=("parallel",), vmem_limit_bytes=_VMEM_LIMIT),
    )(h, residual, ln_w.reshape(1, H), wqkv, bqkv.reshape(1, W), cos_t, sin_t)


def attention_oproj(q, k, v, wo, cfg):
    T = q.shape[0]
    H = cfg.hidden_size
    nH, nKV, d = cfg.num_attention_heads, cfg.num_key_value_heads, cfg.head_dim
    group = nH // nKV
    tile = _tok_tile(T)
    nblk = T // tile
    kern = functools.partial(attn_oproj_kernel, tile=tile, group=group,
                             head_dim=d)
    return pl.pallas_call(
        kern,
        grid=(nblk, nKV, nblk),
        in_specs=[
            pl.BlockSpec((tile, group * d), lambda qb, h, kv: (qb, h)),
            # clamp kv index to the diagonal block -> no DMA for skipped blocks
            pl.BlockSpec((tile, d), lambda qb, h, kv: (jnp.minimum(kv, qb), h)),
            pl.BlockSpec((tile, d), lambda qb, h, kv: (jnp.minimum(kv, qb), h)),
            pl.BlockSpec((group * d, H), lambda qb, h, kv: (h, 0)),
        ],
        out_specs=pl.BlockSpec((tile, H), lambda qb, h, kv: (qb, 0)),
        out_shape=jax.ShapeDtypeStruct((T, H), jnp.bfloat16),
        scratch_shapes=[
            pltpu.VMEM((group, tile, 1), jnp.float32),   # m
            pltpu.VMEM((group, tile, 1), jnp.float32),   # l
            pltpu.VMEM((group, tile, d), jnp.float32),   # per-group acc
            pltpu.VMEM((tile, H), jnp.float32),          # o-proj accumulator
        ],
        compiler_params=pltpu.CompilerParams(
            dimension_semantics=("parallel", "arbitrary", "arbitrary"),
            vmem_limit_bytes=_VMEM_LIMIT),
    )(q, k, v, wo)


def mlp_fused(h, residual, ln_w, wgu, wd, eps):
    T, H = h.shape
    inter = wd.shape[0]
    tm = _tok_tile(T)
    return pl.pallas_call(
        functools.partial(mlp_fused_kernel, eps=eps, inter=inter),
        grid=(T // tm,),
        in_specs=[
            pl.BlockSpec((tm, H), lambda i: (i, 0)),
            pl.BlockSpec((tm, H), lambda i: (i, 0)),
            pl.BlockSpec((1, H), lambda i: (0, 0)),
            pl.BlockSpec((H, 2 * inter), lambda i: (0, 0)),
            pl.BlockSpec((inter, H), lambda i: (0, 0)),
        ],
        out_specs=[
            pl.BlockSpec((tm, H), lambda i: (i, 0)),
            pl.BlockSpec((tm, H), lambda i: (i, 0)),
        ],
        out_shape=(jax.ShapeDtypeStruct((T, H), jnp.bfloat16),
                   jax.ShapeDtypeStruct((T, H), jnp.float32)),
        compiler_params=pltpu.CompilerParams(
            dimension_semantics=("parallel",), vmem_limit_bytes=_VMEM_LIMIT),
    )(h, residual, ln_w.reshape(1, H), wgu, wd)


def moe_pre(h, residual, ln_w, gate_w, swgu, swd, sgate, cfg):
    T, H = h.shape
    E = cfg.num_experts
    s_inter = cfg.shared_expert_intermediate_size
    tm = _tok_tile(T)
    return pl.pallas_call(
        functools.partial(moe_pre_kernel, eps=cfg.rms_norm_eps, s_inter=s_inter),
        grid=(T // tm,),
        in_specs=[
            pl.BlockSpec((tm, H), lambda i: (i, 0)),
            pl.BlockSpec((tm, H), lambda i: (i, 0)),
            pl.BlockSpec((1, H), lambda i: (0, 0)),
            pl.BlockSpec((H, E), lambda i: (0, 0)),
            pl.BlockSpec((H, 2 * s_inter), lambda i: (0, 0)),
            pl.BlockSpec((s_inter, H), lambda i: (0, 0)),
            pl.BlockSpec((1, H), lambda i: (0, 0)),
        ],
        out_specs=[
            pl.BlockSpec((tm, H), lambda i: (i, 0)),
            pl.BlockSpec((tm, H), lambda i: (i, 0)),
            pl.BlockSpec((tm, E), lambda i: (i, 0)),
            pl.BlockSpec((tm, H), lambda i: (i, 0)),
        ],
        out_shape=(
            jax.ShapeDtypeStruct((T, H), jnp.bfloat16),   # normed (for experts)
            jax.ShapeDtypeStruct((T, H), jnp.float32),    # residual out
            jax.ShapeDtypeStruct((T, E), jnp.float32),    # router logits
            jax.ShapeDtypeStruct((T, H), jnp.float32),    # gated shared expert
        ),
        compiler_params=pltpu.CompilerParams(
            dimension_semantics=("parallel",), vmem_limit_bytes=_VMEM_LIMIT),
    )(h, residual, ln_w.reshape(1, H), gate_w, swgu, swd, sgate.reshape(1, H))


def moe_experts(active_ids, n_active, x, wgu, wd, routing_w, shared, cfg):
    T, H = x.shape
    E = cfg.num_experts
    inter = cfg.moe_intermediate_size
    tm = _tok_tile(T)
    grid_spec = pltpu.PrefetchScalarGridSpec(
        num_scalar_prefetch=2,
        grid=(T // tm, E),
        in_specs=[
            pl.BlockSpec((tm, H), lambda t, e, ids, na: (t, 0)),
            pl.BlockSpec((1, H, 2 * inter), lambda t, e, ids, na: (ids[e], 0, 0)),
            pl.BlockSpec((1, inter, H), lambda t, e, ids, na: (ids[e], 0, 0)),
            pl.BlockSpec((1, tm, 1), lambda t, e, ids, na: (ids[e], t, 0)),
            pl.BlockSpec((tm, H), lambda t, e, ids, na: (t, 0)),
        ],
        out_specs=pl.BlockSpec((tm, H), lambda t, e, ids, na: (t, 0)),
        scratch_shapes=[pltpu.VMEM((tm, H), jnp.float32)],
    )
    return pl.pallas_call(
        functools.partial(moe_experts_kernel, inter=inter),
        grid_spec=grid_spec,
        out_shape=jax.ShapeDtypeStruct((T, H), jnp.bfloat16),
        compiler_params=pltpu.CompilerParams(
            dimension_semantics=("parallel", "arbitrary"),
            vmem_limit_bytes=_VMEM_LIMIT),
    )(active_ids, n_active, x, wgu, wd, routing_w, shared)


def final_norm(h, residual, w, eps):
    T, H = h.shape
    tm = _tok_tile(T)
    return pl.pallas_call(
        functools.partial(final_norm_kernel, eps=eps),
        grid=(T // tm,),
        in_specs=[pl.BlockSpec((tm, H), lambda i: (i, 0)),
                  pl.BlockSpec((tm, H), lambda i: (i, 0)),
                  pl.BlockSpec((1, H), lambda i: (0, 0))],
        out_specs=pl.BlockSpec((tm, H), lambda i: (i, 0)),
        out_shape=jax.ShapeDtypeStruct((T, H), jnp.float32),
        compiler_params=pltpu.CompilerParams(
            dimension_semantics=("parallel",), vmem_limit_bytes=_VMEM_LIMIT),
    )(h, residual, w.reshape(1, H))


# ----------------------------- glue (plain JAX) -----------------------------
def rope_tables(positions, cfg):
    # neox rotate-half tables of shape (T, head_dim); the sin table is signed
    # ([-sin, sin]) so that  x*cos + roll(x, d/2)*sin == neox RoPE.
    d = cfg.head_dim
    inv_freq = cfg.rope_theta ** (-(jnp.arange(0, d, 2, dtype=jnp.float32) / d))
    freqs = positions.astype(jnp.float32)[:, None] * inv_freq[None, :]   # (T, d/2)
    cos = jnp.cos(freqs)
    sin = jnp.sin(freqs)
    cos_t = jnp.concatenate([cos, cos], axis=-1)     # (T, d)
    sin_t = jnp.concatenate([-sin, sin], axis=-1)    # (T, d)
    return cos_t, sin_t


def route_tokens(logits, cfg):
    # TODO(synk): softmax + top-k selection and active-expert compaction kept
    # in plain JAX; a production kernel would gather routed tokens per expert.
    T = logits.shape[0]
    E = cfg.num_experts
    probs = jax.nn.softmax(logits.astype(jnp.float32), axis=-1)
    topv, topi = jax.lax.top_k(probs, cfg.num_experts_per_tok)
    if cfg.norm_topk_prob:
        topv = topv / jnp.sum(topv, axis=-1, keepdims=True)
    dense_w = jnp.zeros((T, E), jnp.float32)
    dense_w = dense_w.at[jnp.arange(T)[:, None], topi].set(topv)
    routing_w = jnp.transpose(dense_w)[:, :, None]            # (E, T, 1)

    counts = jnp.sum(jax.nn.one_hot(topi, E, dtype=jnp.int32), axis=(0, 1))
    active = counts > 0
    n_active = jnp.sum(active.astype(jnp.int32))
    order = jnp.argsort(jnp.logical_not(active).astype(jnp.int32)).astype(jnp.int32)
    last_active = order[jnp.maximum(n_active - 1, 0)]
    # dead grid steps point at the last active expert -> no extra weight DMA
    active_ids = jnp.where(jnp.arange(E, dtype=jnp.int32) < n_active,
                           order, last_active).astype(jnp.int32)
    return active_ids, jnp.reshape(n_active, (1,)).astype(jnp.int32), routing_w


# ----------------------------- model blocks --------------------------------
def decoder_layer(layer, h, residual, cos_t, sin_t, cfg):
    a = layer["attn"]
    q, k, v, residual = qkv_rope(h, residual, layer["input_ln"], a["wqkv"],
                                 a["bqkv"], cos_t, sin_t, cfg)
    attn_out = attention_oproj(q, k, v, a["wo"], cfg)
    if "moe" in layer:
        m = layer["moe"]
        normed, residual, logits, shared = moe_pre(
            attn_out, residual, layer["post_ln"], m["gate_w"],
            m["shared_wgu"], m["shared_wd"], m["shared_gate"], cfg)
        active_ids, n_active, routing_w = route_tokens(logits, cfg)
        h = moe_experts(active_ids, n_active, normed, m["experts_wgu"],
                        m["experts_wd"], routing_w, shared, cfg)
    else:
        d = layer["mlp"]
        h, residual = mlp_fused(attn_out, residual, layer["post_ln"],
                                d["wgu"], d["wd"], cfg.rms_norm_eps)
    return h, residual


def qwen2_moe_forward(params, input_ids, positions, cfg):
    # TODO(synk): VocabParallelEmbedding gather kept as plain JAX indexing.
    h = params["embed"][input_ids].astype(jnp.bfloat16)
    residual = jnp.zeros(h.shape, jnp.float32)   # layer 0: residual := hidden
    cos_t, sin_t = rope_tables(positions, cfg)
    for layer in params["layers"]:
        h, residual = decoder_layer(layer, h, residual, cos_t, sin_t, cfg)
    return final_norm(h, residual, params["final_norm"], cfg.rms_norm_eps)


# ----------------------------- params --------------------------------------
def init_params(key, cfg):
    keys = iter(jax.random.split(key, 64))

    def nrm(shape, dtype=jnp.bfloat16, scale=0.02):
        return (scale * jax.random.normal(next(keys), shape, jnp.float32)
                ).astype(dtype)

    H = cfg.hidden_size
    d = cfg.head_dim
    nH, nKV = cfg.num_attention_heads, cfg.num_key_value_heads
    qw, kvw = nH * d, nKV * d

    params = {
        "embed": nrm((cfg.vocab_size, H), jnp.float32),
        "final_norm": jnp.ones((H,), jnp.float32),
        "layers": [],
    }
    for lid in range(cfg.num_hidden_layers):
        layer = {
            "input_ln": jnp.ones((H,), jnp.float32),
            "post_ln": jnp.ones((H,), jnp.float32),
            "attn": {
                "wqkv": nrm((H, qw + 2 * kvw)),
                "bqkv": nrm((qw + 2 * kvw,), jnp.float32),
                "wo": nrm((qw, H)),
            },
        }
        is_moe = cfg.num_experts > 0 and (lid + 1) % cfg.decoder_sparse_step == 0
        if is_moe:
            layer["moe"] = {
                "gate_w": nrm((H, cfg.num_experts)),
                "experts_wgu": nrm(
                    (cfg.num_experts, H, 2 * cfg.moe_intermediate_size)),
                "experts_wd": nrm(
                    (cfg.num_experts, cfg.moe_intermediate_size, H)),
                "shared_wgu": nrm((H, 2 * cfg.shared_expert_intermediate_size)),
                "shared_wd": nrm((cfg.shared_expert_intermediate_size, H)),
                "shared_gate": nrm((H,), jnp.float32),
            }
        else:
            layer["mlp"] = {
                "wgu": nrm((H, 2 * cfg.intermediate_size)),
                "wd": nrm((cfg.intermediate_size, H)),
            }
        params["layers"].append(layer)
    return params


# ----------------------------- main -----------------------------------------
if __name__ == "__main__":
    cfg = Cfg()
    key = jax.random.PRNGKey(0)
    pkey, ikey = jax.random.split(key)
    params = init_params(pkey, cfg)

    T = 8
    input_ids = jax.random.randint(ikey, (T,), 0, cfg.vocab_size, dtype=jnp.int32)
    positions = jnp.arange(T, dtype=jnp.int32)

    fwd = jax.jit(functools.partial(qwen2_moe_forward, cfg=cfg))
    out = fwd(params, input_ids, positions)
    out = jax.block_until_ready(out)

    assert out.shape == (T, cfg.hidden_size), out.shape
    assert bool(jnp.all(jnp.isfinite(out)))
    print("KERNEL_OK")
</pallas_src>

<mosaic_0001>
module attributes {stable_mosaic.version = 11 : i64} {
  func.func @mlp_fused_kernel(%arg0: i32, %arg1: memref<8x256xbf16, #tpu.memory_space<vmem>>, %arg2: memref<8x256xf32, #tpu.memory_space<vmem>>, %arg3: memref<1x256xf32, #tpu.memory_space<vmem>>, %arg4: memref<256x512xbf16, #tpu.memory_space<vmem>>, %arg5: memref<256x256xbf16, #tpu.memory_space<vmem>>, %arg6: memref<8x256xbf16, #tpu.memory_space<vmem>>, %arg7: memref<8x256xf32, #tpu.memory_space<vmem>>) attributes {dimension_semantics = [#tpu.dimension_semantics<parallel>], iteration_bounds = array<i64: 1>, scalar_prefetch = 0 : i64, scratch_operands = 0 : i64, tpu.core_type = #tpu.core_type<tc>, window_params = [{transform_indices = @transform_0, window_bounds = array<i64: 8, 256>}, {transform_indices = @transform_1, window_bounds = array<i64: 8, 256>}, {pipeline_mode = #tpu.pipeline_mode<synchronous>, transform_indices = @transform_2, window_bounds = array<i64: 1, 256>}, {pipeline_mode = #tpu.pipeline_mode<synchronous>, transform_indices = @transform_3, window_bounds = array<i64: 256, 512>}, {pipeline_mode = #tpu.pipeline_mode<synchronous>, transform_indices = @transform_4, window_bounds = array<i64: 256, 256>}, {transform_indices = @transform_5, window_bounds = array<i64: 8, 256>}, {transform_indices = @transform_6, window_bounds = array<i64: 8, 256>}]} {
    %c0 = arith.constant 0 : index
    %c0_0 = arith.constant 0 : index
    %0 = vector.load %arg1[%c0, %c0_0] : memref<8x256xbf16, #tpu.memory_space<vmem>>, vector<8x256xbf16>
    %1 = arith.extf %0 : vector<8x256xbf16> to vector<8x256xf32>
    %c0_1 = arith.constant 0 : index
    %c0_2 = arith.constant 0 : index
    %2 = vector.load %arg2[%c0_1, %c0_2] : memref<8x256xf32, #tpu.memory_space<vmem>>, vector<8x256xf32>
    %3 = arith.addf %1, %2 : vector<8x256xf32>
    %c0_3 = arith.constant 0 : index
    %c0_4 = arith.constant 0 : index
    %4 = vector.load %arg7[%c0_3, %c0_4] : memref<8x256xf32, #tpu.memory_space<vmem>>, vector<8x256xf32>
    tpu.vector_store %arg7[%c0_3, %c0_4], %3 {strides = array<i32>} : memref<8x256xf32, #tpu.memory_space<vmem>>, vector<8x256xf32>,
    %c0_5 = arith.constant 0 : index
    %c0_6 = arith.constant 0 : index
    %5 = vector.load %arg3[%c0_5, %c0_6] : memref<1x256xf32, #tpu.memory_space<vmem>>, vector<1x256xf32>
    %6 = arith.mulf %3, %3 : vector<8x256xf32>
    %cst = arith.constant dense<0.000000e+00> : vector<8xf32>
    %7 = vector.multi_reduction <add>, %6, %cst [1] : vector<8x256xf32> to vector<8xf32>
    %8 = vector.shape_cast %7 : vector<8xf32> to vector<8x1xf32>
    %cst_7 = arith.constant 2.560000e+02 : f32
    %9 = vector.broadcast %cst_7 : f32 to vector<8x1xf32>
    %10 = arith.divf %8, %9 : vector<8x1xf32>
    %cst_8 = arith.constant 9.99999997E-7 : f32
    %11 = vector.broadcast %cst_8 : f32 to vector<8x1xf32>
    %12 = arith.addf %10, %11 : vector<8x1xf32>
    %13 = math.rsqrt %12 : vector<8x1xf32>
    %14 = vector.broadcast %13 : vector<8x1xf32> to vector<8x256xf32>
    %15 = arith.mulf %3, %14 : vector<8x256xf32>
    %16 = vector.broadcast %5 : vector<1x256xf32> to vector<8x256xf32>
    %17 = arith.mulf %15, %16 : vector<8x256xf32>
    %18 = arith.truncf %17 : vector<8x256xf32> to vector<8x256xbf16>
    %c0_9 = arith.constant 0 : index
    %c0_10 = arith.constant 0 : index
    %19 = vector.load %arg4[%c0_9, %c0_10] : memref<256x512xbf16, #tpu.memory_space<vmem>>, vector<256x512xbf16>
    %cst_11 = arith.constant dense<0.000000e+00> : vector<8x512xf32>
    %20 = tpu.matmul %18, %19, %cst_11 {dimension_numbers = #tpu.dot_dimension_numbers<[1], [0], [0], [1], [0, 0, 1, 1], [], []>} : vector<8x256xbf16>, vector<256x512xbf16>, vector<8x512xf32> -> vector<8x512xf32>
    %21 = vector.extract_strided_slice %20 {offsets = [0, 0], sizes = [8, 256], strides = [1, 1]} : vector<8x512xf32> to vector<8x256xf32>
    %22 = vector.extract_strided_slice %20 {offsets = [0, 256], sizes = [8, 256], strides = [1, 1]} : vector<8x512xf32> to vector<8x256xf32>
    %cst_12 = arith.constant 0.000000e+00 : f32
    %23 = vector.broadcast %cst_12 : f32 to vector<8x256xf32>
    %24 = arith.subf %23, %21 : vector<8x256xf32>
    %25 = math.exp %24 : vector<8x256xf32>
    %cst_13 = arith.constant 1.000000e+00 : f32
    %26 = vector.broadcast %cst_13 : f32 to vector<8x256xf32>
    %27 = arith.addf %26, %25 : vector<8x256xf32>
    %cst_14 = arith.constant 1.000000e+00 : f32
    %28 = vector.broadcast %cst_14 : f32 to vector<8x256xf32>
    %29 = arith.divf %28, %27 : vector<8x256xf32>
    %30 = arith.mulf %21, %29 : vector<8x256xf32>
    %31 = arith.mulf %30, %22 : vector<8x256xf32>
    %32 = arith.truncf %31 : vector<8x256xf32> to vector<8x256xbf16>
    %c0_15 = arith.constant 0 : index
    %c0_16 = arith.constant 0 : index
    %33 = vector.load %arg5[%c0_15, %c0_16] : memref<256x256xbf16, #tpu.memory_space<vmem>>, vector<256x256xbf16>
    %cst_17 = arith.constant dense<0.000000e+00> : vector<8x256xf32>
    %34 = tpu.matmul %32, %33, %cst_17 {dimension_numbers = #tpu.dot_dimension_numbers<[1], [0], [0], [1], [0, 0, 1, 1], [], []>} : vector<8x256xbf16>, vector<256x256xbf16>, vector<8x256xf32> -> vector<8x256xf32>
    %35 = arith.truncf %34 : vector<8x256xf32> to vector<8x256xbf16>
    %c0_18 = arith.constant 0 : index
    %c0_19 = arith.constant 0 : index
    %36 = vector.load %arg6[%c0_18, %c0_19] : memref<8x256xbf16, #tpu.memory_space<vmem>>, vector<8x256xbf16>
    tpu.vector_store %arg6[%c0_18, %c0_19], %35 {strides = array<i32>} : memref<8x256xbf16, #tpu.memory_space<vmem>>, vector<8x256xbf16>,
    return
  }
  func.func @transform_0(%arg0: i32) -> (i32, i32) {
    %c0_i32 = arith.constant 0 : i32
    %c0_i32_0 = arith.constant 0 : i32
    return %arg0, %c0_i32 : i32, i32
  }
  func.func @transform_1(%arg0: i32) -> (i32, i32) {
    %c0_i32 = arith.constant 0 : i32
    %c0_i32_0 = arith.constant 0 : i32
    return %arg0, %c0_i32 : i32, i32
  }
  func.func @transform_2(%arg0: i32) -> (i32, i32) {
    %c0_i32 = arith.constant 0 : i32
    %c0_i32_0 = arith.constant 0 : i32
    %c0_i32_1 = arith.constant 0 : i32
    return %c0_i32, %c0_i32_0 : i32, i32
  }
  func.func @transform_3(%arg0: i32) -> (i32, i32) {
    %c0_i32 = arith.constant 0 : i32
    %c0_i32_0 = arith.constant 0 : i32
    %c0_i32_1 = arith.constant 0 : i32
    return %c0_i32, %c0_i32_0 : i32, i32
  }
  func.func @transform_4(%arg0: i32) -> (i32, i32) {
    %c0_i32 = arith.constant 0 : i32
    %c0_i32_0 = arith.constant 0 : i32
    %c0_i32_1 = arith.constant 0 : i32
    return %c0_i32, %c0_i32_0 : i32, i32
  }
  func.func @transform_5(%arg0: i32) -> (i32, i32) {
    %c0_i32 = arith.constant 0 : i32
    %c0_i32_0 = arith.constant 0 : i32
    return %arg0, %c0_i32 : i32, i32
  }
  func.func @transform_6(%arg0: i32) -> (i32, i32) {
    %c0_i32 = arith.constant 0 : i32
    %c0_i32_0 = arith.constant 0 : i32
    return %arg0, %c0_i32 : i32, i32
  }
}

module attributes {stable_mosaic.version = 11 : i64} {
  func.func @qkv_rope_kernel(%arg0: i32, %arg1: memref<8x256xbf16, #tpu.memory_space<vmem>>, %arg2: memref<8x256xf32, #tpu.memory_space<vmem>>, %arg3: memref<1x256xf32, #tpu.memory_space<vmem>>, %arg4: memref<256x512xbf16, #tpu.memory_space<vmem>>, %arg5: memref<1x512xf32, #tpu.memory_space<vmem>>, %arg6: memref<8x128xf32, #tpu.memory_space<vmem>>, %arg7: memref<8x128xf32, #tpu.memory_space<vmem>>, %arg8: memref<8x256xbf16, #tpu.memory_space<vmem>>, %arg9: memref<8x128xbf16, #tpu.memory_space<vmem>>, %arg10: memref<8x128xbf16, #tpu.memory_space<vmem>>, %arg11: memref<8x256xf32, #tpu.memory_space<vmem>>) attributes {dimension_semantics = [#tpu.dimension_semantics<parallel>], iteration_bounds = array<i64: 1>, scalar_prefetch = 0 : i64, scratch_operands = 0 : i64, tpu.core_type = #tpu.core_type<tc>, window_params = [{transform_indices = @transform_0, window_bounds = array<i64: 8, 256>}, {transform_indices = @transform_1, window_bounds = array<i64: 8, 256>}, {pipeline_mode = #tpu.pipeline_mode<synchronous>, transform_indices = @transform_2, window_bounds = array<i64: 1, 256>}, {pipeline_mode = #tpu.pipeline_mode<synchronous>, transform_indices = @transform_3, window_bounds = array<i64: 256, 512>}, {pipeline_mode = #tpu.pipeline_mode<synchronous>, transform_indices = @transform_4, window_bounds = array<i64: 1, 512>}, {transform_indices = @transform_5, window_bounds = array<i64: 8, 128>}, {transform_indices = @transform_6, window_bounds = array<i64: 8, 128>}, {transform_indices = @transform_7, window_bounds = array<i64: 8, 256>}, {transform_indices = @transform_8, window_bounds = array<i64: 8, 128>}, {transform_indices = @transform_9, window_bounds = array<i64: 8, 128>}, {transform_indices = @transform_10, window_bounds = array<i64: 8, 256>}]} {
    %c0 = arith.constant 0 : index
    %c0_0 = arith.constant 0 : index
    %0 = vector.load %arg1[%c0, %c0_0] : memref<8x256xbf16, #tpu.memory_space<vmem>>, vector<8x256xbf16>
    %1 = arith.extf %0 : vector<8x256xbf16> to vector<8x256xf32>
    %c0_1 = arith.constant 0 : index
    %c0_2 = arith.constant 0 : index
    %2 = vector.load %arg2[%c0_1, %c0_2] : memref<8x256xf32, #tpu.memory_space<vmem>>, vector<8x256xf32>
    %3 = arith.addf %1, %2 : vector<8x256xf32>
    %c0_3 = arith.constant 0 : index
    %c0_4 = arith.constant 0 : index
    %4 = vector.load %arg11[%c0_3, %c0_4] : memref<8x256xf32, #tpu.memory_space<vmem>>, vector<8x256xf32>
    tpu.vector_store %arg11[%c0_3, %c0_4], %3 {strides = array<i32>} : memref<8x256xf32, #tpu.memory_space<vmem>>, vector<8x256xf32>,
    %c0_5 = arith.constant 0 : index
    %c0_6 = arith.constant 0 : index
    %5 = vector.load %arg3[%c0_5, %c0_6] : memref<1x256xf32, #tpu.memory_space<vmem>>, vector<1x256xf32>
    %6 = arith.mulf %3, %3 : vector<8x256xf32>
    %cst = arith.constant dense<0.000000e+00> : vector<8xf32>
    %7 = vector.multi_reduction <add>, %6, %cst [1] : vector<8x256xf32> to vector<8xf32>
    %8 = vector.shape_cast %7 : vector<8xf32> to vector<8x1xf32>
    %cst_7 = arith.constant 2.560000e+02 : f32
    %9 = vector.broadcast %cst_7 : f32 to vector<8x1xf32>
    %10 = arith.divf %8, %9 : vector<8x1xf32>
    %cst_8 = arith.constant 9.99999997E-7 : f32
    %11 = vector.broadcast %cst_8 : f32 to vector<8x1xf32>
    %12 = arith.addf %10, %11 : vector<8x1xf32>
    %13 = math.rsqrt %12 : vector<8x1xf32>
    %14 = vector.broadcast %13 : vector<8x1xf32> to vector<8x256xf32>
    %15 = arith.mulf %3, %14 : vector<8x256xf32>
    %16 = vector.broadcast %5 : vector<1x256xf32> to vector<8x256xf32>
    %17 = arith.mulf %15, %16 : vector<8x256xf32>
    %18 = arith.truncf %17 : vector<8x256xf32> to vector<8x256xbf16>
    %c0_9 = arith.constant 0 : index
    %c0_10 = arith.constant 0 : index
    %19 = vector.load %arg4[%c0_9, %c0_10] : memref<256x512xbf16, #tpu.memory_space<vmem>>, vector<256x512xbf16>
    %cst_11 = arith.constant dense<0.000000e+00> : vector<8x512xf32>
    %20 = tpu.matmul %18, %19, %cst_11 {dimension_numbers = #tpu.dot_dimension_numbers<[1], [0], [0], [1], [0, 0, 1, 1], [], []>} : vector<8x256xbf16>, vector<256x512xbf16>, vector<8x512xf32> -> vector<8x512xf32>
    %c0_12 = arith.constant 0 : index
    %c0_13 = arith.constant 0 : index
    %21 = vector.load %arg5[%c0_12, %c0_13] : memref<1x512xf32, #tpu.memory_space<vmem>>, vector<1x512xf32>
    %22 = vector.broadcast %21 : vector<1x512xf32> to vector<8x512xf32>
    %23 = arith.addf %20, %22 : vector<8x512xf32>
    %c0_14 = arith.constant 0 : index
    %c0_15 = arith.constant 0 : index
    %24 = vector.load %arg6[%c0_14, %c0_15] : memref<8x128xf32, #tpu.memory_space<vmem>>, vector<8x128xf32>
    %c0_16 = arith.constant 0 : index
    %c0_17 = arith.constant 0 : index
    %25 = vector.load %arg7[%c0_16, %c0_17] : memref<8x128xf32, #tpu.memory_space<vmem>>, vector<8x128xf32>
    %26 = vector.extract_strided_slice %23 {offsets = [0, 0], sizes = [8, 256], strides = [1, 1]} : vector<8x512xf32> to vector<8x256xf32>
    %27 = vector.extract_strided_slice %26 {offsets = [0, 0], sizes = [8, 128], strides = [1, 1]} : vector<8x256xf32> to vector<8x128xf32>
    %28 = arith.mulf %27, %24 : vector<8x128xf32>
    %c64_i32 = arith.constant 64 : i32
    %29 = tpu.dynamic_rotate %27 by %c64_i32 dim 1 : vector<8x128xf32>, i32 -> vector<8x128xf32>
    %30 = arith.mulf %29, %25 : vector<8x128xf32>
    %31 = arith.addf %28, %30 : vector<8x128xf32>
    %32 = vector.extract_strided_slice %26 {offsets = [0, 128], sizes = [8, 128], strides = [1, 1]} : vector<8x256xf32> to vector<8x128xf32>
    %33 = arith.mulf %32, %24 : vector<8x128xf32>
    %c64_i32_18 = arith.constant 64 : i32
    %34 = tpu.dynamic_rotate %32 by %c64_i32_18 dim 1 : vector<8x128xf32>, i32 -> vector<8x128xf32>
    %35 = arith.mulf %34, %25 : vector<8x128xf32>
    %36 = arith.addf %33, %35 : vector<8x128xf32>
    %37 = tpu.concatenate %31, %36 in 1 : vector<8x128xf32>, vector<8x128xf32> -> vector<8x256xf32>
    %38 = vector.extract_strided_slice %23 {offsets = [0, 256], sizes = [8, 128], strides = [1, 1]} : vector<8x512xf32> to vector<8x128xf32>
    %39 = arith.mulf %38, %24 : vector<8x128xf32>
    %c64_i32_19 = arith.constant 64 : i32
    %40 = tpu.dynamic_rotate %38 by %c64_i32_19 dim 1 : vector<8x128xf32>, i32 -> vector<8x128xf32>
    %41 = arith.mulf %40, %25 : vector<8x128xf32>
    %42 = arith.addf %39, %41 : vector<8x128xf32>
    %cst_20 = arith.constant 0.0883883461 : f32
    %43 = vector.broadcast %cst_20 : f32 to vector<8x256xf32>
    %44 = arith.mulf %37, %43 : vector<8x256xf32>
    %45 = arith.truncf %44 : vector<8x256xf32> to vector<8x256xbf16>
    %c0_21 = arith.constant 0 : index
    %c0_22 = arith.constant 0 : index
    %46 = vector.load %arg8[%c0_21, %c0_22] : memref<8x256xbf16, #tpu.memory_space<vmem>>, vector<8x256xbf16>
    tpu.vector_store %arg8[%c0_21, %c0_22], %45 {strides = array<i32>} : memref<8x256xbf16, #tpu.memory_space<vmem>>, vector<8x256xbf16>,
    %47 = arith.truncf %42 : vector<8x128xf32> to vector<8x128xbf16>
    %c0_23 = arith.constant 0 : index
    %c0_24 = arith.constant 0 : index
    %48 = vector.load %arg9[%c0_23, %c0_24] : memref<8x128xbf16, #tpu.memory_space<vmem>>, vector<8x128xbf16>
    tpu.vector_store %arg9[%c0_23, %c0_24], %47 {strides = array<i32>} : memref<8x128xbf16, #tpu.memory_space<vmem>>, vector<8x128xbf16>,
    %49 = vector.extract_strided_slice %23 {offsets = [0, 384], sizes = [8, 128], strides = [1, 1]} : vector<8x512xf32> to vector<8x128xf32>
    %50 = arith.truncf %49 : vector<8x128xf32> to vector<8x128xbf16>
    %c0_25 = arith.constant 0 : index
    %c0_26 = arith.constant 0 : index
    %51 = vector.load %arg10[%c0_25, %c0_26] : memref<8x128xbf16, #tpu.memory_space<vmem>>, vector<8x128xbf16>
    tpu.vector_store %arg10[%c0_25, %c0_26], %50 {strides = array<i32>} : memref<8x128xbf16, #tpu.memory_space<vmem>>, vector<8x128xbf16>,
    return
  }
  func.func @transform_0(%arg0: i32) -> (i32, i32) {
    %c0_i32 = arith.constant 0 : i32
    %c0_i32_0 = arith.constant 0 : i32
    return %arg0, %c0_i32 : i32, i32
  }
  func.func @transform_1(%arg0: i32) -> (i32, i32) {
    %c0_i32 = arith.constant 0 : i32
    %c0_i32_0 = arith.constant 0 : i32
    return %arg0, %c0_i32 : i32, i32
  }
  func.func @transform_2(%arg0: i32) -> (i32, i32) {
    %c0_i32 = arith.constant 0 : i32
    %c0_i32_0 = arith.constant 0 : i32
    %c0_i32_1 = arith.constant 0 : i32
    return %c0_i32, %c0_i32_0 : i32, i32
  }
  func.func @transform_3(%arg0: i32) -> (i32, i32) {
    %c0_i32 = arith.constant 0 : i32
    %c0_i32_0 = arith.constant 0 : i32
    %c0_i32_1 = arith.constant 0 : i32
    return %c0_i32, %c0_i32_0 : i32, i32
  }
  func.func @transform_4(%arg0: i32) -> (i32, i32) {
    %c0_i32 = arith.constant 0 : i32
    %c0_i32_0 = arith.constant 0 : i32
    %c0_i32_1 = arith.constant 0 : i32
    return %c0_i32, %c0_i32_0 : i32, i32
  }
  func.func @transform_5(%arg0: i32) -> (i32, i32) {
    %c0_i32 = arith.constant 0 : i32
    %c0_i32_0 = arith.constant 0 : i32
    return %arg0, %c0_i32 : i32, i32
  }
  func.func @transform_6(%arg0: i32) -> (i32, i32) {
    %c0_i32 = arith.constant 0 : i32
    %c0_i32_0 = arith.constant 0 : i32
    return %arg0, %c0_i32 : i32, i32
  }
  func.func @transform_7(%arg0: i32) -> (i32, i32) {
    %c0_i32 = arith.constant 0 : i32
    %c0_i32_0 = arith.constant 0 : i32
    return %arg0, %c0_i32 : i32, i32
  }
  func.func @transform_8(%arg0: i32) -> (i32, i32) {
    %c0_i32 = arith.constant 0 : i32
    %c0_i32_0 = arith.constant 0 : i32
    return %arg0, %c0_i32 : i32, i32
  }
  func.func @transform_9(%arg0: i32) -> (i32, i32) {
    %c0_i32 = arith.constant 0 : i32
    %c0_i32_0 = arith.constant 0 : i32
    return %arg0, %c0_i32 : i32, i32
  }
  func.func @transform_10(%arg0: i32) -> (i32, i32) {
    %c0_i32 = arith.constant 0 : i32
    %c0_i32_0 = arith.constant 0 : i32
    return %arg0, %c0_i32 : i32, i32
  }
}

module attributes {stable_mosaic.version = 11 : i64} {
  func.func @qkv_rope_kernel(%arg0: i32, %arg1: memref<8x256xbf16, #tpu.memory_space<vmem>>, %arg2: memref<8x256xf32, #tpu.memory_space<vmem>>, %arg3: memref<1x256xf32, #tpu.memory_space<vmem>>, %arg4: memref<256x512xbf16, #tpu.memory_space<vmem>>, %arg5: memref<1x512xf32, #tpu.memory_space<vmem>>, %arg6: memref<8x128xf32, #tpu.memory_space<vmem>>, %arg7: memref<8x128xf32, #tpu.memory_space<vmem>>, %arg8: memref<8x256xbf16, #tpu.memory_space<vmem>>, %arg9: memref<8x128xbf16, #tpu.memory_space<vmem>>, %arg10: memref<8x128xbf16, #tpu.memory_space<vmem>>, %arg11: memref<8x256xf32, #tpu.memory_space<vmem>>) attributes {dimension_semantics = [#tpu.dimension_semantics<parallel>], iteration_bounds = array<i64: 1>, scalar_prefetch = 0 : i64, scratch_operands = 0 : i64, tpu.core_type = #tpu.core_type<tc>, window_params = [{transform_indices = @transform_0, window_bounds = array<i64: 8, 256>}, {transform_indices = @transform_1, window_bounds = array<i64: 8, 256>}, {pipeline_mode = #tpu.pipeline_mode<synchronous>, transform_indices = @transform_2, window_bounds = array<i64: 1, 256>}, {pipeline_mode = #tpu.pipeline_mode<synchronous>, transform_indices = @transform_3, window_bounds = array<i64: 256, 512>}, {pipeline_mode = #tpu.pipeline_mode<synchronous>, transform_indices = @transform_4, window_bounds = array<i64: 1, 512>}, {transform_indices = @transform_5, window_bounds = array<i64: 8, 128>}, {transform_indices = @transform_6, window_bounds = array<i64: 8, 128>}, {transform_indices = @transform_7, window_bounds = array<i64: 8, 256>}, {transform_indices = @transform_8, window_bounds = array<i64: 8, 128>}, {transform_indices = @transform_9, window_bounds = array<i64: 8, 128>}, {transform_indices = @transform_10, window_bounds = array<i64: 8, 256>}]} {
    %c0 = arith.constant 0 : index
    %c0_0 = arith.constant 0 : index
    %0 = vector.load %arg1[%c0, %c0_0] : memref<8x256xbf16, #tpu.memory_space<vmem>>, vector<8x256xbf16>
    %1 = arith.extf %0 : vector<8x256xbf16> to vector<8x256xf32>
    %c0_1 = arith.constant 0 : index
    %c0_2 = arith.constant 0 : index
    %2 = vector.load %arg2[%c0_1, %c0_2] : memref<8x256xf32, #tpu.memory_space<vmem>>, vector<8x256xf32>
    %3 = arith.addf %1, %2 : vector<8x256xf32>
    %c0_3 = arith.constant 0 : index
    %c0_4 = arith.constant 0 : index
    %4 = vector.load %arg11[%c0_3, %c0_4] : memref<8x256xf32, #tpu.memory_space<vmem>>, vector<8x256xf32>
    tpu.vector_store %arg11[%c0_3, %c0_4], %3 {strides = array<i32>} : memref<8x256xf32, #tpu.memory_space<vmem>>, vector<8x256xf32>,
    %c0_5 = arith.constant 0 : index
    %c0_6 = arith.constant 0 : index
    %5 = vector.load %arg3[%c0_5, %c0_6] : memref<1x256xf32, #tpu.memory_space<vmem>>, vector<1x256xf32>
    %6 = arith.mulf %3, %3 : vector<8x256xf32>
    %cst = arith.constant dense<0.000000e+00> : vector<8xf32>
    %7 = vector.multi_reduction <add>, %6, %cst [1] : vector<8x256xf32> to vector<8xf32>
    %8 = vector.shape_cast %7 : vector<8xf32> to vector<8x1xf32>
    %cst_7 = arith.constant 2.560000e+02 : f32
    %9 = vector.broadcast %cst_7 : f32 to vector<8x1xf32>
    %10 = arith.divf %8, %9 : vector<8x1xf32>
    %cst_8 = arith.constant 9.99999997E-7 : f32
    %11 = vector.broadcast %cst_8 : f32 to vector<8x1xf32>
    %12 = arith.addf %10, %11 : vector<8x1xf32>
    %13 = math.rsqrt %12 : vector<8x1xf32>
    %14 = vector.broadcast %13 : vector<8x1xf32> to vector<8x256xf32>
    %15 = arith.mulf %3, %14 : vector<8x256xf32>
    %16 = vector.broadcast %5 : vector<1x256xf32> to vector<8x256xf32>
    %17 = arith.mulf %15, %16 : vector<8x256xf32>
    %18 = arith.truncf %17 : vector<8x256xf32> to vector<8x256xbf16>
    %c0_9 = arith.constant 0 : index
    %c0_10 = arith.constant 0 : index
    %19 = vector.load %arg4[%c0_9, %c0_10] : memref<256x512xbf16, #tpu.memory_space<vmem>>, vector<256x512xbf16>
    %cst_11 = arith.constant dense<0.000000e+00> : vector<8x512xf32>
    %20 = tpu.matmul %18, %19, %cst_11 {dimension_numbers = #tpu.dot_dimension_numbers<[1], [0], [0], [1], [0, 0, 1, 1], [], []>} : vector<8x256xbf16>, vector<256x512xbf16>, vector<8x512xf32> -> vector<8x512xf32>
    %c0_12 = arith.constant 0 : index
    %c0_13 = arith.constant 0 : index
    %21 = vector.load %arg5[%c0_12, %c0_13] : memref<1x512xf32, #tpu.memory_space<vmem>>, vector<1x512xf32>
    %22 = vector.broadcast %21 : vector<1x512xf32> to vector<8x512xf32>
    %23 = arith.addf %20, %22 : vector<8x512xf32>
    %c0_14 = arith.constant 0 : index
    %c0_15 = arith.constant 0 : index
    %24 = vector.load %arg6[%c0_14, %c0_15] : memref<8x128xf32, #tpu.memory_space<vmem>>, vector<8x128xf32>
    %c0_16 = arith.constant 0 : index
    %c0_17 = arith.constant 0 : index
    %25 = vector.load %arg7[%c0_16, %c0_17] : memref<8x128xf32, #tpu.memory_space<vmem>>, vector<8x128xf32>
    %26 = vector.extract_strided_slice %23 {offsets = [0, 0], sizes = [8, 256], strides = [1, 1]} : vector<8x512xf32> to vector<8x256xf32>
    %27 = vector.extract_strided_slice %26 {offsets = [0, 0], sizes = [8, 128], strides = [1, 1]} : vector<8x256xf32> to vector<8x128xf32>
    %28 = arith.mulf %27, %24 : vector<8x128xf32>
    %c64_i32 = arith.constant 64 : i32
    %29 = tpu.dynamic_rotate %27 by %c64_i32 dim 1 : vector<8x128xf32>, i32 -> vector<8x128xf32>
    %30 = arith.mulf %29, %25 : vector<8x128xf32>
    %31 = arith.addf %28, %30 : vector<8x128xf32>
    %32 = vector.extract_strided_slice %26 {offsets = [0, 128], sizes = [8, 128], strides = [1, 1]} : vector<8x256xf32> to vector<8x128xf32>
    %33 = arith.mulf %32, %24 : vector<8x128xf32>
    %c64_i32_18 = arith.constant 64 : i32
    %34 = tpu.dynamic_rotate %32 by %c64_i32_18 dim 1 : vector<8x128xf32>, i32 -> vector<8x128xf32>
    %35 = arith.mulf %34, %25 : vector<8x128xf32>
    %36 = arith.addf %33, %35 : vector<8x128xf32>
    %37 = tpu.concatenate %31, %36 in 1 : vector<8x128xf32>, vector<8x128xf32> -> vector<8x256xf32>
    %38 = vector.extract_strided_slice %23 {offsets = [0, 256], sizes = [8, 128], strides = [1, 1]} : vector<8x512xf32> to vector<8x128xf32>
    %39 = arith.mulf %38, %24 : vector<8x128xf32>
    %c64_i32_19 = arith.constant 64 : i32
    %40 = tpu.dynamic_rotate %38 by %c64_i32_19 dim 1 : vector<8x128xf32>, i32 -> vector<8x128xf32>
    %41 = arith.mulf %40, %25 : vector<8x128xf32>
    %42 = arith.addf %39, %41 : vector<8x128xf32>
    %cst_20 = arith.constant 0.0883883461 : f32
    %43 = vector.broadcast %cst_20 : f32 to vector<8x256xf32>
    %44 = arith.mulf %37, %43 : vector<8x256xf32>
    %45 = arith.truncf %44 : vector<8x256xf32> to vector<8x256xbf16>
    %c0_21 = arith.constant 0 : index
    %c0_22 = arith.constant 0 : index
    %46 = vector.load %arg8[%c0_21, %c0_22] : memref<8x256xbf16, #tpu.memory_space<vmem>>, vector<8x256xbf16>
    tpu.vector_store %arg8[%c0_21, %c0_22], %45 {strides = array<i32>} : memref<8x256xbf16, #tpu.memory_space<vmem>>, vector<8x256xbf16>,
    %47 = arith.truncf %42 : vector<8x128xf32> to vector<8x128xbf16>
    %c0_23 = arith.constant 0 : index
    %c0_24 = arith.constant 0 : index
    %48 = vector.load %arg9[%c0_23, %c0_24] : memref<8x128xbf16, #tpu.memory_space<vmem>>, vector<8x128xbf16>
    tpu.vector_store %arg9[%c0_23, %c0_24], %47 {strides = array<i32>} : memref<8x128xbf16, #tpu.memory_space<vmem>>, vector<8x128xbf16>,
    %49 = vector.extract_strided_slice %23 {offsets = [0, 384], sizes = [8, 128], strides = [1, 1]} : vector<8x512xf32> to vector<8x128xf32>
    %50 = arith.truncf %49 : vector<8x128xf32> to vector<8x128xbf16>
    %c0_25 = arith.constant 0 : index
    %c0_26 = arith.constant 0 : index
    %51 = vector.load %arg10[%c0_25, %c0_26] : memref<8x128xbf16, #tpu.memory_space<vmem>>, vector<8x128xbf16>
    tpu.vector_store %arg10[%c0_25, %c0_26], %50 {strides = array<i32>} : memref<8x128xbf16, #tpu.memory_space<vmem>>, vector<8x128xbf16>,
    return
  }
  func.func @transform_0(%arg0: i32) -> (i32, i32) {
    %c0_i32 = arith.constant 0 : i32
    %c0_i32_0 = arith.constant 0 : i32
    return %arg0, %c0_i32 : i32, i32
  }
  func.func @transform_1(%arg0: i32) -> (i32, i32) {
    %c0_i32 = arith.constant 0 : i32
    %c0_i32_0 = arith.constant 0 : i32
    return %arg0, %c0_i32 : i32, i32
  }
  func.func @transform_2(%arg0: i32) -> (i32, i32) {
    %c0_i32 = arith.constant 0 : i32
    %c0_i32_0 = arith.constant 0 : i32
    %c0_i32_1 = arith.constant 0 : i32
    return %c0_i32, %c0_i32_0 : i32, i32
  }
  func.func @transform_3(%arg0: i32) -> (i32, i32) {
    %c0_i32 = arith.constant 0 : i32
    %c0_i32_0 = arith.constant 0 : i32
    %c0_i32_1 = arith.constant 0 : i32
    return %c0_i32, %c0_i32_0 : i32, i32
  }
  func.func @transform_4(%arg0: i32) -> (i32, i32) {
    %c0_i32 = arith.constant 0 : i32
    %c0_i32_0 = arith.constant 0 : i32
    %c0_i32_1 = arith.constant 0 : i32
    return %c0_i32, %c0_i32_0 : i32, i32
  }
  func.func @transform_5(%arg0: i32) -> (i32, i32) {
    %c0_i32 = arith.constant 0 : i32
    %c0_i32_0 = arith.constant 0 : i32
    return %arg0, %c0_i32 : i32, i32
  }
  func.func @transform_6(%arg0: i32) -> (i32, i32) {
    %c0_i32 = arith.constant 0 : i32
    %c0_i32_0 = arith.constant 0 : i32
    return %arg0, %c0_i32 : i32, i32
  }
  func.func @transform_7(%arg0: i32) -> (i32, i32) {
    %c0_i32 = arith.constant 0 : i32
    %c0_i32_0 = arith.constant 0 : i32
    return %arg0, %c0_i32 : i32, i32
  }
  func.func @transform_8(%arg0: i32) -> (i32, i32) {
    %c0_i32 = arith.constant 0 : i32
    %c0_i32_0 = arith.constant 0 : i32
    return %arg0, %c0_i32 : i32, i32
  }
  func.func @transform_9(%arg0: i32) -> (i32, i32) {
    %c0_i32 = arith.constant 0 : i32
    %c0_i32_0 = arith.constant 0 : i32
    return %arg0, %c0_i32 : i32, i32
  }
  func.func @transform_10(%arg0: i32) -> (i32, i32) {
    %c0_i32 = arith.constant 0 : i32
    %c0_i32_0 = arith.constant 0 : i32
    return %arg0, %c0_i32 : i32, i32
  }
}

module attributes {stable_mosaic.version = 11 : i64} {
  func.func @attn_oproj_kernel(%arg0: i32, %arg1: i32, %arg2: i32, %arg3: memref<8x256xbf16, #tpu.memory_space<vmem>>, %arg4: memref<8x128xbf16, #tpu.memory_space<vmem>>, %arg5: memref<8x128xbf16, #tpu.memory_space<vmem>>, %arg6: memref<256x256xbf16, #tpu.memory_space<vmem>>, %arg7: memref<8x256xbf16, #tpu.memory_space<vmem>>, %arg8: memref<2x8x1xf32, #tpu.memory_space<vmem>>, %arg9: memref<2x8x1xf32, #tpu.memory_space<vmem>>, %arg10: memref<2x8x128xf32, #tpu.memory_space<vmem>>, %arg11: memref<8x256xf32, #tpu.memory_space<vmem>>) attributes {dimension_semantics = [#tpu.dimension_semantics<parallel>, #tpu.dimension_semantics<arbitrary>, #tpu.dimension_semantics<arbitrary>], iteration_bounds = array<i64: 1, 1, 1>, scalar_prefetch = 0 : i64, scratch_operands = 4 : i64, tpu.core_type = #tpu.core_type<tc>, window_params = [{transform_indices = @transform_0, window_bounds = array<i64: 8, 256>}, {transform_indices = @transform_1, window_bounds = array<i64: 8, 128>}, {transform_indices = @transform_2, window_bounds = array<i64: 8, 128>}, {transform_indices = @transform_3, window_bounds = array<i64: 256, 256>}, {transform_indices = @transform_4, window_bounds = array<i64: 8, 256>}]} {
    %c0_i32 = arith.constant 0 : i32
    %0 = arith.cmpi eq, %arg1, %c0_i32 : i32
    %c0_i32_0 = arith.constant 0 : i32
    %1 = arith.cmpi eq, %arg2, %c0_i32_0 : i32
    %2 = arith.andi %0, %1 : i1
    %3 = arith.extui %2 : i1 to i32
    %c0_i32_1 = arith.constant 0 : i32
    %4 = arith.cmpi ne, %3, %c0_i32_1 : i32
    scf.if %4 {
      %cst = arith.constant 0.000000e+00 : f32
      %19 = vector.broadcast %cst : f32 to vector<8x256xf32>
      %c0 = arith.constant 0 : index
      %c0_10 = arith.constant 0 : index
      %20 = vector.load %arg11[%c0, %c0_10] : memref<8x256xf32, #tpu.memory_space<vmem>>, vector<8x256xf32>
      tpu.vector_store %arg11[%c0, %c0_10], %19 {strides = array<i32>} : memref<8x256xf32, #tpu.memory_space<vmem>>, vector<8x256xf32>,
    } else {
    }
    %c0_i32_2 = arith.constant 0 : i32
    %5 = arith.cmpi eq, %arg2, %c0_i32_2 : i32
    %6 = arith.extui %5 : i1 to i32
    %c0_i32_3 = arith.constant 0 : i32
    %7 = arith.cmpi ne, %6, %c0_i32_3 : i32
    scf.if %7 {
      %cst = arith.constant -1.000000e+30 : f32
      %19 = vector.broadcast %cst : f32 to vector<2x8x1xf32>
      %c0 = arith.constant 0 : index
      %c0_10 = arith.constant 0 : index
      %c0_11 = arith.constant 0 : index
      %20 = vector.load %arg8[%c0, %c0_10, %c0_11] : memref<2x8x1xf32, #tpu.memory_space<vmem>>, vector<2x8x1xf32>
      tpu.vector_store %arg8[%c0, %c0_10, %c0_11], %19 {strides = array<i32>} : memref<2x8x1xf32, #tpu.memory_space<vmem>>, vector<2x8x1xf32>,
      %cst_12 = arith.constant 0.000000e+00 : f32
      %21 = vector.broadcast %cst_12 : f32 to vector<2x8x1xf32>
      %c0_13 = arith.constant 0 : index
      %c0_14 = arith.constant 0 : index
      %c0_15 = arith.constant 0 : index
      %22 = vector.load %arg9[%c0_13, %c0_14, %c0_15] : memref<2x8x1xf32, #tpu.memory_space<vmem>>, vector<2x8x1xf32>
      tpu.vector_store %arg9[%c0_13, %c0_14, %c0_15], %21 {strides = array<i32>} : memref<2x8x1xf32, #tpu.memory_space<vmem>>, vector<2x8x1xf32>,
      %cst_16 = arith.constant 0.000000e+00 : f32
      %23 = vector.broadcast %cst_16 : f32 to vector<2x8x128xf32>
      %c0_17 = arith.constant 0 : index
      %c0_18 = arith.constant 0 : index
      %c0_19 = arith.constant 0 : index
      %24 = vector.load %arg10[%c0_17, %c0_18, %c0_19] : memref<2x8x128xf32, #tpu.memory_space<vmem>>, vector<2x8x128xf32>
      tpu.vector_store %arg10[%c0_17, %c0_18, %c0_19], %23 {strides = array<i32>} : memref<2x8x128xf32, #tpu.memory_space<vmem>>, vector<2x8x128xf32>,
    } else {
    }
    %8 = arith.cmpi sle, %arg2, %arg0 : i32
    %9 = arith.extui %8 : i1 to i32
    %c0_i32_4 = arith.constant 0 : i32
    %10 = arith.cmpi ne, %9, %c0_i32_4 : i32
    scf.if %10 {
      %c0 = arith.constant 0 : index
      %c0_10 = arith.constant 0 : index
      %19 = vector.load %arg3[%c0, %c0_10] : memref<8x256xbf16, #tpu.memory_space<vmem>>, vector<8x256xbf16>
      %c0_11 = arith.constant 0 : index
      %c0_12 = arith.constant 0 : index
      %20 = vector.load %arg4[%c0_11, %c0_12] : memref<8x128xbf16, #tpu.memory_space<vmem>>, vector<8x128xbf16>
      %c0_13 = arith.constant 0 : index
      %c0_14 = arith.constant 0 : index
      %21 = vector.load %arg5[%c0_13, %c0_14] : memref<8x128xbf16, #tpu.memory_space<vmem>>, vector<8x128xbf16>
      %c8_i32 = arith.constant 8 : i32
      %22 = arith.muli %arg0, %c8_i32 : i32
      %23 = tpu.iota {dimensions = array<i32: 0>} : vector<8x8xi32>
      %24 = vector.broadcast %22 : i32 to vector<8x8xi32>
      %25 = arith.addi %24, %23 : vector<8x8xi32>
      %c8_i32_15 = arith.constant 8 : i32
      %26 = arith.muli %arg2, %c8_i32_15 : i32
      %27 = tpu.iota {dimensions = array<i32: 1>} : vector<8x8xi32>
      %28 = vector.broadcast %26 : i32 to vector<8x8xi32>
      %29 = arith.addi %28, %27 : vector<8x8xi32>
      %30 = arith.cmpi sle, %29, %25 : vector<8x8xi32>
      %31 = vector.extract_strided_slice %19 {offsets = [0, 0], sizes = [8, 128], strides = [1, 1]} : vector<8x256xbf16> to vector<8x128xbf16>
      %cst = arith.constant dense<0.000000e+00> : vector<8x8xf32>
      %32 = tpu.matmul %31, %20, %cst {dimension_numbers = #tpu.dot_dimension_numbers<[1], [1], [0], [0], [0, 0, 1, 0], [], []>} : vector<8x128xbf16>, vector<8x128xbf16>, vector<8x8xf32> -> vector<8x8xf32>
      %cst_16 = arith.constant -1.000000e+30 : f32
      %33 = vector.broadcast %cst_16 : f32 to vector<8x8xf32>
      %34 = arith.select %30, %32, %33 : vector<8x8xi1>, vector<8x8xf32>
      %c0_17 = arith.constant 0 : index
      %c0_18 = arith.constant 0 : index
      %c0_19 = arith.constant 0 : index
      %35 = vector.load %arg8[%c0_17, %c0_18, %c0_19] : memref<2x8x1xf32, #tpu.memory_space<vmem>>, vector<1x8x1xf32>
      %36 = vector.shape_cast %35 : vector<1x8x1xf32> to vector<8x1xf32>
      %cst_20 = arith.constant dense<0xFF800000> : vector<8xf32>
      %37 = vector.multi_reduction <maximumf>, %34, %cst_20 [1] : vector<8x8xf32> to vector<8xf32>
      %38 = vector.shape_cast %37 : vector<8xf32> to vector<8x1xf32>
      %39 = arith.maximumf %36, %38 : vector<8x1xf32>
      %40 = arith.subf %36, %39 : vector<8x1xf32>
      %41 = math.exp %40 : vector<8x1xf32>
      %42 = vector.broadcast %39 : vector<8x1xf32> to vector<8x8xf32>
      %43 = arith.subf %34, %42 : vector<8x8xf32>
      %44 = math.exp %43 : vector<8x8xf32>
      %c0_21 = arith.constant 0 : index
      %c0_22 = arith.constant 0 : index
      %c0_23 = arith.constant 0 : index
      %45 = vector.load %arg9[%c0_21, %c0_22, %c0_23] : memref<2x8x1xf32, #tpu.memory_space<vmem>>, vector<1x8x1xf32>
      %46 = vector.shape_cast %45 : vector<1x8x1xf32> to vector<8x1xf32>
      %47 = arith.mulf %41, %46 : vector<8x1xf32>
      %cst_24 = arith.constant dense<0.000000e+00> : vector<8xf32>
      %48 = vector.multi_reduction <add>, %44, %cst_24 [1] : vector<8x8xf32> to vector<8xf32>
      %49 = vector.shape_cast %48 : vector<8xf32> to vector<8x1xf32>
      %50 = arith.addf %47, %49 : vector<8x1xf32>
      %c0_25 = arith.constant 0 : index
      %c0_26 = arith.constant 0 : index
      %c0_27 = arith.constant 0 : index
      %51 = vector.load %arg9[%c0_25, %c0_26, %c0_27] : memref<2x8x1xf32, #tpu.memory_space<vmem>>, vector<1x8x1xf32>
      %52 = vector.shape_cast %51 : vector<1x8x1xf32> to vector<8x1xf32>
      %53 = vector.shape_cast %50 : vector<8x1xf32> to vector<1x8x1xf32>
      tpu.vector_store %arg9[%c0_25, %c0_26, %c0_27], %53 {strides = array<i32>} : memref<2x8x1xf32, #tpu.memory_space<vmem>>, vector<1x8x1xf32>,
      %c0_28 = arith.constant 0 : index
      %c0_29 = arith.constant 0 : index
      %c0_30 = arith.constant 0 : index
      %54 = vector.load %arg10[%c0_28, %c0_29, %c0_30] : memref<2x8x128xf32, #tpu.memory_space<vmem>>, vector<1x8x128xf32>
      %55 = vector.shape_cast %54 : vector<1x8x128xf32> to vector<8x128xf32>
      %56 = vector.broadcast %41 : vector<8x1xf32> to vector<8x128xf32>
      %57 = arith.mulf %56, %55 : vector<8x128xf32>
      %58 = arith.truncf %44 : vector<8x8xf32> to vector<8x8xbf16>
      %cst_31 = arith.constant dense<0.000000e+00> : vector<8x128xf32>
      %59 = tpu.matmul %58, %21, %cst_31 {dimension_numbers = #tpu.dot_dimension_numbers<[1], [0], [0], [1], [0, 0, 1, 1], [], []>} : vector<8x8xbf16>, vector<8x128xbf16>, vector<8x128xf32> -> vector<8x128xf32>
      %60 = arith.addf %57, %59 : vector<8x128xf32>
      %c0_32 = arith.constant 0 : index
      %c0_33 = arith.constant 0 : index
      %c0_34 = arith.constant 0 : index
      %61 = vector.load %arg10[%c0_32, %c0_33, %c0_34] : memref<2x8x128xf32, #tpu.memory_space<vmem>>, vector<1x8x128xf32>
      %62 = vector.shape_cast %61 : vector<1x8x128xf32> to vector<8x128xf32>
      %63 = vector.shape_cast %60 : vector<8x128xf32> to vector<1x8x128xf32>
      tpu.vector_store %arg10[%c0_32, %c0_33, %c0_34], %63 {strides = array<i32>} : memref<2x8x128xf32, #tpu.memory_space<vmem>>, vector<1x8x128xf32>,
      %c0_35 = arith.constant 0 : index
      %c0_36 = arith.constant 0 : index
      %c0_37 = arith.constant 0 : index
      %64 = vector.load %arg8[%c0_35, %c0_36, %c0_37] : memref<2x8x1xf32, #tpu.memory_space<vmem>>, vector<1x8x1xf32>
      %65 = vector.shape_cast %64 : vector<1x8x1xf32> to vector<8x1xf32>
      %66 = vector.shape_cast %39 : vector<8x1xf32> to vector<1x8x1xf32>
      tpu.vector_store %arg8[%c0_35, %c0_36, %c0_37], %66 {strides = array<i32>} : memref<2x8x1xf32, #tpu.memory_space<vmem>>, vector<1x8x1xf32>,
      %67 = vector.extract_strided_slice %19 {offsets = [0, 128], sizes = [8, 128], strides = [1, 1]} : vector<8x256xbf16> to vector<8x128xbf16>
      %cst_38 = arith.constant dense<0.000000e+00> : vector<8x8xf32>
      %68 = tpu.matmul %67, %20, %cst_38 {dimension_numbers = #tpu.dot_dimension_numbers<[1], [1], [0], [0], [0, 0, 1, 0], [], []>} : vector<8x128xbf16>, vector<8x128xbf16>, vector<8x8xf32> -> vector<8x8xf32>
      %cst_39 = arith.constant -1.000000e+30 : f32
      %69 = vector.broadcast %cst_39 : f32 to vector<8x8xf32>
      %70 = arith.select %30, %68, %69 : vector<8x8xi1>, vector<8x8xf32>
      %c1 = arith.constant 1 : index
      %c0_40 = arith.constant 0 : index
      %c0_41 = arith.constant 0 : index
      %71 = vector.load %arg8[%c1, %c0_40, %c0_41] : memref<2x8x1xf32, #tpu.memory_space<vmem>>, vector<1x8x1xf32>
      %72 = vector.shape_cast %71 : vector<1x8x1xf32> to vector<8x1xf32>
      %cst_42 = arith.constant dense<0xFF800000> : vector<8xf32>
      %73 = vector.multi_reduction <maximumf>, %70, %cst_42 [1] : vector<8x8xf32> to vector<8xf32>
      %74 = vector.shape_cast %73 : vector<8xf32> to vector<8x1xf32>
      %75 = arith.maximumf %72, %74 : vector<8x1xf32>
      %76 = arith.subf %72, %75 : vector<8x1xf32>
      %77 = math.exp %76 : vector<8x1xf32>
      %78 = vector.broadcast %75 : vector<8x1xf32> to vector<8x8xf32>
      %79 = arith.subf %70, %78 : vector<8x8xf32>
      %80 = math.exp %79 : vector<8x8xf32>
      %c1_43 = arith.constant 1 : index
      %c0_44 = arith.constant 0 : index
      %c0_45 = arith.constant 0 : index
      %81 = vector.load %arg9[%c1_43, %c0_44, %c0_45] : memref<2x8x1xf32, #tpu.memory_space<vmem>>, vector<1x8x1xf32>
      %82 = vector.shape_cast %81 : vector<1x8x1xf32> to vector<8x1xf32>
      %83 = arith.mulf %77, %82 : vector<8x1xf32>
      %cst_46 = arith.constant dense<0.000000e+00> : vector<8xf32>
      %84 = vector.multi_reduction <add>, %80, %cst_46 [1] : vector<8x8xf32> to vector<8xf32>
      %85 = vector.shape_cast %84 : vector<8xf32> to vector<8x1xf32>
      %86 = arith.addf %83, %85 : vector<8x1xf32>
      %c1_47 = arith.constant 1 : index
      %c0_48 = arith.constant 0 : index
      %c0_49 = arith.constant 0 : index
      %87 = vector.load %arg9[%c1_47, %c0_48, %c0_49] : memref<2x8x1xf32, #tpu.memory_space<vmem>>, vector<1x8x1xf32>
      %88 = vector.shape_cast %87 : vector<1x8x1xf32> to vector<8x1xf32>
      %89 = vector.shape_cast %86 : vector<8x1xf32> to vector<1x8x1xf32>
      tpu.vector_store %arg9[%c1_47, %c0_48, %c0_49], %89 {strides = array<i32>} : memref<2x8x1xf32, #tpu.memory_space<vmem>>, vector<1x8x1xf32>,
      %c1_50 = arith.constant 1 : index
      %c0_51 = arith.constant 0 : index
      %c0_52 = arith.constant 0 : index
      %90 = vector.load %arg10[%c1_50, %c0_51, %c0_52] : memref<2x8x128xf32, #tpu.memory_space<vmem>>, vector<1x8x128xf32>
      %91 = vector.shape_cast %90 : vector<1x8x128xf32> to vector<8x128xf32>
      %92 = vector.broadcast %77 : vector<8x1xf32> to vector<8x128xf32>
      %93 = arith.mulf %92, %91 : vector<8x128xf32>
      %94 = arith.truncf %80 : vector<8x8xf32> to vector<8x8xbf16>
      %cst_53 = arith.constant dense<0.000000e+00> : vector<8x128xf32>
      %95 = tpu.matmul %94, %21, %cst_53 {dimension_numbers = #tpu.dot_dimension_numbers<[1], [0], [0], [1], [0, 0, 1, 1], [], []>} : vector<8x8xbf16>, vector<8x128xbf16>, vector<8x128xf32> -> vector<8x128xf32>
      %96 = arith.addf %93, %95 : vector<8x128xf32>
      %c1_54 = arith.constant 1 : index
      %c0_55 = arith.constant 0 : index
      %c0_56 = arith.constant 0 : index
      %97 = vector.load %arg10[%c1_54, %c0_55, %c0_56] : memref<2x8x128xf32, #tpu.memory_space<vmem>>, vector<1x8x128xf32>
      %98 = vector.shape_cast %97 : vector<1x8x128xf32> to vector<8x128xf32>
      %99 = vector.shape_cast %96 : vector<8x128xf32> to vector<1x8x128xf32>
      tpu.vector_store %arg10[%c1_54, %c0_55, %c0_56], %99 {strides = array<i32>} : memref<2x8x128xf32, #tpu.memory_space<vmem>>, vector<1x8x128xf32>,
      %c1_57 = arith.constant 1 : index
      %c0_58 = arith.constant 0 : index
      %c0_59 = arith.constant 0 : index
      %100 = vector.load %arg8[%c1_57, %c0_58, %c0_59] : memref<2x8x1xf32, #tpu.memory_space<vmem>>, vector<1x8x1xf32>
      %101 = vector.shape_cast %100 : vector<1x8x1xf32> to vector<8x1xf32>
      %102 = vector.shape_cast %75 : vector<8x1xf32> to vector<1x8x1xf32>
      tpu.vector_store %arg8[%c1_57, %c0_58, %c0_59], %102 {strides = array<i32>} : memref<2x8x1xf32, #tpu.memory_space<vmem>>, vector<1x8x1xf32>,
    } else {
    }
    %c0_i32_5 = arith.constant 0 : i32
    %11 = arith.cmpi eq, %arg2, %c0_i32_5 : i32
    %12 = arith.extui %11 : i1 to i32
    %c0_i32_6 = arith.constant 0 : i32
    %13 = arith.cmpi ne, %12, %c0_i32_6 : i32
    scf.if %13 {
      %c0 = arith.constant 0 : index
      %c0_10 = arith.constant 0 : index
      %c0_11 = arith.constant 0 : index
      %19 = vector.load %arg10[%c0, %c0_10, %c0_11] : memref<2x8x128xf32, #tpu.memory_space<vmem>>, vector<1x8x128xf32>
      %20 = vector.shape_cast %19 : vector<1x8x128xf32> to vector<8x128xf32>
      %c0_12 = arith.constant 0 : index
      %c0_13 = arith.constant 0 : index
      %c0_14 = arith.constant 0 : index
      %21 = vector.load %arg9[%c0_12, %c0_13, %c0_14] : memref<2x8x1xf32, #tpu.memory_space<vmem>>, vector<1x8x1xf32>
      %22 = vector.shape_cast %21 : vector<1x8x1xf32> to vector<8x1xf32>
      %23 = tpu.reciprocal %22 {approx = true} : vector<8x1xf32> -> vector<8x1xf32>
      %24 = vector.broadcast %23 : vector<8x1xf32> to vector<8x128xf32>
      %25 = arith.mulf %20, %24 : vector<8x128xf32>
      %c1 = arith.constant 1 : index
      %c0_15 = arith.constant 0 : index
      %c0_16 = arith.constant 0 : index
      %26 = vector.load %arg10[%c1, %c0_15, %c0_16] : memref<2x8x128xf32, #tpu.memory_space<vmem>>, vector<1x8x128xf32>
      %27 = vector.shape_cast %26 : vector<1x8x128xf32> to vector<8x128xf32>
      %c1_17 = arith.constant 1 : index
      %c0_18 = arith.constant 0 : index
      %c0_19 = arith.constant 0 : index
      %28 = vector.load %arg9[%c1_17, %c0_18, %c0_19] : memref<2x8x1xf32, #tpu.memory_space<vmem>>, vector<1x8x1xf32>
      %29 = vector.shape_cast %28 : vector<1x8x1xf32> to vector<8x1xf32>
      %30 = tpu.reciprocal %29 {approx = true} : vector<8x1xf32> -> vector<8x1xf32>
      %31 = vector.broadcast %30 : vector<8x1xf32> to vector<8x128xf32>
      %32 = arith.mulf %27, %31 : vector<8x128xf32>
      %33 = tpu.concatenate %25, %32 in 1 : vector<8x128xf32>, vector<8x128xf32> -> vector<8x256xf32>
      %c0_20 = arith.constant 0 : index
      %c0_21 = arith.constant 0 : index
      %34 = vector.load %arg11[%c0_20, %c0_21] : memref<8x256xf32, #tpu.memory_space<vmem>>, vector<8x256xf32>
      %35 = arith.truncf %33 : vector<8x256xf32> to vector<8x256xbf16>
      %c0_22 = arith.constant 0 : index
      %c0_23 = arith.constant 0 : index
      %36 = vector.load %arg6[%c0_22, %c0_23] : memref<256x256xbf16, #tpu.memory_space<vmem>>, vector<256x256xbf16>
      %cst = arith.constant dense<0.000000e+00> : vector<8x256xf32>
      %37 = tpu.matmul %35, %36, %cst {dimension_numbers = #tpu.dot_dimension_numbers<[1], [0], [0], [1], [0, 0, 1, 1], [], []>} : vector<8x256xbf16>, vector<256x256xbf16>, vector<8x256xf32> -> vector<8x256xf32>
      %38 = arith.addf %34, %37 : vector<8x256xf32>
      %c0_24 = arith.constant 0 : index
      %c0_25 = arith.constant 0 : index
      %39 = vector.load %arg11[%c0_24, %c0_25] : memref<8x256xf32, #tpu.memory_space<vmem>>, vector<8x256xf32>
      tpu.vector_store %arg11[%c0_24, %c0_25], %38 {strides = array<i32>} : memref<8x256xf32, #tpu.memory_space<vmem>>, vector<8x256xf32>,
    } else {
    }
    %c0_i32_7 = arith.constant 0 : i32
    %14 = arith.cmpi eq, %arg1, %c0_i32_7 : i32
    %c0_i32_8 = arith.constant 0 : i32
    %15 = arith.cmpi eq, %arg2, %c0_i32_8 : i32
    %16 = arith.andi %14, %15 : i1
    %17 = arith.extui %16 : i1 to i32
    %c0_i32_9 = arith.constant 0 : i32
    %18 = arith.cmpi ne, %17, %c0_i32_9 : i32
    scf.if %18 {
      %c0 = arith.constant 0 : index
      %c0_10 = arith.constant 0 : index
      %19 = vector.load %arg11[%c0, %c0_10] : memref<8x256xf32, #tpu.memory_space<vmem>>, vector<8x256xf32>
      %20 = arith.truncf %19 : vector<8x256xf32> to vector<8x256xbf16>
      %c0_11 = arith.constant 0 : index
      %c0_12 = arith.constant 0 : index
      %21 = vector.load %arg7[%c0_11, %c0_12] : memref<8x256xbf16, #tpu.memory_space<vmem>>, vector<8x256xbf16>
      tpu.vector_store %arg7[%c0_11, %c0_12], %20 {strides = array<i32>} : memref<8x256xbf16, #tpu.memory_space<vmem>>, vector<8x256xbf16>,
    } else {
    }
    return
  }
  func.func @transform_0(%arg0: i32, %arg1: i32, %arg2: i32) -> (i32, i32) {
    %c0_i32 = arith.constant 0 : i32
    return %arg0, %arg1 : i32, i32
  }
  func.func @transform_1(%arg0: i32, %arg1: i32, %arg2: i32) -> (i32, i32) {
    %0 = arith.minsi %arg2, %arg0 : i32
    %c0_i32 = arith.constant 0 : i32
    return %0, %arg1 : i32, i32
  }
  func.func @transform_2(%arg0: i32, %arg1: i32, %arg2: i32) -> (i32, i32) {
    %0 = arith.minsi %arg2, %arg0 : i32
    %c0_i32 = arith.constant 0 : i32
    return %0, %arg1 : i32, i32
  }
  func.func @transform_3(%arg0: i32, %arg1: i32, %arg2: i32) -> (i32, i32) {
    %c0_i32 = arith.constant 0 : i32
    %c0_i32_0 = arith.constant 0 : i32
    return %arg1, %c0_i32 : i32, i32
  }
  func.func @transform_4(%arg0: i32, %arg1: i32, %arg2: i32) -> (i32, i32) {
    %c0_i32 = arith.constant 0 : i32
    %c0_i32_0 = arith.constant 0 : i32
    return %arg0, %c0_i32 : i32, i32
  }
}

module attributes {stable_mosaic.version = 11 : i64} {
  func.func @moe_pre_kernel(%arg0: i32, %arg1: memref<8x256xbf16, #tpu.memory_space<vmem>>, %arg2: memref<8x256xf32, #tpu.memory_space<vmem>>, %arg3: memref<1x256xf32, #tpu.memory_space<vmem>>, %arg4: memref<256x4xbf16, #tpu.memory_space<vmem>>, %arg5: memref<256x256xbf16, #tpu.memory_space<vmem>>, %arg6: memref<128x256xbf16, #tpu.memory_space<vmem>>, %arg7: memref<1x256xf32, #tpu.memory_space<vmem>>, %arg8: memref<8x256xbf16, #tpu.memory_space<vmem>>, %arg9: memref<8x256xf32, #tpu.memory_space<vmem>>, %arg10: memref<8x4xf32, #tpu.memory_space<vmem>>, %arg11: memref<8x256xf32, #tpu.memory_space<vmem>>) attributes {dimension_semantics = [#tpu.dimension_semantics<parallel>], iteration_bounds = array<i64: 1>, scalar_prefetch = 0 : i64, scratch_operands = 0 : i64, tpu.core_type = #tpu.core_type<tc>, window_params = [{transform_indices = @transform_0, window_bounds = array<i64: 8, 256>}, {transform_indices = @transform_1, window_bounds = array<i64: 8, 256>}, {pipeline_mode = #tpu.pipeline_mode<synchronous>, transform_indices = @transform_2, window_bounds = array<i64: 1, 256>}, {pipeline_mode = #tpu.pipeline_mode<synchronous>, transform_indices = @transform_3, window_bounds = array<i64: 256, 4>}, {pipeline_mode = #tpu.pipeline_mode<synchronous>, transform_indices = @transform_4, window_bounds = array<i64: 256, 256>}, {pipeline_mode = #tpu.pipeline_mode<synchronous>, transform_indices = @transform_5, window_bounds = array<i64: 128, 256>}, {pipeline_mode = #tpu.pipeline_mode<synchronous>, transform_indices = @transform_6, window_bounds = array<i64: 1, 256>}, {transform_indices = @transform_7, window_bounds = array<i64: 8, 256>}, {transform_indices = @transform_8, window_bounds = array<i64: 8, 256>}, {transform_indices = @transform_9, window_bounds = array<i64: 8, 4>}, {transform_indices = @transform_10, window_bounds = array<i64: 8, 256>}]} {
    %c0 = arith.constant 0 : index
    %c0_0 = arith.constant 0 : index
    %0 = vector.load %arg1[%c0, %c0_0] : memref<8x256xbf16, #tpu.memory_space<vmem>>, vector<8x256xbf16>
    %1 = arith.extf %0 : vector<8x256xbf16> to vector<8x256xf32>
    %c0_1 = arith.constant 0 : index
    %c0_2 = arith.constant 0 : index
    %2 = vector.load %arg2[%c0_1, %c0_2] : memref<8x256xf32, #tpu.memory_space<vmem>>, vector<8x256xf32>
    %3 = arith.addf %1, %2 : vector<8x256xf32>
    %c0_3 = arith.constant 0 : index
    %c0_4 = arith.constant 0 : index
    %4 = vector.load %arg9[%c0_3, %c0_4] : memref<8x256xf32, #tpu.memory_space<vmem>>, vector<8x256xf32>
    tpu.vector_store %arg9[%c0_3, %c0_4], %3 {strides = array<i32>} : memref<8x256xf32, #tpu.memory_space<vmem>>, vector<8x256xf32>,
    %c0_5 = arith.constant 0 : index
    %c0_6 = arith.constant 0 : index
    %5 = vector.load %arg3[%c0_5, %c0_6] : memref<1x256xf32, #tpu.memory_space<vmem>>, vector<1x256xf32>
    %6 = arith.mulf %3, %3 : vector<8x256xf32>
    %cst = arith.constant dense<0.000000e+00> : vector<8xf32>
    %7 = vector.multi_reduction <add>, %6, %cst [1] : vector<8x256xf32> to vector<8xf32>
    %8 = vector.shape_cast %7 : vector<8xf32> to vector<8x1xf32>
    %cst_7 = arith.constant 2.560000e+02 : f32
    %9 = vector.broadcast %cst_7 : f32 to vector<8x1xf32>
    %10 = arith.divf %8, %9 : vector<8x1xf32>
    %cst_8 = arith.constant 9.99999997E-7 : f32
    %11 = vector.broadcast %cst_8 : f32 to vector<8x1xf32>
    %12 = arith.addf %10, %11 : vector<8x1xf32>
    %13 = math.rsqrt %12 : vector<8x1xf32>
    %14 = vector.broadcast %13 : vector<8x1xf32> to vector<8x256xf32>
    %15 = arith.mulf %3, %14 : vector<8x256xf32>
    %16 = vector.broadcast %5 : vector<1x256xf32> to vector<8x256xf32>
    %17 = arith.mulf %15, %16 : vector<8x256xf32>
    %18 = arith.truncf %17 : vector<8x256xf32> to vector<8x256xbf16>
    %c0_9 = arith.constant 0 : index
    %c0_10 = arith.constant 0 : index
    %19 = vector.load %arg8[%c0_9, %c0_10] : memref<8x256xbf16, #tpu.memory_space<vmem>>, vector<8x256xbf16>
    tpu.vector_store %arg8[%c0_9, %c0_10], %18 {strides = array<i32>} : memref<8x256xbf16, #tpu.memory_space<vmem>>, vector<8x256xbf16>,
    %c0_11 = arith.constant 0 : index
    %c0_12 = arith.constant 0 : index
    %20 = vector.load %arg4[%c0_11, %c0_12] : memref<256x4xbf16, #tpu.memory_space<vmem>>, vector<256x4xbf16>
    %cst_13 = arith.constant dense<0.000000e+00> : vector<8x4xf32>
    %21 = tpu.matmul %18, %20, %cst_13 {dimension_numbers = #tpu.dot_dimension_numbers<[1], [0], [0], [1], [0, 0, 1, 1], [], []>} : vector<8x256xbf16>, vector<256x4xbf16>, vector<8x4xf32> -> vector<8x4xf32>
    %c0_14 = arith.constant 0 : index
    %c0_15 = arith.constant 0 : index
    %22 = vector.load %arg10[%c0_14, %c0_15] : memref<8x4xf32, #tpu.memory_space<vmem>>, vector<8x4xf32>
    tpu.vector_store %arg10[%c0_14, %c0_15], %21 {strides = array<i32>} : memref<8x4xf32, #tpu.memory_space<vmem>>, vector<8x4xf32>,
    %c0_16 = arith.constant 0 : index
    %c0_17 = arith.constant 0 : index
    %23 = vector.load %arg5[%c0_16, %c0_17] : memref<256x256xbf16, #tpu.memory_space<vmem>>, vector<256x256xbf16>
    %cst_18 = arith.constant dense<0.000000e+00> : vector<8x256xf32>
    %24 = tpu.matmul %18, %23, %cst_18 {dimension_numbers = #tpu.dot_dimension_numbers<[1], [0], [0], [1], [0, 0, 1, 1], [], []>} : vector<8x256xbf16>, vector<256x256xbf16>, vector<8x256xf32> -> vector<8x256xf32>
    %25 = vector.extract_strided_slice %24 {offsets = [0, 0], sizes = [8, 128], strides = [1, 1]} : vector<8x256xf32> to vector<8x128xf32>
    %26 = vector.extract_strided_slice %24 {offsets = [0, 128], sizes = [8, 128], strides = [1, 1]} : vector<8x256xf32> to vector<8x128xf32>
    %cst_19 = arith.constant 0.000000e+00 : f32
    %27 = vector.broadcast %cst_19 : f32 to vector<8x128xf32>
    %28 = arith.subf %27, %25 : vector<8x128xf32>
    %29 = math.exp %28 : vector<8x128xf32>
    %cst_20 = arith.constant 1.000000e+00 : f32
    %30 = vector.broadcast %cst_20 : f32 to vector<8x128xf32>
    %31 = arith.addf %30, %29 : vector<8x128xf32>
    %cst_21 = arith.constant 1.000000e+00 : f32
    %32 = vector.broadcast %cst_21 : f32 to vector<8x128xf32>
    %33 = arith.divf %32, %31 : vector<8x128xf32>
    %34 = arith.mulf %25, %33 : vector<8x128xf32>
    %35 = arith.mulf %34, %26 : vector<8x128xf32>
    %36 = arith.truncf %35 : vector<8x128xf32> to vector<8x128xbf16>
    %c0_22 = arith.constant 0 : index
    %c0_23 = arith.constant 0 : index
    %37 = vector.load %arg6[%c0_22, %c0_23] : memref<128x256xbf16, #tpu.memory_space<vmem>>, vector<128x256xbf16>
    %cst_24 = arith.constant dense<0.000000e+00> : vector<8x256xf32>
    %38 = tpu.matmul %36, %37, %cst_24 {dimension_numbers = #tpu.dot_dimension_numbers<[1], [0], [0], [1], [0, 0, 1, 1], [], []>} : vector<8x128xbf16>, vector<128x256xbf16>, vector<8x256xf32> -> vector<8x256xf32>
    %c0_25 = arith.constant 0 : index
    %c0_26 = arith.constant 0 : index
    %39 = vector.load %arg7[%c0_25, %c0_26] : memref<1x256xf32, #tpu.memory_space<vmem>>, vector<1x256xf32>
    %40 = vector.broadcast %39 : vector<1x256xf32> to vector<8x256xf32>
    %41 = arith.mulf %17, %40 : vector<8x256xf32>
    %cst_27 = arith.constant dense<0.000000e+00> : vector<8xf32>
    %42 = vector.multi_reduction <add>, %41, %cst_27 [1] : vector<8x256xf32> to vector<8xf32>
    %43 = vector.shape_cast %42 : vector<8xf32> to vector<8x1xf32>
    %cst_28 = arith.constant 0.000000e+00 : f32
    %44 = vector.broadcast %cst_28 : f32 to vector<8x1xf32>
    %45 = arith.subf %44, %43 : vector<8x1xf32>
    %46 = math.exp %45 : vector<8x1xf32>
    %cst_29 = arith.constant 1.000000e+00 : f32
    %47 = vector.broadcast %cst_29 : f32 to vector<8x1xf32>
    %48 = arith.addf %47, %46 : vector<8x1xf32>
    %cst_30 = arith.constant 1.000000e+00 : f32
    %49 = vector.broadcast %cst_30 : f32 to vector<8x1xf32>
    %50 = arith.divf %49, %48 : vector<8x1xf32>
    %51 = vector.broadcast %50 : vector<8x1xf32> to vector<8x256xf32>
    %52 = arith.mulf %51, %38 : vector<8x256xf32>
    %c0_31 = arith.constant 0 : index
    %c0_32 = arith.constant 0 : index
    %53 = vector.load %arg11[%c0_31, %c0_32] : memref<8x256xf32, #tpu.memory_space<vmem>>, vector<8x256xf32>
    tpu.vector_store %arg11[%c0_31, %c0_32], %52 {strides = array<i32>} : memref<8x256xf32, #tpu.memory_space<vmem>>, vector<8x256xf32>,
    return
  }
  func.func @transform_0(%arg0: i32) -> (i32, i32) {
    %c0_i32 = arith.constant 0 : i32
    %c0_i32_0 = arith.constant 0 : i32
    return %arg0, %c0_i32 : i32, i32
  }
  func.func @transform_1(%arg0: i32) -> (i32, i32) {
    %c0_i32 = arith.constant 0 : i32
    %c0_i32_0 = arith.constant 0 : i32
    return %arg0, %c0_i32 : i32, i32
  }
  func.func @transform_2(%arg0: i32) -> (i32, i32) {
    %c0_i32 = arith.constant 0 : i32
    %c0_i32_0 = arith.constant 0 : i32
    %c0_i32_1 = arith.constant 0 : i32
    return %c0_i32, %c0_i32_0 : i32, i32
  }
  func.func @transform_3(%arg0: i32) -> (i32, i32) {
    %c0_i32 = arith.constant 0 : i32
    %c0_i32_0 = arith.constant 0 : i32
    %c0_i32_1 = arith.constant 0 : i32
    return %c0_i32, %c0_i32_0 : i32, i32
  }
  func.func @transform_4(%arg0: i32) -> (i32, i32) {
    %c0_i32 = arith.constant 0 : i32
    %c0_i32_0 = arith.constant 0 : i32
    %c0_i32_1 = arith.constant 0 : i32
    return %c0_i32, %c0_i32_0 : i32, i32
  }
  func.func @transform_5(%arg0: i32) -> (i32, i32) {
    %c0_i32 = arith.constant 0 : i32
    %c0_i32_0 = arith.constant 0 : i32
    %c0_i32_1 = arith.constant 0 : i32
    return %c0_i32, %c0_i32_0 : i32, i32
  }
  func.func @transform_6(%arg0: i32) -> (i32, i32) {
    %c0_i32 = arith.constant 0 : i32
    %c0_i32_0 = arith.constant 0 : i32
    %c0_i32_1 = arith.constant 0 : i32
    return %c0_i32, %c0_i32_0 : i32, i32
  }
  func.func @transform_7(%arg0: i32) -> (i32, i32) {
    %c0_i32 = arith.constant 0 : i32
    %c0_i32_0 = arith.constant 0 : i32
    return %arg0, %c0_i32 : i32, i32
  }
  func.func @transform_8(%arg0: i32) -> (i32, i32) {
    %c0_i32 = arith.constant 0 : i32
    %c0_i32_0 = arith.constant 0 : i32
    return %arg0, %c0_i32 : i32, i32
  }
  func.func @transform_9(%arg0: i32) -> (i32, i32) {
    %c0_i32 = arith.constant 0 : i32
    %c0_i32_0 = arith.constant 0 : i32
    return %arg0, %c0_i32 : i32, i32
  }
  func.func @transform_10(%arg0: i32) -> (i32, i32) {
    %c0_i32 = arith.constant 0 : i32
    %c0_i32_0 = arith.constant 0 : i32
    return %arg0, %c0_i32 : i32, i32
  }
}

module attributes {stable_mosaic.version = 11 : i64} {
  func.func @moe_experts_kernel(%arg0: i32, %arg1: i32, %arg2: memref<4xi32, #tpu.memory_space<smem>>, %arg3: memref<1xi32, #tpu.memory_space<smem>>, %arg4: memref<8x256xbf16, #tpu.memory_space<vmem>>, %arg5: memref<1x256x256xbf16, #tpu.memory_space<vmem>>, %arg6: memref<1x128x256xbf16, #tpu.memory_space<vmem>>, %arg7: memref<1x8x1xf32, #tpu.memory_space<vmem>>, %arg8: memref<8x256xf32, #tpu.memory_space<vmem>>, %arg9: memref<8x256xbf16, #tpu.memory_space<vmem>>, %arg10: memref<8x256xf32, #tpu.memory_space<vmem>>) attributes {dimension_semantics = [#tpu.dimension_semantics<parallel>, #tpu.dimension_semantics<arbitrary>], iteration_bounds = array<i64: 1, 4>, scalar_prefetch = 2 : i64, scratch_operands = 1 : i64, tpu.core_type = #tpu.core_type<tc>, window_params = [{transform_indices = @transform_0, window_bounds = array<i64: 8, 256>}, {transform_indices = @transform_1, window_bounds = array<i64: 1, 256, 256>}, {transform_indices = @transform_2, window_bounds = array<i64: 1, 128, 256>}, {transform_indices = @transform_3, window_bounds = array<i64: 1, 8, 1>}, {transform_indices = @transform_4, window_bounds = array<i64: 8, 256>}, {transform_indices = @transform_5, window_bounds = array<i64: 8, 256>}]} {
    %c0_i32 = arith.constant 0 : i32
    %0 = arith.cmpi eq, %arg1, %c0_i32 : i32
    %1 = arith.extui %0 : i1 to i32
    %c0_i32_0 = arith.constant 0 : i32
    %2 = arith.cmpi ne, %1, %c0_i32_0 : i32
    scf.if %2 {
      %cst = arith.constant 0.000000e+00 : f32
      %10 = vector.broadcast %cst : f32 to vector<8x256xf32>
      %c0_3 = arith.constant 0 : index
      %c0_4 = arith.constant 0 : index
      %11 = vector.load %arg10[%c0_3, %c0_4] : memref<8x256xf32, #tpu.memory_space<vmem>>, vector<8x256xf32>
      tpu.vector_store %arg10[%c0_3, %c0_4], %10 {strides = array<i32>} : memref<8x256xf32, #tpu.memory_space<vmem>>, vector<8x256xf32>,
    } else {
    }
    %c0 = arith.constant 0 : index
    %3 = memref.load %arg3[%c0] : memref<1xi32, #tpu.memory_space<smem>>
    %4 = arith.cmpi slt, %arg1, %3 : i32
    %5 = arith.extui %4 : i1 to i32
    %c0_i32_1 = arith.constant 0 : i32
    %6 = arith.cmpi ne, %5, %c0_i32_1 : i32
    scf.if %6 {
      %c0_3 = arith.constant 0 : index
      %c0_4 = arith.constant 0 : index
      %10 = vector.load %arg4[%c0_3, %c0_4] : memref<8x256xbf16, #tpu.memory_space<vmem>>, vector<8x256xbf16>
      %c0_5 = arith.constant 0 : index
      %c0_6 = arith.constant 0 : index
      %c0_7 = arith.constant 0 : index
      %11 = vector.load %arg5[%c0_5, %c0_6, %c0_7] : memref<1x256x256xbf16, #tpu.memory_space<vmem>>, vector<1x256x256xbf16>
      %12 = vector.shape_cast %11 : vector<1x256x256xbf16> to vector<256x256xbf16>
      %cst = arith.constant dense<0.000000e+00> : vector<8x256xf32>
      %13 = tpu.matmul %10, %12, %cst {dimension_numbers = #tpu.dot_dimension_numbers<[1], [0], [0], [1], [0, 0, 1, 1], [], []>} : vector<8x256xbf16>, vector<256x256xbf16>, vector<8x256xf32> -> vector<8x256xf32>
      %14 = vector.extract_strided_slice %13 {offsets = [0, 0], sizes = [8, 128], strides = [1, 1]} : vector<8x256xf32> to vector<8x128xf32>
      %15 = vector.extract_strided_slice %13 {offsets = [0, 128], sizes = [8, 128], strides = [1, 1]} : vector<8x256xf32> to vector<8x128xf32>
      %cst_8 = arith.constant 0.000000e+00 : f32
      %16 = vector.broadcast %cst_8 : f32 to vector<8x128xf32>
      %17 = arith.subf %16, %14 : vector<8x128xf32>
      %18 = math.exp %17 : vector<8x128xf32>
      %cst_9 = arith.constant 1.000000e+00 : f32
      %19 = vector.broadcast %cst_9 : f32 to vector<8x128xf32>
      %20 = arith.addf %19, %18 : vector<8x128xf32>
      %cst_10 = arith.constant 1.000000e+00 : f32
      %21 = vector.broadcast %cst_10 : f32 to vector<8x128xf32>
      %22 = arith.divf %21, %20 : vector<8x128xf32>
      %23 = arith.mulf %14, %22 : vector<8x128xf32>
      %24 = arith.mulf %23, %15 : vector<8x128xf32>
      %c0_11 = arith.constant 0 : index
      %c0_12 = arith.constant 0 : index
      %c0_13 = arith.constant 0 : index
      %25 = vector.load %arg7[%c0_11, %c0_12, %c0_13] : memref<1x8x1xf32, #tpu.memory_space<vmem>>, vector<1x8x1xf32>
      %26 = vector.shape_cast %25 : vector<1x8x1xf32> to vector<8x1xf32>
      %27 = vector.broadcast %26 : vector<8x1xf32> to vector<8x128xf32>
      %28 = arith.mulf %24, %27 : vector<8x128xf32>
      %c0_14 = arith.constant 0 : index
      %c0_15 = arith.constant 0 : index
      %29 = vector.load %arg10[%c0_14, %c0_15] : memref<8x256xf32, #tpu.memory_space<vmem>>, vector<8x256xf32>
      %30 = arith.truncf %28 : vector<8x128xf32> to vector<8x128xbf16>
      %c0_16 = arith.constant 0 : index
      %c0_17 = arith.constant 0 : index
      %c0_18 = arith.constant 0 : index
      %31 = vector.load %arg6[%c0_16, %c0_17, %c0_18] : memref<1x128x256xbf16, #tpu.memory_space<vmem>>, vector<1x128x256xbf16>
      %32 = vector.shape_cast %31 : vector<1x128x256xbf16> to vector<128x256xbf16>
      %cst_19 = arith.constant dense<0.000000e+00> : vector<8x256xf32>
      %33 = tpu.matmul %30, %32, %cst_19 {dimension_numbers = #tpu.dot_dimension_numbers<[1], [0], [0], [1], [0, 0, 1, 1], [], []>} : vector<8x128xbf16>, vector<128x256xbf16>, vector<8x256xf32> -> vector<8x256xf32>
      %34 = arith.addf %29, %33 : vector<8x256xf32>
      %c0_20 = arith.constant 0 : index
      %c0_21 = arith.constant 0 : index
      %35 = vector.load %arg10[%c0_20, %c0_21] : memref<8x256xf32, #tpu.memory_space<vmem>>, vector<8x256xf32>
      tpu.vector_store %arg10[%c0_20, %c0_21], %34 {strides = array<i32>} : memref<8x256xf32, #tpu.memory_space<vmem>>, vector<8x256xf32>,
    } else {
    }
    %c3_i32 = arith.constant 3 : i32
    %7 = arith.cmpi eq, %arg1, %c3_i32 : i32
    %8 = arith.extui %7 : i1 to i32
    %c0_i32_2 = arith.constant 0 : i32
    %9 = arith.cmpi ne, %8, %c0_i32_2 : i32
    scf.if %9 {
      %c0_3 = arith.constant 0 : index
      %c0_4 = arith.constant 0 : index
      %10 = vector.load %arg10[%c0_3, %c0_4] : memref<8x256xf32, #tpu.memory_space<vmem>>, vector<8x256xf32>
      %c0_5 = arith.constant 0 : index
      %c0_6 = arith.constant 0 : index
      %11 = vector.load %arg8[%c0_5, %c0_6] : memref<8x256xf32, #tpu.memory_space<vmem>>, vector<8x256xf32>
      %12 = arith.addf %10, %11 : vector<8x256xf32>
      %13 = arith.truncf %12 : vector<8x256xf32> to vector<8x256xbf16>
      %c0_7 = arith.constant 0 : index
      %c0_8 = arith.constant 0 : index
      %14 = vector.load %arg9[%c0_7, %c0_8] : memref<8x256xbf16, #tpu.memory_space<vmem>>, vector<8x256xbf16>
      tpu.vector_store %arg9[%c0_7, %c0_8], %13 {strides = array<i32>} : memref<8x256xbf16, #tpu.memory_space<vmem>>, vector<8x256xbf16>,
    } else {
    }
    return
  }
  func.func @transform_0(%arg0: i32, %arg1: i32, %arg2: memref<4xi32, #tpu.memory_space<smem>>, %arg3: memref<1xi32, #tpu.memory_space<smem>>) -> (i32, i32) {
    %c0_i32 = arith.constant 0 : i32
    %c0_i32_0 = arith.constant 0 : i32
    return %arg0, %c0_i32 : i32, i32
  }
  func.func @transform_1(%arg0: i32, %arg1: i32, %arg2: memref<4xi32, #tpu.memory_space<smem>>, %arg3: memref<1xi32, #tpu.memory_space<smem>>) -> (i32, i32, i32) {
    %0 = arith.index_cast %arg1 : i32 to index
    %1 = memref.load %arg2[%0] : memref<4xi32, #tpu.memory_space<smem>>
    %c0_i32 = arith.constant 0 : i32
    %c0_i32_0 = arith.constant 0 : i32
    %c0_i32_1 = arith.constant 0 : i32
    return %1, %c0_i32, %c0_i32_0 : i32, i32, i32
  }
  func.func @transform_2(%arg0: i32, %arg1: i32, %arg2: memref<4xi32, #tpu.memory_space<smem>>, %arg3: memref<1xi32, #tpu.memory_space<smem>>) -> (i32, i32, i32) {
    %0 = arith.index_cast %arg1 : i32 to index
    %1 = memref.load %arg2[%0] : memref<4xi32, #tpu.memory_space<smem>>
    %c0_i32 = arith.constant 0 : i32
    %c0_i32_0 = arith.constant 0 : i32
    %c0_i32_1 = arith.constant 0 : i32
    return %1, %c0_i32, %c0_i32_0 : i32, i32, i32
  }
  func.func @transform_3(%arg0: i32, %arg1: i32, %arg2: memref<4xi32, #tpu.memory_space<smem>>, %arg3: memref<1xi32, #tpu.memory_space<smem>>) -> (i32, i32, i32) {
    %0 = arith.index_cast %arg1 : i32 to index
    %1 = memref.load %arg2[%0] : memref<4xi32, #tpu.memory_space<smem>>
    %c0_i32 = arith.constant 0 : i32
    %c0_i32_0 = arith.constant 0 : i32
    return %1, %arg0, %c0_i32 : i32, i32, i32
  }
  func.func @transform_4(%arg0: i32, %arg1: i32, %arg2: memref<4xi32, #tpu.memory_space<smem>>, %arg3: memref<1xi32, #tpu.memory_space<smem>>) -> (i32, i32) {
    %c0_i32 = arith.constant 0 : i32
    %c0_i32_0 = arith.constant 0 : i32
    return %arg0, %c0_i32 : i32, i32
  }
  func.func @transform_5(%arg0: i32, %arg1: i32, %arg2: memref<4xi32, #tpu.memory_space<smem>>, %arg3: memref<1xi32, #tpu.memory_space<smem>>) -> (i32, i32) {
    %c0_i32 = arith.constant 0 : i32
    %c0_i32_0 = arith.constant 0 : i32
    return %arg0, %c0_i32 : i32, i32
  }
}

module attributes {stable_mosaic.version = 11 : i64} {
  func.func @final_norm_kernel(%arg0: i32, %arg1: memref<8x256xbf16, #tpu.memory_space<vmem>>, %arg2: memref<8x256xf32, #tpu.memory_space<vmem>>, %arg3: memref<1x256xf32, #tpu.memory_space<vmem>>, %arg4: memref<8x256xf32, #tpu.memory_space<vmem>>) attributes {dimension_semantics = [#tpu.dimension_semantics<parallel>], iteration_bounds = array<i64: 1>, scalar_prefetch = 0 : i64, scratch_operands = 0 : i64, tpu.core_type = #tpu.core_type<tc>, window_params = [{transform_indices = @transform_0, window_bounds = array<i64: 8, 256>}, {transform_indices = @transform_1, window_bounds = array<i64: 8, 256>}, {pipeline_mode = #tpu.pipeline_mode<synchronous>, transform_indices = @transform_2, window_bounds = array<i64: 1, 256>}, {transform_indices = @transform_3, window_bounds = array<i64: 8, 256>}]} {
    %c0 = arith.constant 0 : index
    %c0_0 = arith.constant 0 : index
    %0 = vector.load %arg1[%c0, %c0_0] : memref<8x256xbf16, #tpu.memory_space<vmem>>, vector<8x256xbf16>
    %1 = arith.extf %0 : vector<8x256xbf16> to vector<8x256xf32>
    %c0_1 = arith.constant 0 : index
    %c0_2 = arith.constant 0 : index
    %2 = vector.load %arg2[%c0_1, %c0_2] : memref<8x256xf32, #tpu.memory_space<vmem>>, vector<8x256xf32>
    %3 = arith.addf %1, %2 : vector<8x256xf32>
    %c0_3 = arith.constant 0 : index
    %c0_4 = arith.constant 0 : index
    %4 = vector.load %arg3[%c0_3, %c0_4] : memref<1x256xf32, #tpu.memory_space<vmem>>, vector<1x256xf32>
    %5 = arith.mulf %3, %3 : vector<8x256xf32>
    %cst = arith.constant dense<0.000000e+00> : vector<8xf32>
    %6 = vector.multi_reduction <add>, %5, %cst [1] : vector<8x256xf32> to vector<8xf32>
    %7 = vector.shape_cast %6 : vector<8xf32> to vector<8x1xf32>
    %cst_5 = arith.constant 2.560000e+02 : f32
    %8 = vector.broadcast %cst_5 : f32 to vector<8x1xf32>
    %9 = arith.divf %7, %8 : vector<8x1xf32>
    %cst_6 = arith.constant 9.99999997E-7 : f32
    %10 = vector.broadcast %cst_6 : f32 to vector<8x1xf32>
    %11 = arith.addf %9, %10 : vector<8x1xf32>
    %12 = math.rsqrt %11 : vector<8x1xf32>
    %13 = vector.broadcast %12 : vector<8x1xf32> to vector<8x256xf32>
    %14 = arith.mulf %3, %13 : vector<8x256xf32>
    %15 = vector.broadcast %4 : vector<1x256xf32> to vector<8x256xf32>
    %16 = arith.mulf %14, %15 : vector<8x256xf32>
    %c0_7 = arith.constant 0 : index
    %c0_8 = arith.constant 0 : index
    %17 = vector.load %arg4[%c0_7, %c0_8] : memref<8x256xf32, #tpu.memory_space<vmem>>, vector<8x256xf32>
    tpu.vector_store %arg4[%c0_7, %c0_8], %16 {strides = array<i32>} : memref<8x256xf32, #tpu.memory_space<vmem>>, vector<8x256xf32>,
    return
  }
  func.func @transform_0(%arg0: i32) -> (i32, i32) {
    %c0_i32 = arith.constant 0 : i32
    %c0_i32_0 = arith.constant 0 : i32
    return %arg0, %c0_i32 : i32, i32
  }
  func.func @transform_1(%arg0: i32) -> (i32, i32) {
    %c0_i32 = arith.constant 0 : i32
    %c0_i32_0 = arith.constant 0 : i32
    return %arg0, %c0_i32 : i32, i32
  }
  func.func @transform_2(%arg0: i32) -> (i32, i32) {
    %c0_i32 = arith.constant 0 : i32
    %c0_i32_0 = arith.constant 0 : i32
    %c0_i32_1 = arith.constant 0 : i32
    return %c0_i32, %c0_i32_0 : i32, i32
  }
  func.func @transform_3(%arg0: i32) -> (i32, i32) {
    %c0_i32 = arith.constant 0 : i32
    %c0_i32_0 = arith.constant 0 : i32
    return %arg0, %c0_i32 : i32, i32
  }
}

</mosaic_0001>

<llo_original>
// kernel: qwen2_moe_forward.8
$region0: #{qwen2_moe_forward.8}
  #allocation0 [shape = 'u32[]', space=smem, size = 0x4, offset = 0x4, fixed_abs, tag = 'smem constant byte address 0x4 - core index']
  #allocation1 [shape = 'u32[144,128]{1,0:T(1,128)}', space=vmem, size = 0x12000, scoped, tag = 'internal scratch']
  %s0 = inlined_call_operand.vmem [shape: bf16[8,256], index: 0, kind: input, shape index: {}]
  %s1 = inlined_call_operand.vmem [shape: f32[8,256], index: 1, kind: input, shape index: {}]
  %s2 = inlined_call_operand.vmem [shape: f32[1,256], index: 2, kind: input, shape index: {}]
  %s3 = inlined_call_operand.hbm [shape: bf16[256,512], index: 3, kind: input, shape index: {}]
  %s4 = inlined_call_operand.vmem [shape: f32[1,512], index: 4, kind: input, shape index: {}]
  %s5 = inlined_call_operand.vmem [shape: f32[8,128], index: 5, kind: input, shape index: {}]
  %s6 = inlined_call_operand.vmem [shape: f32[8,128], index: 6, kind: input, shape index: {}]
  %s7 = inlined_call_operand.vmem [shape: bf16[8,256], index: 7, kind: output, shape index: {0}]
  %s8 = inlined_call_operand.vmem [shape: bf16[8,128], index: 8, kind: output, shape index: {1}]
  %s9 = inlined_call_operand.vmem [shape: bf16[8,128], index: 9, kind: output, shape index: {2}]
  %s10 = inlined_call_operand.vmem [shape: f32[8,256], index: 10, kind: output, shape index: {3}]
  %11 = xla_tuple %s7, %s8, %s9, %s10
  %s12 = sld [smem:[#allocation0]]
  $region66: #{qwen2_moe_forward.8} parent=0
    _
  %s14 = ssub.s32 1, %s12
  %s15 = scalar_select 0, %s14, %s12
  $region1: #{qwen2_moe_forward.8} parent=0
    #allocation2 [shape = 'u8[262144]{0}', space=vmem, size = 0x40000, scoped, tag = 'input window, operand 3, single buffered']
    #allocation3 [shape = 's32[1]{0}', space=sflag, size = 0x4, scoped, tag = 'scoped memory for qwen2_moe_forward.8']
    %16 = vsyncpa [#allocation3], 0
    // Predicated region
    $region2: #{qwen2_moe_forward.8} parent=1 // pred_check
      _
    $region3: #{qwen2_moe_forward.8} parent=1 // pred_check_branch
      %18 = sbr.rel (0) target = $region5
    $region4: #{qwen2_moe_forward.8} parent=1 // pred_region
      _
    $region5: #{qwen2_moe_forward.8} parent=1 // pred_fallthru
      _
    // Predicated region
    $region6: #{qwen2_moe_forward.8} parent=1 // pred_check
      _
    $region7: #{qwen2_moe_forward.8} parent=1 // pred_check_branch
      %20 = sbr.rel (0) target = $region9
    $region8: #{qwen2_moe_forward.8} parent=1 // pred_region
      _
    $region9: #{qwen2_moe_forward.8} parent=1 // pred_fallthru
      _
    // Predicated region
    $region10: #{qwen2_moe_forward.8} parent=1 // pred_check
      _
    $region11: #{qwen2_moe_forward.8} parent=1 // pred_check_branch
      %22 = sbr.rel (0) target = $region13
    $region12: #{qwen2_moe_forward.8} parent=1 // pred_region
      _
    $region13: #{qwen2_moe_forward.8} parent=1 // pred_fallthru
      _
    // Predicated region
    $region14: #{qwen2_moe_forward.8} parent=1 // pred_check
      _
    $region15: #{qwen2_moe_forward.8} parent=1 // pred_check_branch
      %24 = sbr.rel (0) target = $region17
    $region16: #{qwen2_moe_forward.8} parent=1 // pred_region
      %s26 = ssub.s32 8192, 8192
      %27 = vsyncadd [#allocation3], %s26
      %s28 = sshll.u32 [#allocation2], 4
      %s29 = int_to_ptr.vmem [resolvable:$true] %s28
      %34 = dma.hbm_to_vmem [thread:$0]  %s3, 8192, %s29, [#allocation3], 256, 256, 16
    $region17: #{qwen2_moe_forward.8} parent=1 // pred_fallthru
      _
    // Predicated region
    $region18: #{qwen2_moe_forward.8} parent=1 // pred_check
      _
    $region19: #{qwen2_moe_forward.8} parent=1 // pred_check_branch
      %36 = sbr.rel (0) target = $region21
    $region20: #{qwen2_moe_forward.8} parent=1 // pred_region
      _
    $region21: #{qwen2_moe_forward.8} parent=1 // pred_fallthru
      _
    // Predicated region
    $region22: #{qwen2_moe_forward.8} parent=1 // pred_check
      _
    $region23: #{qwen2_moe_forward.8} parent=1 // pred_check_branch
      %38 = sbr.rel (0) target = $region25
    $region24: #{qwen2_moe_forward.8} parent=1 // pred_region
      _
    $region25: #{qwen2_moe_forward.8} parent=1 // pred_fallthru
      _
    // Predicated region
    $region26: #{qwen2_moe_forward.8} parent=1 // pred_check
      _
    $region27: #{qwen2_moe_forward.8} parent=1 // pred_check_branch
      %40 = sbr.rel (0) target = $region29
    $region28: #{qwen2_moe_forward.8} parent=1 // pred_region
      _
    $region29: #{qwen2_moe_forward.8} parent=1 // pred_fallthru
      _
    // Predicated region
    $region30: #{qwen2_moe_forward.8} parent=1 // pred_check
      _
    $region31: #{qwen2_moe_forward.8} parent=1 // pred_check_branch
      %42 = sbr.rel (0) target = $region33
    $region32: #{qwen2_moe_forward.8} parent=1 // pred_region
      %43 = dma.done [#allocation3], 8192
    $region33: #{qwen2_moe_forward.8} parent=1 // pred_fallthru
      _
    %v44 = vld [vmem:[%s0] sm:$0xff]
    %v45 = vunpack.c.l.bf16 %v44
    %v46 = vunpack.c.h.bf16 %v44
    %v47 = vld [vmem:[%s1] sm:$0xff]
    %v48 = vld [vmem:[%s1 + $0x8] sm:$0xff]
    %v49 = vadd.f32 %v45, %v47
    %v50 = vadd.f32 %v46, %v48
    %51 = vst [vmem:[%s10] sm:$0xff] %v49
    %52 = vst [vmem:[%s10 + $0x8] sm:$0xff] %v50
    %v53 = vld [vmem:[%s2] sm:$0x3]
    %v54 = vmul.f32 %v49, %v49
    %v55 = vmul.f32 %v50, %v50
    %v56 = vadd.f32 %v54, %v55
    %57 = vadd.xlane.f32.xlu0 %v56
    %v58 = vpop.xlane.xlu0 %57
    %v59 = vrcp.pop 256.0
    %v60 = vmul.f32 %v58, %v59
    %v61 = vadd.f32 %v60, 1e-06
    %v62 = vrsqrt.pop %v61
    %v63 = vmul.f32 %v49, %v62
    %v64 = vmul.f32 %v50, %v62
    %v66 = vlaneseq
    %v67 = vshrl.u32 %v66, 7
    %v68 = vsub.s32 0, %v67
    %v69 = vrot.slane %v53, %v68
    %v70 = vlaneseq
    %v71 = vshrl.u32 %v70, 7
    %v72 = vsub.s32 1, %v71
    %v73 = vrot.slane %v53, %v72
    %v76 = vmul.f32 %v63, %v69
    %v77 = vmul.f32 %v64, %v73
    %v78 = vpack.c.bf16 %v76, %v76
    %v79 = vpack.c.bf16 %v77, %v77
    %v80 = vld [vmem:[#allocation2] sm:$0xff]
    %v81 = vld [vmem:[#allocation2 + $0x8] sm:$0xff]
    %v82 = vld [vmem:[#allocation2 + $0x10] sm:$0xff]
    %v83 = vld [vmem:[#allocation2 + $0x18] sm:$0xff]
    %v84 = vld [vmem:[#allocation2 + $0x20] sm:$0xff]
    %v85 = vld [vmem:[#allocation2 + $0x28] sm:$0xff]
    %v86 = vld [vmem:[#allocation2 + $0x30] sm:$0xff]
    %v87 = vld [vmem:[#allocation2 + $0x38] sm:$0xff]
    %v88 = vld [vmem:[#allocation2 + $0x40] sm:$0xff]
    %v89 = vld [vmem:[#allocation2 + $0x48] sm:$0xff]
    %v90 = vld [vmem:[#allocation2 + $0x50] sm:$0xff]
    %v91 = vld [vmem:[#allocation2 + $0x58] sm:$0xff]
    %v92 = vld [vmem:[#allocation2 + $0x60] sm:$0xff]
    %v93 = vld [vmem:[#allocation2 + $0x68] sm:$0xff]
    %v94 = vld [vmem:[#allocation2 + $0x70] sm:$0xff]
    %v95 = vld [vmem:[#allocation2 + $0x78] sm:$0xff]
    %v96 = vld [vmem:[#allocation2 + $0x80] sm:$0xff]
    %v97 = vld [vmem:[#allocation2 + $0x88] sm:$0xff]
    %v98 = vld [vmem:[#allocation2 + $0x90] sm:$0xff]
    %v99 = vld [vmem:[#allocation2 + $0x98] sm:$0xff]
    %v100 = vld [vmem:[#allocation2 + $0xa0] sm:$0xff]
    %v101 = vld [vmem:[#allocation2 + $0xa8] sm:$0xff]
    %v102 = vld [vmem:[#allocation2 + $0xb0] sm:$0xff]
    %v103 = vld [vmem:[#allocation2 + $0xb8] sm:$0xff]
    %v104 = vld [vmem:[#allocation2 + $0xc0] sm:$0xff]
    %v105 = vld [vmem:[#allocation2 + $0xc8] sm:$0xff]
    %v106 = vld [vmem:[#allocation2 + $0xd0] sm:$0xff]
    %v107 = vld [vmem:[#allocation2 + $0xd8] sm:$0xff]
    %v108 = vld [vmem:[#allocation2 + $0xe0] sm:$0xff]
    %v109 = vld [vmem:[#allocation2 + $0xe8] sm:$0xff]
    %v110 = vld [vmem:[#allocation2 + $0xf0] sm:$0xff]
    %v111 = vld [vmem:[#allocation2 + $0xf8] sm:$0xff]
    %v112 = vld [vmem:[#allocation2 + $0x100] sm:$0xff]
    %v113 = vld [vmem:[#allocation2 + $0x108] sm:$0xff]
    %v114 = vld [vmem:[#allocation2 + $0x110] sm:$0xff]
    %v115 = vld [vmem:[#allocation2 + $0x118] sm:$0xff]
    %v116 = vld [vmem:[#allocation2 + $0x120] sm:$0xff]
    %v117 = vld [vmem:[#allocation2 + $0x128] sm:$0xff]
    %v118 = vld [vmem:[#allocation2 + $0x130] sm:$0xff]
    %v119 = vld [vmem:[#allocation2 + $0x138] sm:$0xff]
    %v120 = vld [vmem:[#allocation2 + $0x140] sm:$0xff]
    %v121 = vld [vmem:[#allocation2 + $0x148] sm:$0xff]
    %v122 = vld [vmem:[#allocation2 + $0x150] sm:$0xff]
    %v123 = vld [vmem:[#allocation2 + $0x158] sm:$0xff]
    %v124 = vld [vmem:[#allocation2 + $0x160] sm:$0xff]
    %v125 = vld [vmem:[#allocation2 + $0x168] sm:$0xff]
    %v126 = vld [vmem:[#allocation2 + $0x170] sm:$0xff]
    %v127 = vld [vmem:[#allocation2 + $0x178] sm:$0xff]
    %v128 = vld [vmem:[#allocation2 + $0x180] sm:$0xff]
    %v129 = vld [vmem:[#allocation2 + $0x188] sm:$0xff]
    %v130 = vld [vmem:[#allocation2 + $0x190] sm:$0xff]
    %v131 = vld [vmem:[#allocation2 + $0x198] sm:$0xff]
    %v132 = vld [vmem:[#allocation2 + $0x1a0] sm:$0xff]
    %v133 = vld [vmem:[#allocation2 + $0x1a8] sm:$0xff]
    %v134 = vld [vmem:[#allocation2 + $0x1b0] sm:$0xff]
    %v135 = vld [vmem:[#allocation2 + $0x1b8] sm:$0xff]
    %v136 = vld [vmem:[#allocation2 + $0x1c0] sm:$0xff]
    %v137 = vld [vmem:[#allocation2 + $0x1c8] sm:$0xff]
    %v138 = vld [vmem:[#allocation2 + $0x1d0] sm:$0xff]
    %v139 = vld [vmem:[#allocation2 + $0x1d8] sm:$0xff]
    %v140 = vld [vmem:[#allocation2 + $0x1e0] sm:$0xff]
    %v141 = vld [vmem:[#allocation2 + $0x1e8] sm:$0xff]
    %v142 = vld [vmem:[#allocation2 + $0x1f0] sm:$0xff]
    %v143 = vld [vmem:[#allocation2 + $0x1f8] sm:$0xff]
    %v144 = vld [vmem:[%s4] sm:$0xf]
    %v146 = vlaneseq
    %v147 = vshrl.u32 %v146, 7
    %v148 = vsub.s32 0, %v147
    %v149 = vrot.slane %v144, %v148
    %v150 = vlaneseq
    %v151 = vshrl.u32 %v150, 7
    %v152 = vsub.s32 1, %v151
    %v153 = vrot.slane %v144, %v152
    %v154 = vlaneseq
    %v155 = vshrl.u32 %v154, 7
    %v156 = vsub.s32 2, %v155
    %v157 = vrot.slane %v144, %v156
    %v158 = vlaneseq
    %v159 = vshrl.u32 %v158, 7
    %v160 = vsub.s32 3, %v159
    %v161 = vrot.slane %v144, %v160
    %v230 = vunpack.c.l.b16 %v80
    %v231 = vunpack.c.h.b16 %v80
    %v232 = vunpack.c.l.b16 %v81
    %v233 = vunpack.c.h.b16 %v81
    %v234 = vunpack.c.l.b16 %v82
    %v235 = vunpack.c.h.b16 %v82
    %v236 = vunpack.c.l.b16 %v83
    %v237 = vunpack.c.h.b16 %v83
    %v238 = vunpack.c.l.b16 %v84
    %v239 = vunpack.c.h.b16 %v84
    %v240 = vunpack.c.l.b16 %v85
    %v241 = vunpack.c.h.b16 %v85
    %v242 = vunpack.c.l.b16 %v86
    %v243 = vunpack.c.h.b16 %v86
    %v244 = vunpack.c.l.b16 %v87
    %v245 = vunpack.c.h.b16 %v87
    %v246 = vunpack.c.l.b16 %v88
    %v247 = vunpack.c.h.b16 %v88
    %v248 = vunpack.c.l.b16 %v89
    %v249 = vunpack.c.h.b16 %v89
    %v250 = vunpack.c.l.b16 %v90
    %v251 = vunpack.c.h.b16 %v90
    %v252 = vunpack.c.l.b16 %v91
    %v253 = vunpack.c.h.b16 %v91
    %v254 = vunpack.c.l.b16 %v92
    %v255 = vunpack.c.h.b16 %v92
    %v256 = vunpack.c.l.b16 %v93
    %v257 = vunpack.c.h.b16 %v93
    %v258 = vunpack.c.l.b16 %v94
    %v259 = vunpack.c.h.b16 %v94
    %v260 = vunpack.c.l.b16 %v95
    %v261 = vunpack.c.h.b16 %v95
    %v262 = vunpack.c.l.b16 %v96
    %v263 = vunpack.c.h.b16 %v96
    %v264 = vunpack.c.l.b16 %v97
    %v265 = vunpack.c.h.b16 %v97
    %v266 = vunpack.c.l.b16 %v98
    %v267 = vunpack.c.h.b16 %v98
    %v268 = vunpack.c.l.b16 %v99
    %v269 = vunpack.c.h.b16 %v99
    %v270 = vunpack.c.l.b16 %v100
    %v271 = vunpack.c.h.b16 %v100
    %v272 = vunpack.c.l.b16 %v101
    %v273 = vunpack.c.h.b16 %v101
    %v274 = vunpack.c.l.b16 %v102
    %v275 = vunpack.c.h.b16 %v102
    %v276 = vunpack.c.l.b16 %v103
    %v277 = vunpack.c.h.b16 %v103
    %v278 = vunpack.c.l.b16 %v104
    %v279 = vunpack.c.h.b16 %v104
    %v280 = vunpack.c.l.b16 %v105
    %v281 = vunpack.c.h.b16 %v105
    %v282 = vunpack.c.l.b16 %v106
    %v283 = vunpack.c.h.b16 %v106
    %v284 = vunpack.c.l.b16 %v107
    %v285 = vunpack.c.h.b16 %v107
    %v286 = vunpack.c.l.b16 %v108
    %v287 = vunpack.c.h.b16 %v108
    %v288 = vunpack.c.l.b16 %v109
    %v289 = vunpack.c.h.b16 %v109
    %v290 = vunpack.c.l.b16 %v110
    %v291 = vunpack.c.h.b16 %v110
    %v292 = vunpack.c.l.b16 %v111
    %v293 = vunpack.c.h.b16 %v111
    %v294 = vunpack.c.l.b16 %v112
    %v295 = vunpack.c.h.b16 %v112
    %v296 = vunpack.c.l.b16 %v113
    %v297 = vunpack.c.h.b16 %v113
    %v298 = vunpack.c.l.b16 %v114
    %v299 = vunpack.c.h.b16 %v114
    %v300 = vunpack.c.l.b16 %v115
    %v301 = vunpack.c.h.b16 %v115
    %v302 = vunpack.c.l.b16 %v116
    %v303 = vunpack.c.h.b16 %v116
    %v304 = vunpack.c.l.b16 %v117
    %v305 = vunpack.c.h.b16 %v117
    %v306 = vunpack.c.l.b16 %v118
    %v307 = vunpack.c.h.b16 %v118
    %v308 = vunpack.c.l.b16 %v119
    %v309 = vunpack.c.h.b16 %v119
    %v310 = vunpack.c.l.b16 %v120
    %v311 = vunpack.c.h.b16 %v120
    %v312 = vunpack.c.l.b16 %v121
    %v313 = vunpack.c.h.b16 %v121
    %v314 = vunpack.c.l.b16 %v122
    %v315 = vunpack.c.h.b16 %v122
    %v316 = vunpack.c.l.b16 %v123
    %v317 = vunpack.c.h.b16 %v123
    %v318 = vunpack.c.l.b16 %v124
    %v319 = vunpack.c.h.b16 %v124
    %v320 = vunpack.c.l.b16 %v125
    %v321 = vunpack.c.h.b16 %v125
    %v322 = vunpack.c.l.b16 %v126
    %v323 = vunpack.c.h.b16 %v126
    %v324 = vunpack.c.l.b16 %v127
    %v325 = vunpack.c.h.b16 %v127
    %v326 = vunpack.c.l.b16 %v128
    %v327 = vunpack.c.h.b16 %v128
    %v328 = vunpack.c.l.b16 %v129
    %v329 = vunpack.c.h.b16 %v129
    %v330 = vunpack.c.l.b16 %v130
    %v331 = vunpack.c.h.b16 %v130
    %v332 = vunpack.c.l.b16 %v131
    %v333 = vunpack.c.h.b16 %v131
    %v334 = vunpack.c.l.b16 %v132
    %v335 = vunpack.c.h.b16 %v132
    %v336 = vunpack.c.l.b16 %v133
    %v337 = vunpack.c.h.b16 %v133
    %v338 = vunpack.c.l.b16 %v134
    %v339 = vunpack.c.h.b16 %v134
    %v340 = vunpack.c.l.b16 %v135
    %v341 = vunpack.c.h.b16 %v135
    %v342 = vunpack.c.l.b16 %v136
    %v343 = vunpack.c.h.b16 %v136
    %v344 = vunpack.c.l.b16 %v137
    %v345 = vunpack.c.h.b16 %v137
    %v346 = vunpack.c.l.b16 %v138
    %v347 = vunpack.c.h.b16 %v138
    %v348 = vunpack.c.l.b16 %v139
    %v349 = vunpack.c.h.b16 %v139
    %v350 = vunpack.c.l.b16 %v140
    %v351 = vunpack.c.h.b16 %v140
    %v352 = vunpack.c.l.b16 %v141
    %v353 = vunpack.c.h.b16 %v141
    %v354 = vunpack.c.l.b16 %v142
    %v355 = vunpack.c.h.b16 %v142
    %v356 = vunpack.c.l.b16 %v143
    %v357 = vunpack.c.h.b16 %v143
    %v358 = vpack.c.b16 %v234, %v230
    %v359 = vpack.c.b16 %v235, %v231
    %v360 = vpack.c.b16 %v236, %v232
    %v361 = vpack.c.b16 %v237, %v233
    %v362 = vpack.c.b16 %v242, %v238
    %v363 = vpack.c.b16 %v243, %v239
    %v364 = vpack.c.b16 %v244, %v240
    %v365 = vpack.c.b16 %v245, %v241
    %v366 = vpack.c.b16 %v250, %v246
    %v367 = vpack.c.b16 %v251, %v247
    %v368 = vpack.c.b16 %v252, %v248
    %v369 = vpack.c.b16 %v253, %v249
    %v370 = vpack.c.b16 %v258, %v254
    %v371 = vpack.c.b16 %v259, %v255
    %v372 = vpack.c.b16 %v260, %v256
    %v373 = vpack.c.b16 %v261, %v257
    %v374 = vpack.c.b16 %v266, %v262
    %v375 = vpack.c.b16 %v267, %v263
    %v376 = vpack.c.b16 %v268, %v264
    %v377 = vpack.c.b16 %v269, %v265
    %v378 = vpack.c.b16 %v274, %v270
    %v379 = vpack.c.b16 %v275, %v271
    %v380 = vpack.c.b16 %v276, %v272
    %v381 = vpack.c.b16 %v277, %v273
    %v382 = vpack.c.b16 %v282, %v278
    %v383 = vpack.c.b16 %v283, %v279
    %v384 = vpack.c.b16 %v284, %v280
    %v385 = vpack.c.b16 %v285, %v281
    %v386 = vpack.c.b16 %v290, %v286
    %v387 = vpack.c.b16 %v291, %v287
    %v388 = vpack.c.b16 %v292, %v288
    %v389 = vpack.c.b16 %v293, %v289
    %v390 = vpack.c.b16 %v298, %v294
    %v391 = vpack.c.b16 %v299, %v295
    %v392 = vpack.c.b16 %v300, %v296
    %v393 = vpack.c.b16 %v301, %v297
    %v394 = vpack.c.b16 %v306, %v302
    %v395 = vpack.c.b16 %v307, %v303
    %v396 = vpack.c.b16 %v308, %v304
    %v397 = vpack.c.b16 %v309, %v305
    %v398 = vpack.c.b16 %v314, %v310
    %v399 = vpack.c.b16 %v315, %v311
    %v400 = vpack.c.b16 %v316, %v312
    %v401 = vpack.c.b16 %v317, %v313
    %v402 = vpack.c.b16 %v322, %v318
    %v403 = vpack.c.b16 %v323, %v319
    %v404 = vpack.c.b16 %v324, %v320
    %v405 = vpack.c.b16 %v325, %v321
    %v406 = vpack.c.b16 %v330, %v326
    %v407 = vpack.c.b16 %v331, %v327
    %v408 = vpack.c.b16 %v332, %v328
    %v409 = vpack.c.b16 %v333, %v329
    %v410 = vpack.c.b16 %v338, %v334
    %v411 = vpack.c.b16 %v339, %v335
    %v412 = vpack.c.b16 %v340, %v336
    %v413 = vpack.c.b16 %v341, %v337
    %v414 = vpack.c.b16 %v346, %v342
    %v415 = vpack.c.b16 %v347, %v343
    %v416 = vpack.c.b16 %v348, %v344
    %v417 = vpack.c.b16 %v349, %v345
    %v418 = vpack.c.b16 %v354, %v350
    %v419 = vpack.c.b16 %v355, %v351
    %v420 = vpack.c.b16 %v356, %v352
    %v421 = vpack.c.b16 %v357, %v353
    %486 = vmatprep.subr.bf16.mxu0 %v387
    %487 = vmatpush1.bf16.msra.mxu0 %v386
    %488 = vmatprep.subr.bf16.mxu0 %v383
    %489 = vmatpush1.bf16.msra.mxu0 %v382
    %490 = vmatprep.subr.bf16.mxu0 %v379
    %491 = vmatpush1.bf16.msra.mxu0 %v378
    %492 = vmatprep.subr.bf16.mxu0 %v375
    %493 = vmatpush1.bf16.msra.mxu0 %v374
    %494 = vmatprep.subr.bf16.mxu0 %v371
    %495 = vmatpush1.bf16.msra.mxu0 %v370
    %496 = vmatprep.subr.bf16.mxu0 %v367
    %497 = vmatpush1.bf16.msra.mxu0 %v366
    %498 = vmatprep.subr.bf16.mxu0 %v363
    %499 = vmatpush1.bf16.msra.mxu0 %v362
    %500 = vmatprep.subr.bf16.mxu0 %v359
    %501 = vmatpush1.bf16.msra.mxu0 %v358
    %502 = vmatprep.subr.bf16.mxu0 %v419
    %503 = vmatpush2.bf16.msra.mxu0 %v418
    %504 = vmatprep.subr.bf16.mxu0 %v415
    %505 = vmatpush2.bf16.msra.mxu0 %v414
    %506 = vmatprep.subr.bf16.mxu0 %v411
    %507 = vmatpush2.bf16.msra.mxu0 %v410
    %508 = vmatprep.subr.bf16.mxu0 %v407
    %509 = vmatpush2.bf16.msra.mxu0 %v406
    %510 = vmatprep.subr.bf16.mxu0 %v403
    %511 = vmatpush2.bf16.msra.mxu0 %v402
    %512 = vmatprep.subr.bf16.mxu0 %v399
    %513 = vmatpush2.bf16.msra.mxu0 %v398
    %514 = vmatprep.subr.bf16.mxu0 %v395
    %515 = vmatpush2.bf16.msra.mxu0 %v394
    %516 = vmatprep.subr.bf16.mxu0 %v391
    %517 = vmatpush2.bf16.msra.mxu0 %v390
    %518 = vmatprep.mubr.bf16.mxu0 %v79
    %519 = vmatmul.mubr.bf16.gmra.mxu0 %v78
    %v520 = vpop.f32.mrf.mxu0
    %v521 = vadd.f32 %v149, %v520
    %v522 = vpop.f32.mrf.mxu0
    %v523 = vadd.f32 %v153, %v522
    %v524 = vpop.f32.mrf.mxu0
    %v525 = vpop.f32.mrf.mxu0
    %526 = vdwg.mxu0
    %527 = vmatprep.subr.bf16.mxu0 %v389
    %528 = vmatpush1.bf16.msra.mxu0 %v388
    %529 = vmatprep.subr.bf16.mxu0 %v385
    %530 = vmatpush1.bf16.msra.mxu0 %v384
    %531 = vmatprep.subr.bf16.mxu0 %v381
    %532 = vmatpush1.bf16.msra.mxu0 %v380
    %533 = vmatprep.subr.bf16.mxu0 %v377
    %534 = vmatpush1.bf16.msra.mxu0 %v376
    %535 = vmatprep.subr.bf16.mxu0 %v373
    %536 = vmatpush1.bf16.msra.mxu0 %v372
    %537 = vmatprep.subr.bf16.mxu0 %v369
    %538 = vmatpush1.bf16.msra.mxu0 %v368
    %539 = vmatprep.subr.bf16.mxu0 %v365
    %540 = vmatpush1.bf16.msra.mxu0 %v364
    %541 = vmatprep.subr.bf16.mxu0 %v361
    %542 = vmatpush1.bf16.msra.mxu0 %v360
    %543 = vmatprep.subr.bf16.mxu0 %v421
    %544 = vmatpush2.bf16.msra.mxu0 %v420
    %545 = vmatprep.subr.bf16.mxu0 %v417
    %546 = vmatpush2.bf16.msra.mxu0 %v416
    %547 = vmatprep.subr.bf16.mxu0 %v413
    %548 = vmatpush2.bf16.msra.mxu0 %v412
    %549 = vmatprep.subr.bf16.mxu0 %v409
    %550 = vmatpush2.bf16.msra.mxu0 %v408
    %551 = vmatprep.subr.bf16.mxu0 %v405
    %552 = vmatpush2.bf16.msra.mxu0 %v404
    %553 = vmatprep.subr.bf16.mxu0 %v401
    %554 = vmatpush2.bf16.msra.mxu0 %v400
    %555 = vmatprep.subr.bf16.mxu0 %v397
    %556 = vmatpush2.bf16.msra.mxu0 %v396
    %557 = vmatprep.subr.bf16.mxu0 %v393
    %558 = vmatpush2.bf16.msra.mxu0 %v392
    %559 = vmatprep.mubr.bf16.mxu0 %v79
    %560 = vmatmul.mubr.bf16.gmra.mxu0 %v78
    %v561 = vpop.f32.mrf.mxu0
    %v562 = vadd.f32 %v157, %v561
    %v563 = vpop.f32.mrf.mxu0
    %v564 = vadd.f32 %v161, %v563
    %v565 = vpop.f32.mrf.mxu0
    %v566 = vpop.f32.mrf.mxu0
    %567 = vdwg.mxu0
    %v568 = vld [vmem:[%s5] sm:$0xff]
    %v569 = vld [vmem:[%s6] sm:$0xff]
    %v570 = vmul.f32 %v521, %v568
    %571 = vrot.lane.b32.xlu0 %v521, 64
    %v572 = vpop.permute.xlu0 %571
    %v573 = vmul.f32 %v572, %v569
    %v574 = vadd.f32 %v570, %v573
    %v575 = vmul.f32 %v523, %v568
    %576 = vrot.lane.b32.xlu0 %v523, 64
    %v577 = vpop.permute.xlu0 %576
    %v578 = vmul.f32 %v577, %v569
    %v579 = vadd.f32 %v575, %v578
    %v580 = vmul.f32 %v562, %v568
    %581 = vrot.lane.b32.xlu0 %v562, 64
    %v582 = vpop.permute.xlu0 %581
    %v583 = vmul.f32 %v582, %v569
    %v584 = vadd.f32 %v580, %v583
    %v585 = vmul.f32 %v574, 0.088388346
    %v586 = vmul.f32 %v579, 0.088388346
    %v587 = vpack.c.bf16 %v585, %v585
    %v588 = vpack.c.bf16 %v586, %v586
    %v591 = vunpack.c.l.b16 %v587
    %v592 = vunpack.c.l.b16 %v588
    %v593 = vpack.c.b16 %v592, %v591
    %595 = vst [vmem:[%s7] sm:$0xff] %v593
    %v596 = vpack.c.bf16 %v584, %v584
    %597 = vst [vmem:[%s8] sm:$0xf] %v596
    %v598 = vpack.c.bf16 %v564, %v564
    %599 = vst [vmem:[%s9] sm:$0xf] %v598
    // Predicated region
    $region34: #{qwen2_moe_forward.8} parent=1 // pred_check
      _
    $region35: #{qwen2_moe_forward.8} parent=1 // pred_check_branch
      %601 = sbr.rel (0) target = $region37
    $region36: #{qwen2_moe_forward.8} parent=1 // pred_region
      _
    $region37: #{qwen2_moe_forward.8} parent=1 // pred_fallthru
      _
    // Predicated region
    $region38: #{qwen2_moe_forward.8} parent=1 // pred_check
      _
    $region39: #{qwen2_moe_forward.8} parent=1 // pred_check_branch
      %603 = sbr.rel (0) target = $region41
    $region40: #{qwen2_moe_forward.8} parent=1 // pred_region
      _
    $region41: #{qwen2_moe_forward.8} parent=1 // pred_fallthru
      _
    // Predicated region
    $region42: #{qwen2_moe_forward.8} parent=1 // pred_check
      _
    $region43: #{qwen2_moe_forward.8} parent=1 // pred_check_branch
      %605 = sbr.rel (0) target = $region45
    $region44: #{qwen2_moe_forward.8} parent=1 // pred_region
      _
    $region45: #{qwen2_moe_forward.8} parent=1 // pred_fallthru
      _
    // Predicated region
    $region46: #{qwen2_moe_forward.8} parent=1 // pred_check
      _
    $region47: #{qwen2_moe_forward.8} parent=1 // pred_check_branch
      %607 = sbr.rel (0) target = $region49
    $region48: #{qwen2_moe_forward.8} parent=1 // pred_region
      _
    $region49: #{qwen2_moe_forward.8} parent=1 // pred_fallthru
      _
    // Predicated region
    $region50: #{qwen2_moe_forward.8} parent=1 // pred_check
      _
    $region51: #{qwen2_moe_forward.8} parent=1 // pred_check_branch
      %609 = sbr.rel (0) target = $region53
    $region52: #{qwen2_moe_forward.8} parent=1 // pred_region
      _
    $region53: #{qwen2_moe_forward.8} parent=1 // pred_fallthru
      _
    // Predicated region
    $region54: #{qwen2_moe_forward.8} parent=1 // pred_check
      _
    $region55: #{qwen2_moe_forward.8} parent=1 // pred_check_branch
      %611 = sbr.rel (0) target = $region57
    $region56: #{qwen2_moe_forward.8} parent=1 // pred_region
      _
    $region57: #{qwen2_moe_forward.8} parent=1 // pred_fallthru
      _
    // Predicated region
    $region58: #{qwen2_moe_forward.8} parent=1 // pred_check
      _
    $region59: #{qwen2_moe_forward.8} parent=1 // pred_check_branch
      %613 = sbr.rel (0) target = $region61
    $region60: #{qwen2_moe_forward.8} parent=1 // pred_region
      _
    $region61: #{qwen2_moe_forward.8} parent=1 // pred_fallthru
      _
    // Predicated region
    $region62: #{qwen2_moe_forward.8} parent=1 // pred_check
      _
    $region63: #{qwen2_moe_forward.8} parent=1 // pred_check_branch
      %615 = sbr.rel (0) target = $region65
    $region64: #{qwen2_moe_forward.8} parent=1 // pred_region
      _
    $region65: #{qwen2_moe_forward.8} parent=1 // pred_fallthru
      _
    %616 = vsyncpa [#allocation3], 1

// kernel: qwen2_moe_forward.9
$region0: #{qwen2_moe_forward.9}
  #allocation0 [shape = 'u32[]', space=smem, size = 0x4, offset = 0x4, fixed_abs, tag = 'smem constant byte address 0x4 - core index']
  #allocation1 [shape = 'u32[144,128]{1,0:T(1,128)}', space=vmem, size = 0x12000, scoped, tag = 'internal scratch']
  #allocation2 [shape = 'f32[2,8,1]{2,1,0:T(8,128)}', space=vmem, size = 0x2000, scoped, tag = 'scratch operand']
  #allocation3 [shape = 'f32[2,8,1]{2,1,0:T(8,128)}', space=vmem, size = 0x2000, scoped, tag = 'scratch operand']
  #allocation4 [shape = 'f32[2,8,128]{2,1,0:T(8,128)}', space=vmem, size = 0x2000, scoped, tag = 'scratch operand']
  #allocation5 [shape = 'f32[8,256]{1,0:T(8,128)}', space=vmem, size = 0x2000, scoped, tag = 'scratch operand']
  %s0 = inlined_call_operand.vmem [shape: bf16[8,256], index: 0, kind: input, shape index: {}]
  %s1 = inlined_call_operand.vmem [shape: bf16[8,128], index: 1, kind: input, shape index: {}]
  %s2 = inlined_call_operand.vmem [shape: bf16[8,128], index: 2, kind: input, shape index: {}]
  %s3 = inlined_call_operand.vmem [shape: bf16[256,256], index: 3, kind: input, shape index: {}]
  %s4 = inlined_call_operand.vmem [shape: bf16[8,256], index: 4, kind: output, shape index: {}]
  %s5 = sld [smem:[#allocation0]]
  $region46: #{qwen2_moe_forward.9} parent=0
    _
  %s7 = ssub.s32 1, %s5
  %s8 = scalar_select 0, %s7, %s5
  // Predicated region
  $region2: #{qwen2_moe_forward.9} parent=0 // pred_check
    _
  $region3: #{qwen2_moe_forward.9} parent=0 // pred_check_branch
    %10 = sbr.rel (0) target = $region5
  $region4: #{qwen2_moe_forward.9} parent=0 // pred_region
    _
  $region5: #{qwen2_moe_forward.9} parent=0 // pred_fallthru
    _
  // Predicated region
  $region6: #{qwen2_moe_forward.9} parent=0 // pred_check
    _
  $region7: #{qwen2_moe_forward.9} parent=0 // pred_check_branch
    %12 = sbr.rel (0) target = $region9
  $region8: #{qwen2_moe_forward.9} parent=0 // pred_region
    _
  $region9: #{qwen2_moe_forward.9} parent=0 // pred_fallthru
    _
  // Predicated region
  $region10: #{qwen2_moe_forward.9} parent=0 // pred_check
    _
  $region11: #{qwen2_moe_forward.9} parent=0 // pred_check_branch
    %14 = sbr.rel (0) target = $region13
  $region12: #{qwen2_moe_forward.9} parent=0 // pred_region
    _
  $region13: #{qwen2_moe_forward.9} parent=0 // pred_fallthru
    _
  // Predicated region
  $region14: #{qwen2_moe_forward.9} parent=0 // pred_check
    _
  $region15: #{qwen2_moe_forward.9} parent=0 // pred_check_branch
    %16 = sbr.rel (0) target = $region17
  $region16: #{qwen2_moe_forward.9} parent=0 // pred_region
    _
  $region17: #{qwen2_moe_forward.9} parent=0 // pred_fallthru
    _
  %p18 = scmp.eq.s32.totalorder 0, 0
  %p19 = scmp.eq.s32.totalorder 0, 0
  %p20 = pnand %p18, %p19
  %p21 = pneg %p20
  // Predicated region
  $region18: #{qwen2_moe_forward.9} parent=0 // pred_check
    _
  $region19: #{qwen2_moe_forward.9} parent=0 // pred_check_branch
    %23 = sbr.rel (%p20) target = $region21
  $region20: #{qwen2_moe_forward.9} parent=0 // pred_region
    %24 = vst [vmem:[#allocation5] sm:$0xff] 0.0
    %25 = vst [vmem:[#allocation5 + $0x8] sm:$0xff] 0.0
  $region21: #{qwen2_moe_forward.9} parent=0 // pred_fallthru
    _
  // Predicated region
  $region22: #{qwen2_moe_forward.9} parent=0 // pred_check
    %p26 = pneg %p19
  $region23: #{qwen2_moe_forward.9} parent=0 // pred_check_branch
    %28 = sbr.rel (%p26) target = $region25
  $region24: #{qwen2_moe_forward.9} parent=0 // pred_region
    %vm29 = vcmask 7168
    %30 = vst.msk [vmem:[#allocation2] sm:$0xff] %vm29, -1e+30
    %31 = vst.msk [vmem:[#allocation2 + $0x8] sm:$0xff] %vm29, -1e+30
    %32 = vst.msk [vmem:[#allocation3] sm:$0xff] %vm29, 0.0
    %33 = vst.msk [vmem:[#allocation3 + $0x8] sm:$0xff] %vm29, 0.0
    %34 = vst [vmem:[#allocation4] sm:$0xff] 0.0
    %35 = vst [vmem:[#allocation4 + $0x8] sm:$0xff] 0.0
  $region25: #{qwen2_moe_forward.9} parent=0 // pred_fallthru
    _
  %p36 = scmp.le.s32.totalorder 0, 0
  // Predicated region
  $region26: #{qwen2_moe_forward.9} parent=0 // pred_check
    %p37 = pneg %p36
  $region27: #{qwen2_moe_forward.9} parent=0 // pred_check_branch
    %39 = sbr.rel (%p37) target = $region29
  $region28: #{qwen2_moe_forward.9} parent=0 // pred_region
    %v40 = vld [vmem:[%s0] sm:$0xff]
    %v41 = vld [vmem:[%s1] sm:$0xf]
    %v42 = vld [vmem:[%s2] sm:$0xf]
    %s43 = smul.u32 0, 8
    %v44 = vlaneseq
    %v45 = vshrl.u32 %v44, 7
    %v46 = vstv %s43
    %v47 = vadd.s32 %v46, %v45
    %s48 = smul.u32 0, 8
    %v49 = vlaneseq
    %v50 = vand.u32 %v49, 127
    %v51 = vstv %s48
    %v52 = vadd.s32 %v51, %v50
    %vm53 = vcmp.le.s32.totalorder %v52, %v47
    %54 = vmatprep.subr.bf16.mxu0 0
    %55 = vmatpush1.bf16.xpose.msra.mxu0 0
    %56 = vmatprep.subr.bf16.mxu0 0
    %57 = vmatpush1.bf16.xpose.msra.mxu0 0
    %58 = vmatprep.subr.bf16.mxu0 0
    %59 = vmatpush1.bf16.xpose.msra.mxu0 0
    %60 = vmatprep.subr.bf16.mxu0 0
    %61 = vmatpush1.bf16.xpose.msra.mxu0 0
    %62 = vmatprep.subr.bf16.mxu0 0
    %63 = vmatpush1.bf16.xpose.msra.mxu0 0
    %64 = vmatprep.subr.bf16.mxu0 0
    %65 = vmatpush1.bf16.xpose.msra.mxu0 0
    %66 = vmatprep.subr.bf16.mxu0 0
    %67 = vmatpush1.bf16.xpose.msra.mxu0 0
    %68 = vmatprep.subr.bf16.mxu0 0
    %69 = vmatpush1.bf16.xpose.msra.mxu0 %v41
    %70 = vmatprep.subr.bf16.mxu0 0
    %71 = vmatpush2.bf16.xpose.msra.mxu0 0
    %72 = vmatprep.subr.bf16.mxu0 0
    %73 = vmatpush2.bf16.xpose.msra.mxu0 0
    %74 = vmatprep.subr.bf16.mxu0 0
    %75 = vmatpush2.bf16.xpose.msra.mxu0 0
    %76 = vmatprep.subr.bf16.mxu0 0
    %77 = vmatpush2.bf16.xpose.msra.mxu0 0
    %78 = vmatprep.subr.bf16.mxu0 0
    %79 = vmatpush2.bf16.xpose.msra.mxu0 0
    %80 = vmatprep.subr.bf16.mxu0 0
    %81 = vmatpush2.bf16.xpose.msra.mxu0 0
    %82 = vmatprep.subr.bf16.mxu0 0
    %83 = vmatpush2.bf16.xpose.msra.mxu0 0
    %84 = vmatprep.subr.bf16.mxu0 0
    %85 = vmatpush2.bf16.xpose.msra.mxu0 0
    %86 = vmatprep.mubr.bf16.mxu0 0
    %87 = vmatmul.mubr.bf16.gmra.mxu0 %v40
    %v88 = vpop.f32.mrf.mxu0
    %v89 = vadd.f32 0.0, %v88
    %v90 = vpop.f32.mrf.mxu0
    %v91 = vpop.f32.mrf.mxu0
    %v92 = vpop.f32.mrf.mxu0
    %93 = vdwg.mxu0
    %v94 = vsel %vm53, %v89, -1e+30
    %v95 = vld [vmem:[#allocation2] sm:$0xff]
    %vm96 = vcmask 64512
    %v97 = vsel %vm96, %v94, -inf
    %98 = vmax.xlane.f32.xlu0 %v97
    %v99 = vpop.xlane.xlu0 %98
    %v100 = vmax.f32 %v95, %v99
    %v101 = vsub.f32 %v95, %v100
    %v102 = vmul.f32 %v101, 1.442695
    %v103 = vpow.pop %v102
    %105 = vset.pattern.permute.xlu0 0
    %106 = vperm.xlu0 %105, %v100
    %v107 = vpop.permute.xlu0 %106
    %v109 = vsub.f32 %v94, %v107
    %v110 = vmul.f32 %v109, 1.442695
    %v111 = vpow.pop %v110
    %v112 = vld [vmem:[#allocation3] sm:$0xff]
    %v113 = vmul.f32 %v103, %v112
    %v114 = vsel %vm96, %v111, 0.0
    %115 = vadd.xlane.f32.xlu0 %v114
    %v116 = vpop.xlane.xlu0 %115
    %v117 = vadd.f32 %v113, %v116
    %vm118 = vcmask 7168
    %119 = vst.msk [vmem:[#allocation3] sm:$0xff] %vm118, %v117
    %v120 = vld [vmem:[#allocation4] sm:$0xff]
    %122 = vset.pattern.permute.xlu0 0
    %123 = vperm.xlu0 %122, %v103
    %v124 = vpop.permute.xlu0 %123
    %v126 = vmul.f32 %v124, %v120
    %v127 = vpack.c.bf16 %v111, %v111
    %v129 = vsel %vm96, %v127, 0
    %vm131 = vcmask 1043456
    %v133 = vsel %vm131, %v42, 0
    %135 = vmatprep.subr.bf16.mxu0 0
    %136 = vmatpush1.bf16.msra.mxu0 0
    %137 = vmatprep.subr.bf16.mxu0 0
    %138 = vmatpush1.bf16.msra.mxu0 0
    %139 = vmatprep.subr.bf16.mxu0 0
    %140 = vmatpush1.bf16.msra.mxu0 0
    %141 = vmatprep.subr.bf16.mxu0 0
    %142 = vmatpush1.bf16.msra.mxu0 0
    %143 = vmatprep.subr.bf16.mxu0 0
    %144 = vmatpush1.bf16.msra.mxu0 0
    %145 = vmatprep.subr.bf16.mxu0 0
    %146 = vmatpush1.bf16.msra.mxu0 0
    %147 = vmatprep.subr.bf16.mxu0 0
    %148 = vmatpush1.bf16.msra.mxu0 0
    %149 = vmatprep.subr.bf16.mxu0 0
    %150 = vmatpush1.bf16.msra.mxu0 %v133
    %151 = vmatprep.subr.bf16.mxu0 0
    %152 = vmatpush2.bf16.msra.mxu0 0
    %153 = vmatprep.subr.bf16.mxu0 0
    %154 = vmatpush2.bf16.msra.mxu0 0
    %155 = vmatprep.subr.bf16.mxu0 0
    %156 = vmatpush2.bf16.msra.mxu0 0
    %157 = vmatprep.subr.bf16.mxu0 0
    %158 = vmatpush2.bf16.msra.mxu0 0
    %159 = vmatprep.subr.bf16.mxu0 0
    %160 = vmatpush2.bf16.msra.mxu0 0
    %161 = vmatprep.subr.bf16.mxu0 0
    %162 = vmatpush2.bf16.msra.mxu0 0
    %163 = vmatprep.subr.bf16.mxu0 0
    %164 = vmatpush2.bf16.msra.mxu0 0
    %165 = vmatprep.subr.bf16.mxu0 0
    %166 = vmatpush2.bf16.msra.mxu0 0
    %167 = vmatprep.mubr.bf16.mxu0 0
    %168 = vmatmul.mubr.bf16.gmra.mxu0 %v129
    %v169 = vpop.f32.mrf.mxu0
    %v170 = vadd.f32 0.0, %v169
    %v171 = vpop.f32.mrf.mxu0
    %v172 = vpop.f32.mrf.mxu0
    %v173 = vpop.f32.mrf.mxu0
    %174 = vdwg.mxu0
    %v175 = vadd.f32 %v126, %v170
    %176 = vst [vmem:[#allocation4] sm:$0xff] %v175
    %177 = vst.msk [vmem:[#allocation2] sm:$0xff] %vm118, %v100
    %v179 = vunpack.c.h.b16 %v40
    %v180 = vpack.c.b16 %v179, %v179
    %182 = vmatprep.subr.bf16.mxu0 0
    %183 = vmatpush1.bf16.xpose.msra.mxu0 0
    %184 = vmatprep.subr.bf16.mxu0 0
    %185 = vmatpush1.bf16.xpose.msra.mxu0 0
    %186 = vmatprep.subr.bf16.mxu0 0
    %187 = vmatpush1.bf16.xpose.msra.mxu0 0
    %188 = vmatprep.subr.bf16.mxu0 0
    %189 = vmatpush1.bf16.xpose.msra.mxu0 0
    %190 = vmatprep.subr.bf16.mxu0 0
    %191 = vmatpush1.bf16.xpose.msra.mxu0 0
    %192 = vmatprep.subr.bf16.mxu0 0
    %193 = vmatpush1.bf16.xpose.msra.mxu0 0
    %194 = vmatprep.subr.bf16.mxu0 0
    %195 = vmatpush1.bf16.xpose.msra.mxu0 0
    %196 = vmatprep.subr.bf16.mxu0 0
    %197 = vmatpush1.bf16.xpose.msra.mxu0 %v41
    %198 = vmatprep.subr.bf16.mxu0 0
    %199 = vmatpush2.bf16.xpose.msra.mxu0 0
    %200 = vmatprep.subr.bf16.mxu0 0
    %201 = vmatpush2.bf16.xpose.msra.mxu0 0
    %202 = vmatprep.subr.bf16.mxu0 0
    %203 = vmatpush2.bf16.xpose.msra.mxu0 0
    %204 = vmatprep.subr.bf16.mxu0 0
    %205 = vmatpush2.bf16.xpose.msra.mxu0 0
    %206 = vmatprep.subr.bf16.mxu0 0
    %207 = vmatpush2.bf16.xpose.msra.mxu0 0
    %208 = vmatprep.subr.bf16.mxu0 0
    %209 = vmatpush2.bf16.xpose.msra.mxu0 0
    %210 = vmatprep.subr.bf16.mxu0 0
    %211 = vmatpush2.bf16.xpose.msra.mxu0 0
    %212 = vmatprep.subr.bf16.mxu0 0
    %213 = vmatpush2.bf16.xpose.msra.mxu0 0
    %214 = vmatprep.mubr.bf16.mxu0 0
    %215 = vmatmul.mubr.bf16.gmra.mxu0 %v180
    %v216 = vpop.f32.mrf.mxu0
    %v217 = vadd.f32 0.0, %v216
    %v218 = vpop.f32.mrf.mxu0
    %v219 = vpop.f32.mrf.mxu0
    %v220 = vpop.f32.mrf.mxu0
    %221 = vdwg.mxu0
    %v222 = vsel %vm53, %v217, -1e+30
    %s223 = scalar_lea.vmem [#allocation2], 8
    %v224 = vld [vmem:[%s223] sm:$0xff]
    %v225 = vsel %vm96, %v222, -inf
    %226 = vmax.xlane.f32.xlu0 %v225
    %v227 = vpop.xlane.xlu0 %226
    %v228 = vmax.f32 %v224, %v227
    %v229 = vsub.f32 %v224, %v228
    %v230 = vmul.f32 %v229, 1.442695
    %v231 = vpow.pop %v230
    %233 = vset.pattern.permute.xlu0 0
    %234 = vperm.xlu0 %233, %v228
    %v235 = vpop.permute.xlu0 %234
    %v237 = vsub.f32 %v222, %v235
    %v238 = vmul.f32 %v237, 1.442695
    %v239 = vpow.pop %v238
    %s240 = scalar_lea.vmem [#allocation3], 8
    %v241 = vld [vmem:[%s240] sm:$0xff]
    %v242 = vmul.f32 %v231, %v241
    %v243 = vsel %vm96, %v239, 0.0
    %244 = vadd.xlane.f32.xlu0 %v243
    %v245 = vpop.xlane.xlu0 %244
    %v246 = vadd.f32 %v242, %v245
    %247 = vst.msk [vmem:[%s240] sm:$0xff] %vm118, %v246
    %s248 = scalar_lea.vmem [#allocation4], 8
    %v249 = vld [vmem:[%s248] sm:$0xff]
    %251 = vset.pattern.permute.xlu0 0
    %252 = vperm.xlu0 %251, %v231
    %v253 = vpop.permute.xlu0 %252
    %v255 = vmul.f32 %v253, %v249
    %v256 = vpack.c.bf16 %v239, %v239
    %v258 = vsel %vm96, %v256, 0
    %260 = vmatprep.subr.bf16.mxu0 0
    %261 = vmatpush1.bf16.msra.mxu0 0
    %262 = vmatprep.subr.bf16.mxu0 0
    %263 = vmatpush1.bf16.msra.mxu0 0
    %264 = vmatprep.subr.bf16.mxu0 0
    %265 = vmatpush1.bf16.msra.mxu0 0
    %266 = vmatprep.subr.bf16.mxu0 0
    %267 = vmatpush1.bf16.msra.mxu0 0
    %268 = vmatprep.subr.bf16.mxu0 0
    %269 = vmatpush1.bf16.msra.mxu0 0
    %270 = vmatprep.subr.bf16.mxu0 0
    %271 = vmatpush1.bf16.msra.mxu0 0
    %272 = vmatprep.subr.bf16.mxu0 0
    %273 = vmatpush1.bf16.msra.mxu0 0
    %274 = vmatprep.subr.bf16.mxu0 0
    %275 = vmatpush1.bf16.msra.mxu0 %v133
    %276 = vmatprep.subr.bf16.mxu0 0
    %277 = vmatpush2.bf16.msra.mxu0 0
    %278 = vmatprep.subr.bf16.mxu0 0
    %279 = vmatpush2.bf16.msra.mxu0 0
    %280 = vmatprep.subr.bf16.mxu0 0
    %281 = vmatpush2.bf16.msra.mxu0 0
    %282 = vmatprep.subr.bf16.mxu0 0
    %283 = vmatpush2.bf16.msra.mxu0 0
    %284 = vmatprep.subr.bf16.mxu0 0
    %285 = vmatpush2.bf16.msra.mxu0 0
    %286 = vmatprep.subr.bf16.mxu0 0
    %287 = vmatpush2.bf16.msra.mxu0 0
    %288 = vmatprep.subr.bf16.mxu0 0
    %289 = vmatpush2.bf16.msra.mxu0 0
    %290 = vmatprep.subr.bf16.mxu0 0
    %291 = vmatpush2.bf16.msra.mxu0 0
    %292 = vmatprep.mubr.bf16.mxu0 0
    %293 = vmatmul.mubr.bf16.gmra.mxu0 %v258
    %v294 = vpop.f32.mrf.mxu0
    %v295 = vadd.f32 0.0, %v294
    %v296 = vpop.f32.mrf.mxu0
    %v297 = vpop.f32.mrf.mxu0
    %v298 = vpop.f32.mrf.mxu0
    %299 = vdwg.mxu0
    %v300 = vadd.f32 %v255, %v295
    %301 = vst [vmem:[%s248] sm:$0xff] %v300
    %302 = vst.msk [vmem:[%s223] sm:$0xff] %vm118, %v228
  $region29: #{qwen2_moe_forward.9} parent=0 // pred_fallthru
    _
  // Predicated region
  $region30: #{qwen2_moe_forward.9} parent=0 // pred_check
    %p303 = pneg %p19
  $region31: #{qwen2_moe_forward.9} parent=0 // pred_check_branch
    %305 = sbr.rel (%p303) target = $region33
  $region32: #{qwen2_moe_forward.9} parent=0 // pred_region
    %v306 = vld [vmem:[#allocation4] sm:$0xff]
    %v307 = vld [vmem:[#allocation3] sm:$0xff]
    %v308 = vrcp.pop %v307
    %310 = vset.pattern.permute.xlu0 0
    %311 = vperm.xlu0 %310, %v308
    %v312 = vpop.permute.xlu0 %311
    %v314 = vmul.f32 %v306, %v312
    %s315 = scalar_lea.vmem [#allocation4], 8
    %v316 = vld [vmem:[%s315] sm:$0xff]
    %s317 = scalar_lea.vmem [#allocation3], 8
    %v318 = vld [vmem:[%s317] sm:$0xff]
    %v319 = vrcp.pop %v318
    %321 = vset.pattern.permute.xlu0 0
    %322 = vperm.xlu0 %321, %v319
    %v323 = vpop.permute.xlu0 %322
    %v325 = vmul.f32 %v316, %v323
    %v326 = vld [vmem:[#allocation5] sm:$0xff]
    %v327 = vld [vmem:[#allocation5 + $0x8] sm:$0xff]
    %v328 = vpack.c.bf16 %v314, %v314
    %v329 = vpack.c.bf16 %v325, %v325
    %v330 = vld [vmem:[%s3] sm:$0xff]
    %v331 = vld [vmem:[%s3 + $0x8] sm:$0xff]
    %v332 = vld [vmem:[%s3 + $0x10] sm:$0xff]
    %v333 = vld [vmem:[%s3 + $0x18] sm:$0xff]
    %v334 = vld [vmem:[%s3 + $0x20] sm:$0xff]
    %v335 = vld [vmem:[%s3 + $0x28] sm:$0xff]
    %v336 = vld [vmem:[%s3 + $0x30] sm:$0xff]
    %v337 = vld [vmem:[%s3 + $0x38] sm:$0xff]
    %v338 = vld [vmem:[%s3 + $0x40] sm:$0xff]
    %v339 = vld [vmem:[%s3 + $0x48] sm:$0xff]
    %v340 = vld [vmem:[%s3 + $0x50] sm:$0xff]
    %v341 = vld [vmem:[%s3 + $0x58] sm:$0xff]
    %v342 = vld [vmem:[%s3 + $0x60] sm:$0xff]
    %v343 = vld [vmem:[%s3 + $0x68] sm:$0xff]
    %v344 = vld [vmem:[%s3 + $0x70] sm:$0xff]
    %v345 = vld [vmem:[%s3 + $0x78] sm:$0xff]
    %v346 = vld [vmem:[%s3 + $0x80] sm:$0xff]
    %v347 = vld [vmem:[%s3 + $0x88] sm:$0xff]
    %v348 = vld [vmem:[%s3 + $0x90] sm:$0xff]
    %v349 = vld [vmem:[%s3 + $0x98] sm:$0xff]
    %v350 = vld [vmem:[%s3 + $0xa0] sm:$0xff]
    %v351 = vld [vmem:[%s3 + $0xa8] sm:$0xff]
    %v352 = vld [vmem:[%s3 + $0xb0] sm:$0xff]
    %v353 = vld [vmem:[%s3 + $0xb8] sm:$0xff]
    %v354 = vld [vmem:[%s3 + $0xc0] sm:$0xff]
    %v355 = vld [vmem:[%s3 + $0xc8] sm:$0xff]
    %v356 = vld [vmem:[%s3 + $0xd0] sm:$0xff]
    %v357 = vld [vmem:[%s3 + $0xd8] sm:$0xff]
    %v358 = vld [vmem:[%s3 + $0xe0] sm:$0xff]
    %v359 = vld [vmem:[%s3 + $0xe8] sm:$0xff]
    %v360 = vld [vmem:[%s3 + $0xf0] sm:$0xff]
    %v361 = vld [vmem:[%s3 + $0xf8] sm:$0xff]
    %v394 = vunpack.c.l.b16 %v330
    %v395 = vunpack.c.h.b16 %v330
    %v396 = vunpack.c.l.b16 %v331
    %v397 = vunpack.c.h.b16 %v331
    %v398 = vunpack.c.l.b16 %v332
    %v399 = vunpack.c.h.b16 %v332
    %v400 = vunpack.c.l.b16 %v333
    %v401 = vunpack.c.h.b16 %v333
    %v402 = vunpack.c.l.b16 %v334
    %v403 = vunpack.c.h.b16 %v334
    %v404 = vunpack.c.l.b16 %v335
    %v405 = vunpack.c.h.b16 %v335
    %v406 = vunpack.c.l.b16 %v336
    %v407 = vunpack.c.h.b16 %v336
    %v408 = vunpack.c.l.b16 %v337
    %v409 = vunpack.c.h.b16 %v337
    %v410 = vunpack.c.l.b16 %v338
    %v411 = vunpack.c.h.b16 %v338
    %v412 = vunpack.c.l.b16 %v339
    %v413 = vunpack.c.h.b16 %v339
    %v414 = vunpack.c.l.b16 %v340
    %v415 = vunpack.c.h.b16 %v340
    %v416 = vunpack.c.l.b16 %v341
    %v417 = vunpack.c.h.b16 %v341
    %v418 = vunpack.c.l.b16 %v342
    %v419 = vunpack.c.h.b16 %v342
    %v420 = vunpack.c.l.b16 %v343
    %v421 = vunpack.c.h.b16 %v343
    %v422 = vunpack.c.l.b16 %v344
    %v423 = vunpack.c.h.b16 %v344
    %v424 = vunpack.c.l.b16 %v345
    %v425 = vunpack.c.h.b16 %v345
    %v426 = vunpack.c.l.b16 %v346
    %v427 = vunpack.c.h.b16 %v346
    %v428 = vunpack.c.l.b16 %v347
    %v429 = vunpack.c.h.b16 %v347
    %v430 = vunpack.c.l.b16 %v348
    %v431 = vunpack.c.h.b16 %v348
    %v432 = vunpack.c.l.b16 %v349
    %v433 = vunpack.c.h.b16 %v349
    %v434 = vunpack.c.l.b16 %v350
    %v435 = vunpack.c.h.b16 %v350
    %v436 = vunpack.c.l.b16 %v351
    %v437 = vunpack.c.h.b16 %v351
    %v438 = vunpack.c.l.b16 %v352
    %v439 = vunpack.c.h.b16 %v352
    %v440 = vunpack.c.l.b16 %v353
    %v441 = vunpack.c.h.b16 %v353
    %v442 = vunpack.c.l.b16 %v354
    %v443 = vunpack.c.h.b16 %v354
    %v444 = vunpack.c.l.b16 %v355
    %v445 = vunpack.c.h.b16 %v355
    %v446 = vunpack.c.l.b16 %v356
    %v447 = vunpack.c.h.b16 %v356
    %v448 = vunpack.c.l.b16 %v357
    %v449 = vunpack.c.h.b16 %v357
    %v450 = vunpack.c.l.b16 %v358
    %v451 = vunpack.c.h.b16 %v358
    %v452 = vunpack.c.l.b16 %v359
    %v453 = vunpack.c.h.b16 %v359
    %v454 = vunpack.c.l.b16 %v360
    %v455 = vunpack.c.h.b16 %v360
    %v456 = vunpack.c.l.b16 %v361
    %v457 = vunpack.c.h.b16 %v361
    %v458 = vpack.c.b16 %v396, %v394
    %v459 = vpack.c.b16 %v397, %v395
    %v460 = vpack.c.b16 %v400, %v398
    %v461 = vpack.c.b16 %v401, %v399
    %v462 = vpack.c.b16 %v404, %v402
    %v463 = vpack.c.b16 %v405, %v403
    %v464 = vpack.c.b16 %v408, %v406
    %v465 = vpack.c.b16 %v409, %v407
    %v466 = vpack.c.b16 %v412, %v410
    %v467 = vpack.c.b16 %v413, %v411
    %v468 = vpack.c.b16 %v416, %v414
    %v469 = vpack.c.b16 %v417, %v415
    %v470 = vpack.c.b16 %v420, %v418
    %v471 = vpack.c.b16 %v421, %v419
    %v472 = vpack.c.b16 %v424, %v422
    %v473 = vpack.c.b16 %v425, %v423
    %v474 = vpack.c.b16 %v428, %v426
    %v475 = vpack.c.b16 %v429, %v427
    %v476 = vpack.c.b16 %v432, %v430
    %v477 = vpack.c.b16 %v433, %v431
    %v478 = vpack.c.b16 %v436, %v434
    %v479 = vpack.c.b16 %v437, %v435
    %v480 = vpack.c.b16 %v440, %v438
    %v481 = vpack.c.b16 %v441, %v439
    %v482 = vpack.c.b16 %v444, %v442
    %v483 = vpack.c.b16 %v445, %v443
    %v484 = vpack.c.b16 %v448, %v446
    %v485 = vpack.c.b16 %v449, %v447
    %v486 = vpack.c.b16 %v452, %v450
    %v487 = vpack.c.b16 %v453, %v451
    %v488 = vpack.c.b16 %v456, %v454
    %v489 = vpack.c.b16 %v457, %v455
    %522 = vmatprep.subr.bf16.mxu0 %v473
    %523 = vmatpush1.bf16.msra.mxu0 %v472
    %524 = vmatprep.subr.bf16.mxu0 %v471
    %525 = vmatpush1.bf16.msra.mxu0 %v470
    %526 = vmatprep.subr.bf16.mxu0 %v469
    %527 = vmatpush1.bf16.msra.mxu0 %v468
    %528 = vmatprep.subr.bf16.mxu0 %v467
    %529 = vmatpush1.bf16.msra.mxu0 %v466
    %530 = vmatprep.subr.bf16.mxu0 %v465
    %531 = vmatpush1.bf16.msra.mxu0 %v464
    %532 = vmatprep.subr.bf16.mxu0 %v463
    %533 = vmatpush1.bf16.msra.mxu0 %v462
    %534 = vmatprep.subr.bf16.mxu0 %v461
    %535 = vmatpush1.bf16.msra.mxu0 %v460
    %536 = vmatprep.subr.bf16.mxu0 %v459
    %537 = vmatpush1.bf16.msra.mxu0 %v458
    %538 = vmatprep.subr.bf16.mxu0 %v489
    %539 = vmatpush2.bf16.msra.mxu0 %v488
    %540 = vmatprep.subr.bf16.mxu0 %v487
    %541 = vmatpush2.bf16.msra.mxu0 %v486
    %542 = vmatprep.subr.bf16.mxu0 %v485
    %543 = vmatpush2.bf16.msra.mxu0 %v484
    %544 = vmatprep.subr.bf16.mxu0 %v483
    %545 = vmatpush2.bf16.msra.mxu0 %v482
    %546 = vmatprep.subr.bf16.mxu0 %v481
    %547 = vmatpush2.bf16.msra.mxu0 %v480
    %548 = vmatprep.subr.bf16.mxu0 %v479
    %549 = vmatpush2.bf16.msra.mxu0 %v478
    %550 = vmatprep.subr.bf16.mxu0 %v477
    %551 = vmatpush2.bf16.msra.mxu0 %v476
    %552 = vmatprep.subr.bf16.mxu0 %v475
    %553 = vmatpush2.bf16.msra.mxu0 %v474
    %554 = vmatprep.mubr.bf16.mxu0 %v329
    %555 = vmatmul.mubr.bf16.gmra.mxu0 %v328
    %v556 = vpop.f32.mrf.mxu0
    %v557 = vadd.f32 0.0, %v556
    %v558 = vpop.f32.mrf.mxu0
    %v559 = vadd.f32 0.0, %v558
    %v560 = vpop.f32.mrf.mxu0
    %v561 = vpop.f32.mrf.mxu0
    %562 = vdwg.mxu0
    %v563 = vadd.f32 %v326, %v557
    %v564 = vadd.f32 %v327, %v559
    %565 = vst [vmem:[#allocation5] sm:$0xff] %v563
    %566 = vst [vmem:[#allocation5 + $0x8] sm:$0xff] %v564
  $region33: #{qwen2_moe_forward.9} parent=0 // pred_fallthru
    _
  // Predicated region
  $region34: #{qwen2_moe_forward.9} parent=0 // pred_check
    _
  $region35: #{qwen2_moe_forward.9} parent=0 // pred_check_branch
    %568 = sbr.rel (%p20) target = $region37
  $region36: #{qwen2_moe_forward.9} parent=0 // pred_region
    %v569 = vld [vmem:[#allocation5] sm:$0xff]
    %v570 = vld [vmem:[#allocation5 + $0x8] sm:$0xff]
    %v571 = vpack.c.bf16 %v569, %v569
    %v572 = vpack.c.bf16 %v570, %v570
    %v575 = vunpack.c.l.b16 %v571
    %v576 = vunpack.c.l.b16 %v572
    %v577 = vpack.c.b16 %v576, %v575
    %579 = vst [vmem:[%s4] sm:$0xff] %v577
  $region37: #{qwen2_moe_forward.9} parent=0 // pred_fallthru
    _
  // Predicated region
  $region38: #{qwen2_moe_forward.9} parent=0 // pred_check
    _
  $region39: #{qwen2_moe_forward.9} parent=0 // pred_check_branch
    %581 = sbr.rel (0) target = $region41
  $region40: #{qwen2_moe_forward.9} parent=0 // pred_region
    _
  $region41: #{qwen2_moe_forward.9} parent=0 // pred_fallthru
    _
  // Predicated region
  $region42: #{qwen2_moe_forward.9} parent=0 // pred_check
    _
  $region43: #{qwen2_moe_forward.9} parent=0 // pred_check_branch
    %583 = sbr.rel (0) target = $region45
  $region44: #{qwen2_moe_forward.9} parent=0 // pred_region
    _
  $region45: #{qwen2_moe_forward.9} parent=0 // pred_fallthru
    _

// kernel: qwen2_moe_forward.11
$region0: #{qwen2_moe_forward.11}
  #allocation0 [shape = 'u32[]', space=smem, size = 0x4, offset = 0x4, fixed_abs, tag = 'smem constant byte address 0x4 - core index']
  #allocation1 [shape = 'u32[144,128]{1,0:T(1,128)}', space=vmem, size = 0x12000, scoped, tag = 'internal scratch']
  %s0 = inlined_call_operand.vmem [shape: bf16[8,256], index: 0, kind: input, shape index: {}]
  %s1 = inlined_call_operand.vmem [shape: f32[8,256], index: 1, kind: input, shape index: {}]
  %s2 = inlined_call_operand.vmem [shape: f32[1,256], index: 2, kind: input, shape index: {}]
  %s3 = inlined_call_operand.vmem [shape: bf16[256,512], index: 3, kind: input, shape index: {}]
  %s4 = inlined_call_operand.vmem [shape: f32[1,512], index: 4, kind: input, shape index: {}]
  %s5 = inlined_call_operand.vmem [shape: f32[8,128], index: 5, kind: input, shape index: {}]
  %s6 = inlined_call_operand.vmem [shape: f32[8,128], index: 6, kind: input, shape index: {}]
  %s7 = inlined_call_operand.vmem [shape: bf16[8,256], index: 7, kind: output, shape index: {0}]
  %s8 = inlined_call_operand.vmem [shape: bf16[8,128], index: 8, kind: output, shape index: {1}]
  %s9 = inlined_call_operand.vmem [shape: bf16[8,128], index: 9, kind: output, shape index: {2}]
  %s10 = inlined_call_operand.vmem [shape: f32[8,256], index: 10, kind: output, shape index: {3}]
  %11 = xla_tuple %s7, %s8, %s9, %s10
  %s12 = sld [smem:[#allocation0]]
  $region62: #{qwen2_moe_forward.11} parent=0
    _
  %s14 = ssub.s32 1, %s12
  %s15 = scalar_select 0, %s14, %s12
  // Predicated region
  $region2: #{qwen2_moe_forward.11} parent=0 // pred_check
    _
  $region3: #{qwen2_moe_forward.11} parent=0 // pred_check_branch
    %17 = sbr.rel (0) target = $region5
  $region4: #{qwen2_moe_forward.11} parent=0 // pred_region
    _
  $region5: #{qwen2_moe_forward.11} parent=0 // pred_fallthru
    _
  // Predicated region
  $region6: #{qwen2_moe_forward.11} parent=0 // pred_check
    _
  $region7: #{qwen2_moe_forward.11} parent=0 // pred_check_branch
    %19 = sbr.rel (0) target = $region9
  $region8: #{qwen2_moe_forward.11} parent=0 // pred_region
    _
  $region9: #{qwen2_moe_forward.11} parent=0 // pred_fallthru
    _
  // Predicated region
  $region10: #{qwen2_moe_forward.11} parent=0 // pred_check
    _
  $region11: #{qwen2_moe_forward.11} parent=0 // pred_check_branch
    %21 = sbr.rel (0) target = $region13
  $region12: #{qwen2_moe_forward.11} parent=0 // pred_region
    _
  $region13: #{qwen2_moe_forward.11} parent=0 // pred_fallthru
    _
  // Predicated region
  $region14: #{qwen2_moe_forward.11} parent=0 // pred_check
    _
  $region15: #{qwen2_moe_forward.11} parent=0 // pred_check_branch
    %23 = sbr.rel (0) target = $region17
  $region16: #{qwen2_moe_forward.11} parent=0 // pred_region
    _
  $region17: #{qwen2_moe_forward.11} parent=0 // pred_fallthru
    _
  // Predicated region
  $region18: #{qwen2_moe_forward.11} parent=0 // pred_check
    _
  $region19: #{qwen2_moe_forward.11} parent=0 // pred_check_branch
    %25 = sbr.rel (0) target = $region21
  $region20: #{qwen2_moe_forward.11} parent=0 // pred_region
    _
  $region21: #{qwen2_moe_forward.11} parent=0 // pred_fallthru
    _
  // Predicated region
  $region22: #{qwen2_moe_forward.11} parent=0 // pred_check
    _
  $region23: #{qwen2_moe_forward.11} parent=0 // pred_check_branch
    %27 = sbr.rel (0) target = $region25
  $region24: #{qwen2_moe_forward.11} parent=0 // pred_region
    _
  $region25: #{qwen2_moe_forward.11} parent=0 // pred_fallthru
    _
  // Predicated region
  $region26: #{qwen2_moe_forward.11} parent=0 // pred_check
    _
  $region27: #{qwen2_moe_forward.11} parent=0 // pred_check_branch
    %29 = sbr.rel (0) target = $region29
  $region28: #{qwen2_moe_forward.11} parent=0 // pred_region
    _
  $region29: #{qwen2_moe_forward.11} parent=0 // pred_fallthru
    _
  %v30 = vld [vmem:[%s0] sm:$0xff]
  %v31 = vunpack.c.l.bf16 %v30
  %v32 = vunpack.c.h.bf16 %v30
  %v33 = vld [vmem:[%s1] sm:$0xff]
  %v34 = vld [vmem:[%s1 + $0x8] sm:$0xff]
  %v35 = vadd.f32 %v31, %v33
  %v36 = vadd.f32 %v32, %v34
  %37 = vst [vmem:[%s10] sm:$0xff] %v35
  %38 = vst [vmem:[%s10 + $0x8] sm:$0xff] %v36
  %v39 = vld [vmem:[%s2] sm:$0x3]
  %v40 = vmul.f32 %v35, %v35
  %v41 = vmul.f32 %v36, %v36
  %v42 = vadd.f32 %v40, %v41
  %43 = vadd.xlane.f32.xlu0 %v42
  %v44 = vpop.xlane.xlu0 %43
  %v45 = vrcp.pop 256.0
  %v46 = vmul.f32 %v44, %v45
  %v47 = vadd.f32 %v46, 1e-06
  %v48 = vrsqrt.pop %v47
  %v49 = vmul.f32 %v35, %v48
  %v50 = vmul.f32 %v36, %v48
  %v52 = vlaneseq
  %v53 = vshrl.u32 %v52, 7
  %v54 = vsub.s32 0, %v53
  %v55 = vrot.slane %v39, %v54
  %v56 = vlaneseq
  %v57 = vshrl.u32 %v56, 7
  %v58 = vsub.s32 1, %v57
  %v59 = vrot.slane %v39, %v58
  %v62 = vmul.f32 %v49, %v55
  %v63 = vmul.f32 %v50, %v59
  %v64 = vpack.c.bf16 %v62, %v62
  %v65 = vpack.c.bf16 %v63, %v63
  %v66 = vld [vmem:[%s3] sm:$0xff]
  %v67 = vld [vmem:[%s3 + $0x8] sm:$0xff]
  %v68 = vld [vmem:[%s3 + $0x10] sm:$0xff]
  %v69 = vld [vmem:[%s3 + $0x18] sm:$0xff]
  %v70 = vld [vmem:[%s3 + $0x20] sm:$0xff]
  %v71 = vld [vmem:[%s3 + $0x28] sm:$0xff]
  %v72 = vld [vmem:[%s3 + $0x30] sm:$0xff]
  %v73 = vld [vmem:[%s3 + $0x38] sm:$0xff]
  %v74 = vld [vmem:[%s3 + $0x40] sm:$0xff]
  %v75 = vld [vmem:[%s3 + $0x48] sm:$0xff]
  %v76 = vld [vmem:[%s3 + $0x50] sm:$0xff]
  %v77 = vld [vmem:[%s3 + $0x58] sm:$0xff]
  %v78 = vld [vmem:[%s3 + $0x60] sm:$0xff]
  %v79 = vld [vmem:[%s3 + $0x68] sm:$0xff]
  %v80 = vld [vmem:[%s3 + $0x70] sm:$0xff]
  %v81 = vld [vmem:[%s3 + $0x78] sm:$0xff]
  %v82 = vld [vmem:[%s3 + $0x80] sm:$0xff]
  %v83 = vld [vmem:[%s3 + $0x88] sm:$0xff]
  %v84 = vld [vmem:[%s3 + $0x90] sm:$0xff]
  %v85 = vld [vmem:[%s3 + $0x98] sm:$0xff]
  %v86 = vld [vmem:[%s3 + $0xa0] sm:$0xff]
  %v87 = vld [vmem:[%s3 + $0xa8] sm:$0xff]
  %v88 = vld [vmem:[%s3 + $0xb0] sm:$0xff]
  %v89 = vld [vmem:[%s3 + $0xb8] sm:$0xff]
  %v90 = vld [vmem:[%s3 + $0xc0] sm:$0xff]
  %v91 = vld [vmem:[%s3 + $0xc8] sm:$0xff]
  %v92 = vld [vmem:[%s3 + $0xd0] sm:$0xff]
  %v93 = vld [vmem:[%s3 + $0xd8] sm:$0xff]
  %v94 = vld [vmem:[%s3 + $0xe0] sm:$0xff]
  %v95 = vld [vmem:[%s3 + $0xe8] sm:$0xff]
  %v96 = vld [vmem:[%s3 + $0xf0] sm:$0xff]
  %v97 = vld [vmem:[%s3 + $0xf8] sm:$0xff]
  %v98 = vld [vmem:[%s3 + $0x100] sm:$0xff]
  %v99 = vld [vmem:[%s3 + $0x108] sm:$0xff]
  %v100 = vld [vmem:[%s3 + $0x110] sm:$0xff]
  %v101 = vld [vmem:[%s3 + $0x118] sm:$0xff]
  %v102 = vld [vmem:[%s3 + $0x120] sm:$0xff]
  %v103 = vld [vmem:[%s3 + $0x128] sm:$0xff]
  %v104 = vld [vmem:[%s3 + $0x130] sm:$0xff]
  %v105 = vld [vmem:[%s3 + $0x138] sm:$0xff]
  %v106 = vld [vmem:[%s3 + $0x140] sm:$0xff]
  %v107 = vld [vmem:[%s3 + $0x148] sm:$0xff]
  %v108 = vld [vmem:[%s3 + $0x150] sm:$0xff]
  %v109 = vld [vmem:[%s3 + $0x158] sm:$0xff]
  %v110 = vld [vmem:[%s3 + $0x160] sm:$0xff]
  %v111 = vld [vmem:[%s3 + $0x168] sm:$0xff]
  %v112 = vld [vmem:[%s3 + $0x170] sm:$0xff]
  %v113 = vld [vmem:[%s3 + $0x178] sm:$0xff]
  %v114 = vld [vmem:[%s3 + $0x180] sm:$0xff]
  %v115 = vld [vmem:[%s3 + $0x188] sm:$0xff]
  %v116 = vld [vmem:[%s3 + $0x190] sm:$0xff]
  %v117 = vld [vmem:[%s3 + $0x198] sm:$0xff]
  %v118 = vld [vmem:[%s3 + $0x1a0] sm:$0xff]
  %v119 = vld [vmem:[%s3 + $0x1a8] sm:$0xff]
  %v120 = vld [vmem:[%s3 + $0x1b0] sm:$0xff]
  %v121 = vld [vmem:[%s3 + $0x1b8] sm:$0xff]
  %v122 = vld [vmem:[%s3 + $0x1c0] sm:$0xff]
  %v123 = vld [vmem:[%s3 + $0x1c8] sm:$0xff]
  %v124 = vld [vmem:[%s3 + $0x1d0] sm:$0xff]
  %v125 = vld [vmem:[%s3 + $0x1d8] sm:$0xff]
  %v126 = vld [vmem:[%s3 + $0x1e0] sm:$0xff]
  %v127 = vld [vmem:[%s3 + $0x1e8] sm:$0xff]
  %v128 = vld [vmem:[%s3 + $0x1f0] sm:$0xff]
  %v129 = vld [vmem:[%s3 + $0x1f8] sm:$0xff]
  %v130 = vld [vmem:[%s4] sm:$0xf]
  %v132 = vlaneseq
  %v133 = vshrl.u32 %v132, 7
  %v134 = vsub.s32 0, %v133
  %v135 = vrot.slane %v130, %v134
  %v136 = vlaneseq
  %v137 = vshrl.u32 %v136, 7
  %v138 = vsub.s32 1, %v137
  %v139 = vrot.slane %v130, %v138
  %v140 = vlaneseq
  %v141 = vshrl.u32 %v140, 7
  %v142 = vsub.s32 2, %v141
  %v143 = vrot.slane %v130, %v142
  %v144 = vlaneseq
  %v145 = vshrl.u32 %v144, 7
  %v146 = vsub.s32 3, %v145
  %v147 = vrot.slane %v130, %v146
  %v216 = vunpack.c.l.b16 %v66
  %v217 = vunpack.c.h.b16 %v66
  %v218 = vunpack.c.l.b16 %v67
  %v219 = vunpack.c.h.b16 %v67
  %v220 = vunpack.c.l.b16 %v68
  %v221 = vunpack.c.h.b16 %v68
  %v222 = vunpack.c.l.b16 %v69
  %v223 = vunpack.c.h.b16 %v69
  %v224 = vunpack.c.l.b16 %v70
  %v225 = vunpack.c.h.b16 %v70
  %v226 = vunpack.c.l.b16 %v71
  %v227 = vunpack.c.h.b16 %v71
  %v228 = vunpack.c.l.b16 %v72
  %v229 = vunpack.c.h.b16 %v72
  %v230 = vunpack.c.l.b16 %v73
  %v231 = vunpack.c.h.b16 %v73
  %v232 = vunpack.c.l.b16 %v74
  %v233 = vunpack.c.h.b16 %v74
  %v234 = vunpack.c.l.b16 %v75
  %v235 = vunpack.c.h.b16 %v75
  %v236 = vunpack.c.l.b16 %v76
  %v237 = vunpack.c.h.b16 %v76
  %v238 = vunpack.c.l.b16 %v77
  %v239 = vunpack.c.h.b16 %v77
  %v240 = vunpack.c.l.b16 %v78
  %v241 = vunpack.c.h.b16 %v78
  %v242 = vunpack.c.l.b16 %v79
  %v243 = vunpack.c.h.b16 %v79
  %v244 = vunpack.c.l.b16 %v80
  %v245 = vunpack.c.h.b16 %v80
  %v246 = vunpack.c.l.b16 %v81
  %v247 = vunpack.c.h.b16 %v81
  %v248 = vunpack.c.l.b16 %v82
  %v249 = vunpack.c.h.b16 %v82
  %v250 = vunpack.c.l.b16 %v83
  %v251 = vunpack.c.h.b16 %v83
  %v252 = vunpack.c.l.b16 %v84
  %v253 = vunpack.c.h.b16 %v84
  %v254 = vunpack.c.l.b16 %v85
  %v255 = vunpack.c.h.b16 %v85
  %v256 = vunpack.c.l.b16 %v86
  %v257 = vunpack.c.h.b16 %v86
  %v258 = vunpack.c.l.b16 %v87
  %v259 = vunpack.c.h.b16 %v87
  %v260 = vunpack.c.l.b16 %v88
  %v261 = vunpack.c.h.b16 %v88
  %v262 = vunpack.c.l.b16 %v89
  %v263 = vunpack.c.h.b16 %v89
  %v264 = vunpack.c.l.b16 %v90
  %v265 = vunpack.c.h.b16 %v90
  %v266 = vunpack.c.l.b16 %v91
  %v267 = vunpack.c.h.b16 %v91
  %v268 = vunpack.c.l.b16 %v92
  %v269 = vunpack.c.h.b16 %v92
  %v270 = vunpack.c.l.b16 %v93
  %v271 = vunpack.c.h.b16 %v93
  %v272 = vunpack.c.l.b16 %v94
  %v273 = vunpack.c.h.b16 %v94
  %v274 = vunpack.c.l.b16 %v95
  %v275 = vunpack.c.h.b16 %v95
  %v276 = vunpack.c.l.b16 %v96
  %v277 = vunpack.c.h.b16 %v96
  %v278 = vunpack.c.l.b16 %v97
  %v279 = vunpack.c.h.b16 %v97
  %v280 = vunpack.c.l.b16 %v98
  %v281 = vunpack.c.h.b16 %v98
  %v282 = vunpack.c.l.b16 %v99
  %v283 = vunpack.c.h.b16 %v99
  %v284 = vunpack.c.l.b16 %v100
  %v285 = vunpack.c.h.b16 %v100
  %v286 = vunpack.c.l.b16 %v101
  %v287 = vunpack.c.h.b16 %v101
  %v288 = vunpack.c.l.b16 %v102
  %v289 = vunpack.c.h.b16 %v102
  %v290 = vunpack.c.l.b16 %v103
  %v291 = vunpack.c.h.b16 %v103
  %v292 = vunpack.c.l.b16 %v104
  %v293 = vunpack.c.h.b16 %v104
  %v294 = vunpack.c.l.b16 %v105
  %v295 = vunpack.c.h.b16 %v105
  %v296 = vunpack.c.l.b16 %v106
  %v297 = vunpack.c.h.b16 %v106
  %v298 = vunpack.c.l.b16 %v107
  %v299 = vunpack.c.h.b16 %v107
  %v300 = vunpack.c.l.b16 %v108
  %v301 = vunpack.c.h.b16 %v108
  %v302 = vunpack.c.l.b16 %v109
  %v303 = vunpack.c.h.b16 %v109
  %v304 = vunpack.c.l.b16 %v110
  %v305 = vunpack.c.h.b16 %v110
  %v306 = vunpack.c.l.b16 %v111
  %v307 = vunpack.c.h.b16 %v111
  %v308 = vunpack.c.l.b16 %v112
  %v309 = vunpack.c.h.b16 %v112
  %v310 = vunpack.c.l.b16 %v113
  %v311 = vunpack.c.h.b16 %v113
  %v312 = vunpack.c.l.b16 %v114
  %v313 = vunpack.c.h.b16 %v114
  %v314 = vunpack.c.l.b16 %v115
  %v315 = vunpack.c.h.b16 %v115
  %v316 = vunpack.c.l.b16 %v116
  %v317 = vunpack.c.h.b16 %v116
  %v318 = vunpack.c.l.b16 %v117
  %v319 = vunpack.c.h.b16 %v117
  %v320 = vunpack.c.l.b16 %v118
  %v321 = vunpack.c.h.b16 %v118
  %v322 = vunpack.c.l.b16 %v119
  %v323 = vunpack.c.h.b16 %v119
  %v324 = vunpack.c.l.b16 %v120
  %v325 = vunpack.c.h.b16 %v120
  %v326 = vunpack.c.l.b16 %v121
  %v327 = vunpack.c.h.b16 %v121
  %v328 = vunpack.c.l.b16 %v122
  %v329 = vunpack.c.h.b16 %v122
  %v330 = vunpack.c.l.b16 %v123
  %v331 = vunpack.c.h.b16 %v123
  %v332 = vunpack.c.l.b16 %v124
  %v333 = vunpack.c.h.b16 %v124
  %v334 = vunpack.c.l.b16 %v125
  %v335 = vunpack.c.h.b16 %v125
  %v336 = vunpack.c.l.b16 %v126
  %v337 = vunpack.c.h.b16 %v126
  %v338 = vunpack.c.l.b16 %v127
  %v339 = vunpack.c.h.b16 %v127
  %v340 = vunpack.c.l.b16 %v128
  %v341 = vunpack.c.h.b16 %v128
  %v342 = vunpack.c.l.b16 %v129
  %v343 = vunpack.c.h.b16 %v129
  %v344 = vpack.c.b16 %v220, %v216
  %v345 = vpack.c.b16 %v221, %v217
  %v346 = vpack.c.b16 %v222, %v218
  %v347 = vpack.c.b16 %v223, %v219
  %v348 = vpack.c.b16 %v228, %v224
  %v349 = vpack.c.b16 %v229, %v225
  %v350 = vpack.c.b16 %v230, %v226
  %v351 = vpack.c.b16 %v231, %v227
  %v352 = vpack.c.b16 %v236, %v232
  %v353 = vpack.c.b16 %v237, %v233
  %v354 = vpack.c.b16 %v238, %v234
  %v355 = vpack.c.b16 %v239, %v235
  %v356 = vpack.c.b16 %v244, %v240
  %v357 = vpack.c.b16 %v245, %v241
  %v358 = vpack.c.b16 %v246, %v242
  %v359 = vpack.c.b16 %v247, %v243
  %v360 = vpack.c.b16 %v252, %v248
  %v361 = vpack.c.b16 %v253, %v249
  %v362 = vpack.c.b16 %v254, %v250
  %v363 = vpack.c.b16 %v255, %v251
  %v364 = vpack.c.b16 %v260, %v256
  %v365 = vpack.c.b16 %v261, %v257
  %v366 = vpack.c.b16 %v262, %v258
  %v367 = vpack.c.b16 %v263, %v259
  %v368 = vpack.c.b16 %v268, %v264
  %v369 = vpack.c.b16 %v269, %v265
  %v370 = vpack.c.b16 %v270, %v266
  %v371 = vpack.c.b16 %v271, %v267
  %v372 = vpack.c.b16 %v276, %v272
  %v373 = vpack.c.b16 %v277, %v273
  %v374 = vpack.c.b16 %v278, %v274
  %v375 = vpack.c.b16 %v279, %v275
  %v376 = vpack.c.b16 %v284, %v280
  %v377 = vpack.c.b16 %v285, %v281
  %v378 = vpack.c.b16 %v286, %v282
  %v379 = vpack.c.b16 %v287, %v283
  %v380 = vpack.c.b16 %v292, %v288
  %v381 = vpack.c.b16 %v293, %v289
  %v382 = vpack.c.b16 %v294, %v290
  %v383 = vpack.c.b16 %v295, %v291
  %v384 = vpack.c.b16 %v300, %v296
  %v385 = vpack.c.b16 %v301, %v297
  %v386 = vpack.c.b16 %v302, %v298
  %v387 = vpack.c.b16 %v303, %v299
  %v388 = vpack.c.b16 %v308, %v304
  %v389 = vpack.c.b16 %v309, %v305
  %v390 = vpack.c.b16 %v310, %v306
  %v391 = vpack.c.b16 %v311, %v307
  %v392 = vpack.c.b16 %v316, %v312
  %v393 = vpack.c.b16 %v317, %v313
  %v394 = vpack.c.b16 %v318, %v314
  %v395 = vpack.c.b16 %v319, %v315
  %v396 = vpack.c.b16 %v324, %v320
  %v397 = vpack.c.b16 %v325, %v321
  %v398 = vpack.c.b16 %v326, %v322
  %v399 = vpack.c.b16 %v327, %v323
  %v400 = vpack.c.b16 %v332, %v328
  %v401 = vpack.c.b16 %v333, %v329
  %v402 = vpack.c.b16 %v334, %v330
  %v403 = vpack.c.b16 %v335, %v331
  %v404 = vpack.c.b16 %v340, %v336
  %v405 = vpack.c.b16 %v341, %v337
  %v406 = vpack.c.b16 %v342, %v338
  %v407 = vpack.c.b16 %v343, %v339
  %472 = vmatprep.subr.bf16.mxu0 %v373
  %473 = vmatpush1.bf16.msra.mxu0 %v372
  %474 = vmatprep.subr.bf16.mxu0 %v369
  %475 = vmatpush1.bf16.msra.mxu0 %v368
  %476 = vmatprep.subr.bf16.mxu0 %v365
  %477 = vmatpush1.bf16.msra.mxu0 %v364
  %478 = vmatprep.subr.bf16.mxu0 %v361
  %479 = vmatpush1.bf16.msra.mxu0 %v360
  %480 = vmatprep.subr.bf16.mxu0 %v357
  %481 = vmatpush1.bf16.msra.mxu0 %v356
  %482 = vmatprep.subr.bf16.mxu0 %v353
  %483 = vmatpush1.bf16.msra.mxu0 %v352
  %484 = vmatprep.subr.bf16.mxu0 %v349
  %485 = vmatpush1.bf16.msra.mxu0 %v348
  %486 = vmatprep.subr.bf16.mxu0 %v345
  %487 = vmatpush1.bf16.msra.mxu0 %v344
  %488 = vmatprep.subr.bf16.mxu0 %v405
  %489 = vmatpush2.bf16.msra.mxu0 %v404
  %490 = vmatprep.subr.bf16.mxu0 %v401
  %491 = vmatpush2.bf16.msra.mxu0 %v400
  %492 = vmatprep.subr.bf16.mxu0 %v397
  %493 = vmatpush2.bf16.msra.mxu0 %v396
  %494 = vmatprep.subr.bf16.mxu0 %v393
  %495 = vmatpush2.bf16.msra.mxu0 %v392
  %496 = vmatprep.subr.bf16.mxu0 %v389
  %497 = vmatpush2.bf16.msra.mxu0 %v388
  %498 = vmatprep.subr.bf16.mxu0 %v385
  %499 = vmatpush2.bf16.msra.mxu0 %v384
  %500 = vmatprep.subr.bf16.mxu0 %v381
  %501 = vmatpush2.bf16.msra.mxu0 %v380
  %502 = vmatprep.subr.bf16.mxu0 %v377
  %503 = vmatpush2.bf16.msra.mxu0 %v376
  %504 = vmatprep.mubr.bf16.mxu0 %v65
  %505 = vmatmul.mubr.bf16.gmra.mxu0 %v64
  %v506 = vpop.f32.mrf.mxu0
  %v507 = vadd.f32 %v135, %v506
  %v508 = vpop.f32.mrf.mxu0
  %v509 = vadd.f32 %v139, %v508
  %v510 = vpop.f32.mrf.mxu0
  %v511 = vpop.f32.mrf.mxu0
  %512 = vdwg.mxu0
  %513 = vmatprep.subr.bf16.mxu0 %v375
  %514 = vmatpush1.bf16.msra.mxu0 %v374
  %515 = vmatprep.subr.bf16.mxu0 %v371
  %516 = vmatpush1.bf16.msra.mxu0 %v370
  %517 = vmatprep.subr.bf16.mxu0 %v367
  %518 = vmatpush1.bf16.msra.mxu0 %v366
  %519 = vmatprep.subr.bf16.mxu0 %v363
  %520 = vmatpush1.bf16.msra.mxu0 %v362
  %521 = vmatprep.subr.bf16.mxu0 %v359
  %522 = vmatpush1.bf16.msra.mxu0 %v358
  %523 = vmatprep.subr.bf16.mxu0 %v355
  %524 = vmatpush1.bf16.msra.mxu0 %v354
  %525 = vmatprep.subr.bf16.mxu0 %v351
  %526 = vmatpush1.bf16.msra.mxu0 %v350
  %527 = vmatprep.subr.bf16.mxu0 %v347
  %528 = vmatpush1.bf16.msra.mxu0 %v346
  %529 = vmatprep.subr.bf16.mxu0 %v407
  %530 = vmatpush2.bf16.msra.mxu0 %v406
  %531 = vmatprep.subr.bf16.mxu0 %v403
  %532 = vmatpush2.bf16.msra.mxu0 %v402
  %533 = vmatprep.subr.bf16.mxu0 %v399
  %534 = vmatpush2.bf16.msra.mxu0 %v398
  %535 = vmatprep.subr.bf16.mxu0 %v395
  %536 = vmatpush2.bf16.msra.mxu0 %v394
  %537 = vmatprep.subr.bf16.mxu0 %v391
  %538 = vmatpush2.bf16.msra.mxu0 %v390
  %539 = vmatprep.subr.bf16.mxu0 %v387
  %540 = vmatpush2.bf16.msra.mxu0 %v386
  %541 = vmatprep.subr.bf16.mxu0 %v383
  %542 = vmatpush2.bf16.msra.mxu0 %v382
  %543 = vmatprep.subr.bf16.mxu0 %v379
  %544 = vmatpush2.bf16.msra.mxu0 %v378
  %545 = vmatprep.mubr.bf16.mxu0 %v65
  %546 = vmatmul.mubr.bf16.gmra.mxu0 %v64
  %v547 = vpop.f32.mrf.mxu0
  %v548 = vadd.f32 %v143, %v547
  %v549 = vpop.f32.mrf.mxu0
  %v550 = vadd.f32 %v147, %v549
  %v551 = vpop.f32.mrf.mxu0
  %v552 = vpop.f32.mrf.mxu0
  %553 = vdwg.mxu0
  %v554 = vld [vmem:[%s5] sm:$0xff]
  %v555 = vld [vmem:[%s6] sm:$0xff]
  %v556 = vmul.f32 %v507, %v554
  %557 = vrot.lane.b32.xlu0 %v507, 64
  %v558 = vpop.permute.xlu0 %557
  %v559 = vmul.f32 %v558, %v555
  %v560 = vadd.f32 %v556, %v559
  %v561 = vmul.f32 %v509, %v554
  %562 = vrot.lane.b32.xlu0 %v509, 64
  %v563 = vpop.permute.xlu0 %562
  %v564 = vmul.f32 %v563, %v555
  %v565 = vadd.f32 %v561, %v564
  %v566 = vmul.f32 %v548, %v554
  %567 = vrot.lane.b32.xlu0 %v548, 64
  %v568 = vpop.permute.xlu0 %567
  %v569 = vmul.f32 %v568, %v555
  %v570 = vadd.f32 %v566, %v569
  %v571 = vmul.f32 %v560, 0.088388346
  %v572 = vmul.f32 %v565, 0.088388346
  %v573 = vpack.c.bf16 %v571, %v571
  %v574 = vpack.c.bf16 %v572, %v572
  %v577 = vunpack.c.l.b16 %v573
  %v578 = vunpack.c.l.b16 %v574
  %v579 = vpack.c.b16 %v578, %v577
  %581 = vst [vmem:[%s7] sm:$0xff] %v579
  %v582 = vpack.c.bf16 %v570, %v570
  %583 = vst [vmem:[%s8] sm:$0xf] %v582
  %v584 = vpack.c.bf16 %v550, %v550
  %585 = vst [vmem:[%s9] sm:$0xf] %v584
  // Predicated region
  $region30: #{qwen2_moe_forward.11} parent=0 // pred_check
    _
  $region31: #{qwen2_moe_forward.11} parent=0 // pred_check_branch
    %587 = sbr.rel (0) target = $region33
  $region32: #{qwen2_moe_forward.11} parent=0 // pred_region
    _
  $region33: #{qwen2_moe_forward.11} parent=0 // pred_fallthru
    _
  // Predicated region
  $region34: #{qwen2_moe_forward.11} parent=0 // pred_check
    _
  $region35: #{qwen2_moe_forward.11} parent=0 // pred_check_branch
    %589 = sbr.rel (0) target = $region37
  $region36: #{qwen2_moe_forward.11} parent=0 // pred_region
    _
  $region37: #{qwen2_moe_forward.11} parent=0 // pred_fallthru
    _
  // Predicated region
  $region38: #{qwen2_moe_forward.11} parent=0 // pred_check
    _
  $region39: #{qwen2_moe_forward.11} parent=0 // pred_check_branch
    %591 = sbr.rel (0) target = $region41
  $region40: #{qwen2_moe_forward.11} parent=0 // pred_region
    _
  $region41: #{qwen2_moe_forward.11} parent=0 // pred_fallthru
    _
  // Predicated region
  $region42: #{qwen2_moe_forward.11} parent=0 // pred_check
    _
  $region43: #{qwen2_moe_forward.11} parent=0 // pred_check_branch
    %593 = sbr.rel (0) target = $region45
  $region44: #{qwen2_moe_forward.11} parent=0 // pred_region
    _
  $region45: #{qwen2_moe_forward.11} parent=0 // pred_fallthru
    _
  // Predicated region
  $region46: #{qwen2_moe_forward.11} parent=0 // pred_check
    _
  $region47: #{qwen2_moe_forward.11} parent=0 // pred_check_branch
    %595 = sbr.rel (0) target = $region49
  $region48: #{qwen2_moe_forward.11} parent=0 // pred_region
    _
  $region49: #{qwen2_moe_forward.11} parent=0 // pred_fallthru
    _
  // Predicated region
  $region50: #{qwen2_moe_forward.11} parent=0 // pred_check
    _
  $region51: #{qwen2_moe_forward.11} parent=0 // pred_check_branch
    %597 = sbr.rel (0) target = $region53
  $region52: #{qwen2_moe_forward.11} parent=0 // pred_region
    _
  $region53: #{qwen2_moe_forward.11} parent=0 // pred_fallthru
    _
  // Predicated region
  $region54: #{qwen2_moe_forward.11} parent=0 // pred_check
    _
  $region55: #{qwen2_moe_forward.11} parent=0 // pred_check_branch
    %599 = sbr.rel (0) target = $region57
  $region56: #{qwen2_moe_forward.11} parent=0 // pred_region
    _
  $region57: #{qwen2_moe_forward.11} parent=0 // pred_fallthru
    _
  // Predicated region
  $region58: #{qwen2_moe_forward.11} parent=0 // pred_check
    _
  $region59: #{qwen2_moe_forward.11} parent=0 // pred_check_branch
    %601 = sbr.rel (0) target = $region61
  $region60: #{qwen2_moe_forward.11} parent=0 // pred_region
    _
  $region61: #{qwen2_moe_forward.11} parent=0 // pred_fallthru
    _

// kernel: qwen2_moe_forward.10
$region0: #{qwen2_moe_forward.10}
  #allocation0 [shape = 'u32[]', space=smem, size = 0x4, offset = 0x4, fixed_abs, tag = 'smem constant byte address 0x4 - core index']
  #allocation1 [shape = 'u32[144,128]{1,0:T(1,128)}', space=vmem, size = 0x12000, scoped, tag = 'internal scratch']
  %s0 = inlined_call_operand.vmem [shape: bf16[8,256], index: 0, kind: input, shape index: {}]
  %s1 = inlined_call_operand.vmem [shape: f32[8,256], index: 1, kind: input, shape index: {}]
  %s2 = inlined_call_operand.vmem [shape: f32[1,256], index: 2, kind: input, shape index: {}]
  %s3 = inlined_call_operand.vmem [shape: bf16[256,512], index: 3, kind: input, shape index: {}]
  %s4 = inlined_call_operand.vmem [shape: bf16[256,256], index: 4, kind: input, shape index: {}]
  %s5 = inlined_call_operand.vmem [shape: bf16[8,256], index: 5, kind: output, shape index: {0}]
  %s6 = inlined_call_operand.vmem [shape: f32[8,256], index: 6, kind: output, shape index: {1}]
  %7 = xla_tuple %s5, %s6
  %s8 = sld [smem:[#allocation0]]
  $region38: #{qwen2_moe_forward.10} parent=0
    _
  %s10 = ssub.s32 1, %s8
  %s11 = scalar_select 0, %s10, %s8
  // Predicated region
  $region2: #{qwen2_moe_forward.10} parent=0 // pred_check
    _
  $region3: #{qwen2_moe_forward.10} parent=0 // pred_check_branch
    %13 = sbr.rel (0) target = $region5
  $region4: #{qwen2_moe_forward.10} parent=0 // pred_region
    _
  $region5: #{qwen2_moe_forward.10} parent=0 // pred_fallthru
    _
  // Predicated region
  $region6: #{qwen2_moe_forward.10} parent=0 // pred_check
    _
  $region7: #{qwen2_moe_forward.10} parent=0 // pred_check_branch
    %15 = sbr.rel (0) target = $region9
  $region8: #{qwen2_moe_forward.10} parent=0 // pred_region
    _
  $region9: #{qwen2_moe_forward.10} parent=0 // pred_fallthru
    _
  // Predicated region
  $region10: #{qwen2_moe_forward.10} parent=0 // pred_check
    _
  $region11: #{qwen2_moe_forward.10} parent=0 // pred_check_branch
    %17 = sbr.rel (0) target = $region13
  $region12: #{qwen2_moe_forward.10} parent=0 // pred_region
    _
  $region13: #{qwen2_moe_forward.10} parent=0 // pred_fallthru
    _
  // Predicated region
  $region14: #{qwen2_moe_forward.10} parent=0 // pred_check
    _
  $region15: #{qwen2_moe_forward.10} parent=0 // pred_check_branch
    %19 = sbr.rel (0) target = $region17
  $region16: #{qwen2_moe_forward.10} parent=0 // pred_region
    _
  $region17: #{qwen2_moe_forward.10} parent=0 // pred_fallthru
    _
  // Predicated region
  $region18: #{qwen2_moe_forward.10} parent=0 // pred_check
    _
  $region19: #{qwen2_moe_forward.10} parent=0 // pred_check_branch
    %21 = sbr.rel (0) target = $region21
  $region20: #{qwen2_moe_forward.10} parent=0 // pred_region
    _
  $region21: #{qwen2_moe_forward.10} parent=0 // pred_fallthru
    _
  %v22 = vld [vmem:[%s0] sm:$0xff]
  %v23 = vunpack.c.l.bf16 %v22
  %v24 = vunpack.c.h.bf16 %v22
  %v25 = vld [vmem:[%s1] sm:$0xff]
  %v26 = vld [vmem:[%s1 + $0x8] sm:$0xff]
  %v27 = vadd.f32 %v23, %v25
  %v28 = vadd.f32 %v24, %v26
  %29 = vst [vmem:[%s6] sm:$0xff] %v27
  %30 = vst [vmem:[%s6 + $0x8] sm:$0xff] %v28
  %v31 = vld [vmem:[%s2] sm:$0x3]
  %v32 = vmul.f32 %v27, %v27
  %v33 = vmul.f32 %v28, %v28
  %v34 = vadd.f32 %v32, %v33
  %35 = vadd.xlane.f32.xlu0 %v34
  %v36 = vpop.xlane.xlu0 %35
  %v37 = vrcp.pop 256.0
  %v38 = vmul.f32 %v36, %v37
  %v39 = vadd.f32 %v38, 1e-06
  %v40 = vrsqrt.pop %v39
  %v41 = vmul.f32 %v27, %v40
  %v42 = vmul.f32 %v28, %v40
  %v44 = vlaneseq
  %v45 = vshrl.u32 %v44, 7
  %v46 = vsub.s32 0, %v45
  %v47 = vrot.slane %v31, %v46
  %v48 = vlaneseq
  %v49 = vshrl.u32 %v48, 7
  %v50 = vsub.s32 1, %v49
  %v51 = vrot.slane %v31, %v50
  %v54 = vmul.f32 %v41, %v47
  %v55 = vmul.f32 %v42, %v51
  %v56 = vpack.c.bf16 %v54, %v54
  %v57 = vpack.c.bf16 %v55, %v55
  %v58 = vld [vmem:[%s3] sm:$0xff]
  %v59 = vld [vmem:[%s3 + $0x8] sm:$0xff]
  %v60 = vld [vmem:[%s3 + $0x10] sm:$0xff]
  %v61 = vld [vmem:[%s3 + $0x18] sm:$0xff]
  %v62 = vld [vmem:[%s3 + $0x20] sm:$0xff]
  %v63 = vld [vmem:[%s3 + $0x28] sm:$0xff]
  %v64 = vld [vmem:[%s3 + $0x30] sm:$0xff]
  %v65 = vld [vmem:[%s3 + $0x38] sm:$0xff]
  %v66 = vld [vmem:[%s3 + $0x40] sm:$0xff]
  %v67 = vld [vmem:[%s3 + $0x48] sm:$0xff]
  %v68 = vld [vmem:[%s3 + $0x50] sm:$0xff]
  %v69 = vld [vmem:[%s3 + $0x58] sm:$0xff]
  %v70 = vld [vmem:[%s3 + $0x60] sm:$0xff]
  %v71 = vld [vmem:[%s3 + $0x68] sm:$0xff]
  %v72 = vld [vmem:[%s3 + $0x70] sm:$0xff]
  %v73 = vld [vmem:[%s3 + $0x78] sm:$0xff]
  %v74 = vld [vmem:[%s3 + $0x80] sm:$0xff]
  %v75 = vld [vmem:[%s3 + $0x88] sm:$0xff]
  %v76 = vld [vmem:[%s3 + $0x90] sm:$0xff]
  %v77 = vld [vmem:[%s3 + $0x98] sm:$0xff]
  %v78 = vld [vmem:[%s3 + $0xa0] sm:$0xff]
  %v79 = vld [vmem:[%s3 + $0xa8] sm:$0xff]
  %v80 = vld [vmem:[%s3 + $0xb0] sm:$0xff]
  %v81 = vld [vmem:[%s3 + $0xb8] sm:$0xff]
  %v82 = vld [vmem:[%s3 + $0xc0] sm:$0xff]
  %v83 = vld [vmem:[%s3 + $0xc8] sm:$0xff]
  %v84 = vld [vmem:[%s3 + $0xd0] sm:$0xff]
  %v85 = vld [vmem:[%s3 + $0xd8] sm:$0xff]
  %v86 = vld [vmem:[%s3 + $0xe0] sm:$0xff]
  %v87 = vld [vmem:[%s3 + $0xe8] sm:$0xff]
  %v88 = vld [vmem:[%s3 + $0xf0] sm:$0xff]
  %v89 = vld [vmem:[%s3 + $0xf8] sm:$0xff]
  %v90 = vld [vmem:[%s3 + $0x100] sm:$0xff]
  %v91 = vld [vmem:[%s3 + $0x108] sm:$0xff]
  %v92 = vld [vmem:[%s3 + $0x110] sm:$0xff]
  %v93 = vld [vmem:[%s3 + $0x118] sm:$0xff]
  %v94 = vld [vmem:[%s3 + $0x120] sm:$0xff]
  %v95 = vld [vmem:[%s3 + $0x128] sm:$0xff]
  %v96 = vld [vmem:[%s3 + $0x130] sm:$0xff]
  %v97 = vld [vmem:[%s3 + $0x138] sm:$0xff]
  %v98 = vld [vmem:[%s3 + $0x140] sm:$0xff]
  %v99 = vld [vmem:[%s3 + $0x148] sm:$0xff]
  %v100 = vld [vmem:[%s3 + $0x150] sm:$0xff]
  %v101 = vld [vmem:[%s3 + $0x158] sm:$0xff]
  %v102 = vld [vmem:[%s3 + $0x160] sm:$0xff]
  %v103 = vld [vmem:[%s3 + $0x168] sm:$0xff]
  %v104 = vld [vmem:[%s3 + $0x170] sm:$0xff]
  %v105 = vld [vmem:[%s3 + $0x178] sm:$0xff]
  %v106 = vld [vmem:[%s3 + $0x180] sm:$0xff]
  %v107 = vld [vmem:[%s3 + $0x188] sm:$0xff]
  %v108 = vld [vmem:[%s3 + $0x190] sm:$0xff]
  %v109 = vld [vmem:[%s3 + $0x198] sm:$0xff]
  %v110 = vld [vmem:[%s3 + $0x1a0] sm:$0xff]
  %v111 = vld [vmem:[%s3 + $0x1a8] sm:$0xff]
  %v112 = vld [vmem:[%s3 + $0x1b0] sm:$0xff]
  %v113 = vld [vmem:[%s3 + $0x1b8] sm:$0xff]
  %v114 = vld [vmem:[%s3 + $0x1c0] sm:$0xff]
  %v115 = vld [vmem:[%s3 + $0x1c8] sm:$0xff]
  %v116 = vld [vmem:[%s3 + $0x1d0] sm:$0xff]
  %v117 = vld [vmem:[%s3 + $0x1d8] sm:$0xff]
  %v118 = vld [vmem:[%s3 + $0x1e0] sm:$0xff]
  %v119 = vld [vmem:[%s3 + $0x1e8] sm:$0xff]
  %v120 = vld [vmem:[%s3 + $0x1f0] sm:$0xff]
  %v121 = vld [vmem:[%s3 + $0x1f8] sm:$0xff]
  %v186 = vunpack.c.l.b16 %v58
  %v187 = vunpack.c.h.b16 %v58
  %v188 = vunpack.c.l.b16 %v59
  %v189 = vunpack.c.h.b16 %v59
  %v190 = vunpack.c.l.b16 %v60
  %v191 = vunpack.c.h.b16 %v60
  %v192 = vunpack.c.l.b16 %v61
  %v193 = vunpack.c.h.b16 %v61
  %v194 = vunpack.c.l.b16 %v62
  %v195 = vunpack.c.h.b16 %v62
  %v196 = vunpack.c.l.b16 %v63
  %v197 = vunpack.c.h.b16 %v63
  %v198 = vunpack.c.l.b16 %v64
  %v199 = vunpack.c.h.b16 %v64
  %v200 = vunpack.c.l.b16 %v65
  %v201 = vunpack.c.h.b16 %v65
  %v202 = vunpack.c.l.b16 %v66
  %v203 = vunpack.c.h.b16 %v66
  %v204 = vunpack.c.l.b16 %v67
  %v205 = vunpack.c.h.b16 %v67
  %v206 = vunpack.c.l.b16 %v68
  %v207 = vunpack.c.h.b16 %v68
  %v208 = vunpack.c.l.b16 %v69
  %v209 = vunpack.c.h.b16 %v69
  %v210 = vunpack.c.l.b16 %v70
  %v211 = vunpack.c.h.b16 %v70
  %v212 = vunpack.c.l.b16 %v71
  %v213 = vunpack.c.h.b16 %v71
  %v214 = vunpack.c.l.b16 %v72
  %v215 = vunpack.c.h.b16 %v72
  %v216 = vunpack.c.l.b16 %v73
  %v217 = vunpack.c.h.b16 %v73
  %v218 = vunpack.c.l.b16 %v74
  %v219 = vunpack.c.h.b16 %v74
  %v220 = vunpack.c.l.b16 %v75
  %v221 = vunpack.c.h.b16 %v75
  %v222 = vunpack.c.l.b16 %v76
  %v223 = vunpack.c.h.b16 %v76
  %v224 = vunpack.c.l.b16 %v77
  %v225 = vunpack.c.h.b16 %v77
  %v226 = vunpack.c.l.b16 %v78
  %v227 = vunpack.c.h.b16 %v78
  %v228 = vunpack.c.l.b16 %v79
  %v229 = vunpack.c.h.b16 %v79
  %v230 = vunpack.c.l.b16 %v80
  %v231 = vunpack.c.h.b16 %v80
  %v232 = vunpack.c.l.b16 %v81
  %v233 = vunpack.c.h.b16 %v81
  %v234 = vunpack.c.l.b16 %v82
  %v235 = vunpack.c.h.b16 %v82
  %v236 = vunpack.c.l.b16 %v83
  %v237 = vunpack.c.h.b16 %v83
  %v238 = vunpack.c.l.b16 %v84
  %v239 = vunpack.c.h.b16 %v84
  %v240 = vunpack.c.l.b16 %v85
  %v241 = vunpack.c.h.b16 %v85
  %v242 = vunpack.c.l.b16 %v86
  %v243 = vunpack.c.h.b16 %v86
  %v244 = vunpack.c.l.b16 %v87
  %v245 = vunpack.c.h.b16 %v87
  %v246 = vunpack.c.l.b16 %v88
  %v247 = vunpack.c.h.b16 %v88
  %v248 = vunpack.c.l.b16 %v89
  %v249 = vunpack.c.h.b16 %v89
  %v250 = vunpack.c.l.b16 %v90
  %v251 = vunpack.c.h.b16 %v90
  %v252 = vunpack.c.l.b16 %v91
  %v253 = vunpack.c.h.b16 %v91
  %v254 = vunpack.c.l.b16 %v92
  %v255 = vunpack.c.h.b16 %v92
  %v256 = vunpack.c.l.b16 %v93
  %v257 = vunpack.c.h.b16 %v93
  %v258 = vunpack.c.l.b16 %v94
  %v259 = vunpack.c.h.b16 %v94
  %v260 = vunpack.c.l.b16 %v95
  %v261 = vunpack.c.h.b16 %v95
  %v262 = vunpack.c.l.b16 %v96
  %v263 = vunpack.c.h.b16 %v96
  %v264 = vunpack.c.l.b16 %v97
  %v265 = vunpack.c.h.b16 %v97
  %v266 = vunpack.c.l.b16 %v98
  %v267 = vunpack.c.h.b16 %v98
  %v268 = vunpack.c.l.b16 %v99
  %v269 = vunpack.c.h.b16 %v99
  %v270 = vunpack.c.l.b16 %v100
  %v271 = vunpack.c.h.b16 %v100
  %v272 = vunpack.c.l.b16 %v101
  %v273 = vunpack.c.h.b16 %v101
  %v274 = vunpack.c.l.b16 %v102
  %v275 = vunpack.c.h.b16 %v102
  %v276 = vunpack.c.l.b16 %v103
  %v277 = vunpack.c.h.b16 %v103
  %v278 = vunpack.c.l.b16 %v104
  %v279 = vunpack.c.h.b16 %v104
  %v280 = vunpack.c.l.b16 %v105
  %v281 = vunpack.c.h.b16 %v105
  %v282 = vunpack.c.l.b16 %v106
  %v283 = vunpack.c.h.b16 %v106
  %v284 = vunpack.c.l.b16 %v107
  %v285 = vunpack.c.h.b16 %v107
  %v286 = vunpack.c.l.b16 %v108
  %v287 = vunpack.c.h.b16 %v108
  %v288 = vunpack.c.l.b16 %v109
  %v289 = vunpack.c.h.b16 %v109
  %v290 = vunpack.c.l.b16 %v110
  %v291 = vunpack.c.h.b16 %v110
  %v292 = vunpack.c.l.b16 %v111
  %v293 = vunpack.c.h.b16 %v111
  %v294 = vunpack.c.l.b16 %v112
  %v295 = vunpack.c.h.b16 %v112
  %v296 = vunpack.c.l.b16 %v113
  %v297 = vunpack.c.h.b16 %v113
  %v298 = vunpack.c.l.b16 %v114
  %v299 = vunpack.c.h.b16 %v114
  %v300 = vunpack.c.l.b16 %v115
  %v301 = vunpack.c.h.b16 %v115
  %v302 = vunpack.c.l.b16 %v116
  %v303 = vunpack.c.h.b16 %v116
  %v304 = vunpack.c.l.b16 %v117
  %v305 = vunpack.c.h.b16 %v117
  %v306 = vunpack.c.l.b16 %v118
  %v307 = vunpack.c.h.b16 %v118
  %v308 = vunpack.c.l.b16 %v119
  %v309 = vunpack.c.h.b16 %v119
  %v310 = vunpack.c.l.b16 %v120
  %v311 = vunpack.c.h.b16 %v120
  %v312 = vunpack.c.l.b16 %v121
  %v313 = vunpack.c.h.b16 %v121
  %v314 = vpack.c.b16 %v190, %v186
  %v315 = vpack.c.b16 %v191, %v187
  %v316 = vpack.c.b16 %v192, %v188
  %v317 = vpack.c.b16 %v193, %v189
  %v318 = vpack.c.b16 %v198, %v194
  %v319 = vpack.c.b16 %v199, %v195
  %v320 = vpack.c.b16 %v200, %v196
  %v321 = vpack.c.b16 %v201, %v197
  %v322 = vpack.c.b16 %v206, %v202
  %v323 = vpack.c.b16 %v207, %v203
  %v324 = vpack.c.b16 %v208, %v204
  %v325 = vpack.c.b16 %v209, %v205
  %v326 = vpack.c.b16 %v214, %v210
  %v327 = vpack.c.b16 %v215, %v211
  %v328 = vpack.c.b16 %v216, %v212
  %v329 = vpack.c.b16 %v217, %v213
  %v330 = vpack.c.b16 %v222, %v218
  %v331 = vpack.c.b16 %v223, %v219
  %v332 = vpack.c.b16 %v224, %v220
  %v333 = vpack.c.b16 %v225, %v221
  %v334 = vpack.c.b16 %v230, %v226
  %v335 = vpack.c.b16 %v231, %v227
  %v336 = vpack.c.b16 %v232, %v228
  %v337 = vpack.c.b16 %v233, %v229
  %v338 = vpack.c.b16 %v238, %v234
  %v339 = vpack.c.b16 %v239, %v235
  %v340 = vpack.c.b16 %v240, %v236
  %v341 = vpack.c.b16 %v241, %v237
  %v342 = vpack.c.b16 %v246, %v242
  %v343 = vpack.c.b16 %v247, %v243
  %v344 = vpack.c.b16 %v248, %v244
  %v345 = vpack.c.b16 %v249, %v245
  %v346 = vpack.c.b16 %v254, %v250
  %v347 = vpack.c.b16 %v255, %v251
  %v348 = vpack.c.b16 %v256, %v252
  %v349 = vpack.c.b16 %v257, %v253
  %v350 = vpack.c.b16 %v262, %v258
  %v351 = vpack.c.b16 %v263, %v259
  %v352 = vpack.c.b16 %v264, %v260
  %v353 = vpack.c.b16 %v265, %v261
  %v354 = vpack.c.b16 %v270, %v266
  %v355 = vpack.c.b16 %v271, %v267
  %v356 = vpack.c.b16 %v272, %v268
  %v357 = vpack.c.b16 %v273, %v269
  %v358 = vpack.c.b16 %v278, %v274
  %v359 = vpack.c.b16 %v279, %v275
  %v360 = vpack.c.b16 %v280, %v276
  %v361 = vpack.c.b16 %v281, %v277
  %v362 = vpack.c.b16 %v286, %v282
  %v363 = vpack.c.b16 %v287, %v283
  %v364 = vpack.c.b16 %v288, %v284
  %v365 = vpack.c.b16 %v289, %v285
  %v366 = vpack.c.b16 %v294, %v290
  %v367 = vpack.c.b16 %v295, %v291
  %v368 = vpack.c.b16 %v296, %v292
  %v369 = vpack.c.b16 %v297, %v293
  %v370 = vpack.c.b16 %v302, %v298
  %v371 = vpack.c.b16 %v303, %v299
  %v372 = vpack.c.b16 %v304, %v300
  %v373 = vpack.c.b16 %v305, %v301
  %v374 = vpack.c.b16 %v310, %v306
  %v375 = vpack.c.b16 %v311, %v307
  %v376 = vpack.c.b16 %v312, %v308
  %v377 = vpack.c.b16 %v313, %v309
  %442 = vmatprep.subr.bf16.mxu0 %v343
  %443 = vmatpush1.bf16.msra.mxu0 %v342
  %444 = vmatprep.subr.bf16.mxu0 %v339
  %445 = vmatpush1.bf16.msra.mxu0 %v338
  %446 = vmatprep.subr.bf16.mxu0 %v335
  %447 = vmatpush1.bf16.msra.mxu0 %v334
  %448 = vmatprep.subr.bf16.mxu0 %v331
  %449 = vmatpush1.bf16.msra.mxu0 %v330
  %450 = vmatprep.subr.bf16.mxu0 %v327
  %451 = vmatpush1.bf16.msra.mxu0 %v326
  %452 = vmatprep.subr.bf16.mxu0 %v323
  %453 = vmatpush1.bf16.msra.mxu0 %v322
  %454 = vmatprep.subr.bf16.mxu0 %v319
  %455 = vmatpush1.bf16.msra.mxu0 %v318
  %456 = vmatprep.subr.bf16.mxu0 %v315
  %457 = vmatpush1.bf16.msra.mxu0 %v314
  %458 = vmatprep.subr.bf16.mxu0 %v375
  %459 = vmatpush2.bf16.msra.mxu0 %v374
  %460 = vmatprep.subr.bf16.mxu0 %v371
  %461 = vmatpush2.bf16.msra.mxu0 %v370
  %462 = vmatprep.subr.bf16.mxu0 %v367
  %463 = vmatpush2.bf16.msra.mxu0 %v366
  %464 = vmatprep.subr.bf16.mxu0 %v363
  %465 = vmatpush2.bf16.msra.mxu0 %v362
  %466 = vmatprep.subr.bf16.mxu0 %v359
  %467 = vmatpush2.bf16.msra.mxu0 %v358
  %468 = vmatprep.subr.bf16.mxu0 %v355
  %469 = vmatpush2.bf16.msra.mxu0 %v354
  %470 = vmatprep.subr.bf16.mxu0 %v351
  %471 = vmatpush2.bf16.msra.mxu0 %v350
  %472 = vmatprep.subr.bf16.mxu0 %v347
  %473 = vmatpush2.bf16.msra.mxu0 %v346
  %474 = vmatprep.mubr.bf16.mxu0 %v57
  %475 = vmatmul.mubr.bf16.gmra.mxu0 %v56
  %v476 = vpop.f32.mrf.mxu0
  %v477 = vadd.f32 0.0, %v476
  %v478 = vpop.f32.mrf.mxu0
  %v479 = vadd.f32 0.0, %v478
  %v480 = vpop.f32.mrf.mxu0
  %v481 = vpop.f32.mrf.mxu0
  %482 = vdwg.mxu0
  %483 = vmatprep.subr.bf16.mxu0 %v345
  %484 = vmatpush1.bf16.msra.mxu0 %v344
  %485 = vmatprep.subr.bf16.mxu0 %v341
  %486 = vmatpush1.bf16.msra.mxu0 %v340
  %487 = vmatprep.subr.bf16.mxu0 %v337
  %488 = vmatpush1.bf16.msra.mxu0 %v336
  %489 = vmatprep.subr.bf16.mxu0 %v333
  %490 = vmatpush1.bf16.msra.mxu0 %v332
  %491 = vmatprep.subr.bf16.mxu0 %v329
  %492 = vmatpush1.bf16.msra.mxu0 %v328
  %493 = vmatprep.subr.bf16.mxu0 %v325
  %494 = vmatpush1.bf16.msra.mxu0 %v324
  %495 = vmatprep.subr.bf16.mxu0 %v321
  %496 = vmatpush1.bf16.msra.mxu0 %v320
  %497 = vmatprep.subr.bf16.mxu0 %v317
  %498 = vmatpush1.bf16.msra.mxu0 %v316
  %499 = vmatprep.subr.bf16.mxu0 %v377
  %500 = vmatpush2.bf16.msra.mxu0 %v376
  %501 = vmatprep.subr.bf16.mxu0 %v373
  %502 = vmatpush2.bf16.msra.mxu0 %v372
  %503 = vmatprep.subr.bf16.mxu0 %v369
  %504 = vmatpush2.bf16.msra.mxu0 %v368
  %505 = vmatprep.subr.bf16.mxu0 %v365
  %506 = vmatpush2.bf16.msra.mxu0 %v364
  %507 = vmatprep.subr.bf16.mxu0 %v361
  %508 = vmatpush2.bf16.msra.mxu0 %v360
  %509 = vmatprep.subr.bf16.mxu0 %v357
  %510 = vmatpush2.bf16.msra.mxu0 %v356
  %511 = vmatprep.subr.bf16.mxu0 %v353
  %512 = vmatpush2.bf16.msra.mxu0 %v352
  %513 = vmatprep.subr.bf16.mxu0 %v349
  %514 = vmatpush2.bf16.msra.mxu0 %v348
  %515 = vmatprep.mubr.bf16.mxu0 %v57
  %516 = vmatmul.mubr.bf16.gmra.mxu0 %v56
  %v517 = vpop.f32.mrf.mxu0
  %v518 = vadd.f32 0.0, %v517
  %v519 = vpop.f32.mrf.mxu0
  %v520 = vadd.f32 0.0, %v519
  %v521 = vpop.f32.mrf.mxu0
  %v522 = vpop.f32.mrf.mxu0
  %523 = vdwg.mxu0
  %v524 = vsub.f32 0.0, %v477
  %v525 = vsub.f32 0.0, %v479
  %v526 = vmul.f32 %v524, 1.442695
  %v527 = vpow.pop %v526
  %v528 = vmul.f32 %v525, 1.442695
  %v529 = vpow.pop %v528
  %v530 = vadd.f32 %v527, 1.0
  %v531 = vadd.f32 %v529, 1.0
  %v532 = vrcp.pop %v530
  %v533 = vmul.f32 1.0, %v532
  %v534 = vrcp.pop %v531
  %v535 = vmul.f32 1.0, %v534
  %v536 = vmul.f32 %v477, %v533
  %v537 = vmul.f32 %v479, %v535
  %v538 = vmul.f32 %v536, %v518
  %v539 = vmul.f32 %v537, %v520
  %v540 = vpack.c.bf16 %v538, %v538
  %v541 = vpack.c.bf16 %v539, %v539
  %v542 = vld [vmem:[%s4] sm:$0xff]
  %v543 = vld [vmem:[%s4 + $0x8] sm:$0xff]
  %v544 = vld [vmem:[%s4 + $0x10] sm:$0xff]
  %v545 = vld [vmem:[%s4 + $0x18] sm:$0xff]
  %v546 = vld [vmem:[%s4 + $0x20] sm:$0xff]
  %v547 = vld [vmem:[%s4 + $0x28] sm:$0xff]
  %v548 = vld [vmem:[%s4 + $0x30] sm:$0xff]
  %v549 = vld [vmem:[%s4 + $0x38] sm:$0xff]
  %v550 = vld [vmem:[%s4 + $0x40] sm:$0xff]
  %v551 = vld [vmem:[%s4 + $0x48] sm:$0xff]
  %v552 = vld [vmem:[%s4 + $0x50] sm:$0xff]
  %v553 = vld [vmem:[%s4 + $0x58] sm:$0xff]
  %v554 = vld [vmem:[%s4 + $0x60] sm:$0xff]
  %v555 = vld [vmem:[%s4 + $0x68] sm:$0xff]
  %v556 = vld [vmem:[%s4 + $0x70] sm:$0xff]
  %v557 = vld [vmem:[%s4 + $0x78] sm:$0xff]
  %v558 = vld [vmem:[%s4 + $0x80] sm:$0xff]
  %v559 = vld [vmem:[%s4 + $0x88] sm:$0xff]
  %v560 = vld [vmem:[%s4 + $0x90] sm:$0xff]
  %v561 = vld [vmem:[%s4 + $0x98] sm:$0xff]
  %v562 = vld [vmem:[%s4 + $0xa0] sm:$0xff]
  %v563 = vld [vmem:[%s4 + $0xa8] sm:$0xff]
  %v564 = vld [vmem:[%s4 + $0xb0] sm:$0xff]
  %v565 = vld [vmem:[%s4 + $0xb8] sm:$0xff]
  %v566 = vld [vmem:[%s4 + $0xc0] sm:$0xff]
  %v567 = vld [vmem:[%s4 + $0xc8] sm:$0xff]
  %v568 = vld [vmem:[%s4 + $0xd0] sm:$0xff]
  %v569 = vld [vmem:[%s4 + $0xd8] sm:$0xff]
  %v570 = vld [vmem:[%s4 + $0xe0] sm:$0xff]
  %v571 = vld [vmem:[%s4 + $0xe8] sm:$0xff]
  %v572 = vld [vmem:[%s4 + $0xf0] sm:$0xff]
  %v573 = vld [vmem:[%s4 + $0xf8] sm:$0xff]
  %v606 = vunpack.c.l.b16 %v542
  %v607 = vunpack.c.h.b16 %v542
  %v608 = vunpack.c.l.b16 %v543
  %v609 = vunpack.c.h.b16 %v543
  %v610 = vunpack.c.l.b16 %v544
  %v611 = vunpack.c.h.b16 %v544
  %v612 = vunpack.c.l.b16 %v545
  %v613 = vunpack.c.h.b16 %v545
  %v614 = vunpack.c.l.b16 %v546
  %v615 = vunpack.c.h.b16 %v546
  %v616 = vunpack.c.l.b16 %v547
  %v617 = vunpack.c.h.b16 %v547
  %v618 = vunpack.c.l.b16 %v548
  %v619 = vunpack.c.h.b16 %v548
  %v620 = vunpack.c.l.b16 %v549
  %v621 = vunpack.c.h.b16 %v549
  %v622 = vunpack.c.l.b16 %v550
  %v623 = vunpack.c.h.b16 %v550
  %v624 = vunpack.c.l.b16 %v551
  %v625 = vunpack.c.h.b16 %v551
  %v626 = vunpack.c.l.b16 %v552
  %v627 = vunpack.c.h.b16 %v552
  %v628 = vunpack.c.l.b16 %v553
  %v629 = vunpack.c.h.b16 %v553
  %v630 = vunpack.c.l.b16 %v554
  %v631 = vunpack.c.h.b16 %v554
  %v632 = vunpack.c.l.b16 %v555
  %v633 = vunpack.c.h.b16 %v555
  %v634 = vunpack.c.l.b16 %v556
  %v635 = vunpack.c.h.b16 %v556
  %v636 = vunpack.c.l.b16 %v557
  %v637 = vunpack.c.h.b16 %v557
  %v638 = vunpack.c.l.b16 %v558
  %v639 = vunpack.c.h.b16 %v558
  %v640 = vunpack.c.l.b16 %v559
  %v641 = vunpack.c.h.b16 %v559
  %v642 = vunpack.c.l.b16 %v560
  %v643 = vunpack.c.h.b16 %v560
  %v644 = vunpack.c.l.b16 %v561
  %v645 = vunpack.c.h.b16 %v561
  %v646 = vunpack.c.l.b16 %v562
  %v647 = vunpack.c.h.b16 %v562
  %v648 = vunpack.c.l.b16 %v563
  %v649 = vunpack.c.h.b16 %v563
  %v650 = vunpack.c.l.b16 %v564
  %v651 = vunpack.c.h.b16 %v564
  %v652 = vunpack.c.l.b16 %v565
  %v653 = vunpack.c.h.b16 %v565
  %v654 = vunpack.c.l.b16 %v566
  %v655 = vunpack.c.h.b16 %v566
  %v656 = vunpack.c.l.b16 %v567
  %v657 = vunpack.c.h.b16 %v567
  %v658 = vunpack.c.l.b16 %v568
  %v659 = vunpack.c.h.b16 %v568
  %v660 = vunpack.c.l.b16 %v569
  %v661 = vunpack.c.h.b16 %v569
  %v662 = vunpack.c.l.b16 %v570
  %v663 = vunpack.c.h.b16 %v570
  %v664 = vunpack.c.l.b16 %v571
  %v665 = vunpack.c.h.b16 %v571
  %v666 = vunpack.c.l.b16 %v572
  %v667 = vunpack.c.h.b16 %v572
  %v668 = vunpack.c.l.b16 %v573
  %v669 = vunpack.c.h.b16 %v573
  %v670 = vpack.c.b16 %v608, %v606
  %v671 = vpack.c.b16 %v609, %v607
  %v672 = vpack.c.b16 %v612, %v610
  %v673 = vpack.c.b16 %v613, %v611
  %v674 = vpack.c.b16 %v616, %v614
  %v675 = vpack.c.b16 %v617, %v615
  %v676 = vpack.c.b16 %v620, %v618
  %v677 = vpack.c.b16 %v621, %v619
  %v678 = vpack.c.b16 %v624, %v622
  %v679 = vpack.c.b16 %v625, %v623
  %v680 = vpack.c.b16 %v628, %v626
  %v681 = vpack.c.b16 %v629, %v627
  %v682 = vpack.c.b16 %v632, %v630
  %v683 = vpack.c.b16 %v633, %v631
  %v684 = vpack.c.b16 %v636, %v634
  %v685 = vpack.c.b16 %v637, %v635
  %v686 = vpack.c.b16 %v640, %v638
  %v687 = vpack.c.b16 %v641, %v639
  %v688 = vpack.c.b16 %v644, %v642
  %v689 = vpack.c.b16 %v645, %v643
  %v690 = vpack.c.b16 %v648, %v646
  %v691 = vpack.c.b16 %v649, %v647
  %v692 = vpack.c.b16 %v652, %v650
  %v693 = vpack.c.b16 %v653, %v651
  %v694 = vpack.c.b16 %v656, %v654
  %v695 = vpack.c.b16 %v657, %v655
  %v696 = vpack.c.b16 %v660, %v658
  %v697 = vpack.c.b16 %v661, %v659
  %v698 = vpack.c.b16 %v664, %v662
  %v699 = vpack.c.b16 %v665, %v663
  %v700 = vpack.c.b16 %v668, %v666
  %v701 = vpack.c.b16 %v669, %v667
  %734 = vmatprep.subr.bf16.mxu0 %v685
  %735 = vmatpush1.bf16.msra.mxu0 %v684
  %736 = vmatprep.subr.bf16.mxu0 %v683
  %737 = vmatpush1.bf16.msra.mxu0 %v682
  %738 = vmatprep.subr.bf16.mxu0 %v681
  %739 = vmatpush1.bf16.msra.mxu0 %v680
  %740 = vmatprep.subr.bf16.mxu0 %v679
  %741 = vmatpush1.bf16.msra.mxu0 %v678
  %742 = vmatprep.subr.bf16.mxu0 %v677
  %743 = vmatpush1.bf16.msra.mxu0 %v676
  %744 = vmatprep.subr.bf16.mxu0 %v675
  %745 = vmatpush1.bf16.msra.mxu0 %v674
  %746 = vmatprep.subr.bf16.mxu0 %v673
  %747 = vmatpush1.bf16.msra.mxu0 %v672
  %748 = vmatprep.subr.bf16.mxu0 %v671
  %749 = vmatpush1.bf16.msra.mxu0 %v670
  %750 = vmatprep.subr.bf16.mxu0 %v701
  %751 = vmatpush2.bf16.msra.mxu0 %v700
  %752 = vmatprep.subr.bf16.mxu0 %v699
  %753 = vmatpush2.bf16.msra.mxu0 %v698
  %754 = vmatprep.subr.bf16.mxu0 %v697
  %755 = vmatpush2.bf16.msra.mxu0 %v696
  %756 = vmatprep.subr.bf16.mxu0 %v695
  %757 = vmatpush2.bf16.msra.mxu0 %v694
  %758 = vmatprep.subr.bf16.mxu0 %v693
  %759 = vmatpush2.bf16.msra.mxu0 %v692
  %760 = vmatprep.subr.bf16.mxu0 %v691
  %761 = vmatpush2.bf16.msra.mxu0 %v690
  %762 = vmatprep.subr.bf16.mxu0 %v689
  %763 = vmatpush2.bf16.msra.mxu0 %v688
  %764 = vmatprep.subr.bf16.mxu0 %v687
  %765 = vmatpush2.bf16.msra.mxu0 %v686
  %766 = vmatprep.mubr.bf16.mxu0 %v541
  %767 = vmatmul.mubr.bf16.gmra.mxu0 %v540
  %v768 = vpop.f32.mrf.mxu0
  %v769 = vadd.f32 0.0, %v768
  %v770 = vpop.f32.mrf.mxu0
  %v771 = vadd.f32 0.0, %v770
  %v772 = vpop.f32.mrf.mxu0
  %v773 = vpop.f32.mrf.mxu0
  %774 = vdwg.mxu0
  %v775 = vpack.c.bf16 %v769, %v769
  %v776 = vpack.c.bf16 %v771, %v771
  %v779 = vunpack.c.l.b16 %v775
  %v780 = vunpack.c.l.b16 %v776
  %v781 = vpack.c.b16 %v780, %v779
  %783 = vst [vmem:[%s5] sm:$0xff] %v781
  // Predicated region
  $region22: #{qwen2_moe_forward.10} parent=0 // pred_check
    _
  $region23: #{qwen2_moe_forward.10} parent=0 // pred_check_branch
    %785 = sbr.rel (0) target = $region25
  $region24: #{qwen2_moe_forward.10} parent=0 // pred_region
    _
  $region25: #{qwen2_moe_forward.10} parent=0 // pred_fallthru
    _
  // Predicated region
  $region26: #{qwen2_moe_forward.10} parent=0 // pred_check
    _
  $region27: #{qwen2_moe_forward.10} parent=0 // pred_check_branch
    %787 = sbr.rel (0) target = $region29
  $region28: #{qwen2_moe_forward.10} parent=0 // pred_region
    _
  $region29: #{qwen2_moe_forward.10} parent=0 // pred_fallthru
    _
  // Predicated region
  $region30: #{qwen2_moe_forward.10} parent=0 // pred_check
    _
  $region31: #{qwen2_moe_forward.10} parent=0 // pred_check_branch
    %789 = sbr.rel (0) target = $region33
  $region32: #{qwen2_moe_forward.10} parent=0 // pred_region
    _
  $region33: #{qwen2_moe_forward.10} parent=0 // pred_fallthru
    _
  // Predicated region
  $region34: #{qwen2_moe_forward.10} parent=0 // pred_check
    _
  $region35: #{qwen2_moe_forward.10} parent=0 // pred_check_branch
    %791 = sbr.rel (0) target = $region37
  $region36: #{qwen2_moe_forward.10} parent=0 // pred_region
    _
  $region37: #{qwen2_moe_forward.10} parent=0 // pred_fallthru
    _

// kernel: qwen2_moe_forward.13
$region0: #{qwen2_moe_forward.13}
  #allocation0 [shape = 'u32[]', space=smem, size = 0x4, offset = 0x4, fixed_abs, tag = 'smem constant byte address 0x4 - core index']
  #allocation1 [shape = 'u32[144,128]{1,0:T(1,128)}', space=vmem, size = 0x12000, scoped, tag = 'internal scratch']
  %s0 = inlined_call_operand.vmem [shape: bf16[8,256], index: 0, kind: input, shape index: {}]
  %s1 = inlined_call_operand.vmem [shape: f32[8,256], index: 1, kind: input, shape index: {}]
  %s2 = inlined_call_operand.vmem [shape: f32[1,256], index: 2, kind: input, shape index: {}]
  %s3 = inlined_call_operand.vmem [shape: bf16[256,4], index: 3, kind: input, shape index: {}]
  %s4 = inlined_call_operand.vmem [shape: bf16[256,256], index: 4, kind: input, shape index: {}]
  %s5 = inlined_call_operand.vmem [shape: bf16[128,256], index: 5, kind: input, shape index: {}]
  %s6 = inlined_call_operand.vmem [shape: f32[1,256], index: 6, kind: input, shape index: {}]
  %s7 = inlined_call_operand.vmem [shape: bf16[8,256], index: 7, kind: output, shape index: {0}]
  %s8 = inlined_call_operand.vmem [shape: f32[8,256], index: 8, kind: output, shape index: {1}]
  %s9 = inlined_call_operand.vmem [shape: f32[8,4], index: 9, kind: output, shape index: {2}]
  %s10 = inlined_call_operand.vmem [shape: f32[8,256], index: 10, kind: output, shape index: {3}]
  %11 = xla_tuple %s7, %s8, %s9, %s10
  %s12 = sld [smem:[#allocation0]]
  $region62: #{qwen2_moe_forward.13} parent=0
    _
  %s14 = ssub.s32 1, %s12
  %s15 = scalar_select 0, %s14, %s12
  // Predicated region
  $region2: #{qwen2_moe_forward.13} parent=0 // pred_check
    _
  $region3: #{qwen2_moe_forward.13} parent=0 // pred_check_branch
    %17 = sbr.rel (0) target = $region5
  $region4: #{qwen2_moe_forward.13} parent=0 // pred_region
    _
  $region5: #{qwen2_moe_forward.13} parent=0 // pred_fallthru
    _
  // Predicated region
  $region6: #{qwen2_moe_forward.13} parent=0 // pred_check
    _
  $region7: #{qwen2_moe_forward.13} parent=0 // pred_check_branch
    %19 = sbr.rel (0) target = $region9
  $region8: #{qwen2_moe_forward.13} parent=0 // pred_region
    _
  $region9: #{qwen2_moe_forward.13} parent=0 // pred_fallthru
    _
  // Predicated region
  $region10: #{qwen2_moe_forward.13} parent=0 // pred_check
    _
  $region11: #{qwen2_moe_forward.13} parent=0 // pred_check_branch
    %21 = sbr.rel (0) target = $region13
  $region12: #{qwen2_moe_forward.13} parent=0 // pred_region
    _
  $region13: #{qwen2_moe_forward.13} parent=0 // pred_fallthru
    _
  // Predicated region
  $region14: #{qwen2_moe_forward.13} parent=0 // pred_check
    _
  $region15: #{qwen2_moe_forward.13} parent=0 // pred_check_branch
    %23 = sbr.rel (0) target = $region17
  $region16: #{qwen2_moe_forward.13} parent=0 // pred_region
    _
  $region17: #{qwen2_moe_forward.13} parent=0 // pred_fallthru
    _
  // Predicated region
  $region18: #{qwen2_moe_forward.13} parent=0 // pred_check
    _
  $region19: #{qwen2_moe_forward.13} parent=0 // pred_check_branch
    %25 = sbr.rel (0) target = $region21
  $region20: #{qwen2_moe_forward.13} parent=0 // pred_region
    _
  $region21: #{qwen2_moe_forward.13} parent=0 // pred_fallthru
    _
  // Predicated region
  $region22: #{qwen2_moe_forward.13} parent=0 // pred_check
    _
  $region23: #{qwen2_moe_forward.13} parent=0 // pred_check_branch
    %27 = sbr.rel (0) target = $region25
  $region24: #{qwen2_moe_forward.13} parent=0 // pred_region
    _
  $region25: #{qwen2_moe_forward.13} parent=0 // pred_fallthru
    _
  // Predicated region
  $region26: #{qwen2_moe_forward.13} parent=0 // pred_check
    _
  $region27: #{qwen2_moe_forward.13} parent=0 // pred_check_branch
    %29 = sbr.rel (0) target = $region29
  $region28: #{qwen2_moe_forward.13} parent=0 // pred_region
    _
  $region29: #{qwen2_moe_forward.13} parent=0 // pred_fallthru
    _
  %v31 = vld [vmem:[%s0] sm:$0xff]
  %v32 = vunpack.c.l.bf16 %v31
  %v33 = vunpack.c.h.bf16 %v31
  %v34 = vld [vmem:[%s1] sm:$0xff]
  %v35 = vld [vmem:[%s1 + $0x8] sm:$0xff]
  %v36 = vadd.f32 %v32, %v34
  %v37 = vadd.f32 %v33, %v35
  %38 = vst [vmem:[%s8] sm:$0xff] %v36
  %39 = vst [vmem:[%s8 + $0x8] sm:$0xff] %v37
  %v40 = vld [vmem:[%s2] sm:$0x3]
  %v41 = vmul.f32 %v36, %v36
  %v42 = vmul.f32 %v37, %v37
  %v43 = vadd.f32 %v41, %v42
  %44 = vadd.xlane.f32.xlu0 %v43
  %v45 = vpop.xlane.xlu0 %44
  %v46 = vrcp.pop 256.0
  %v47 = vmul.f32 %v45, %v46
  %v48 = vadd.f32 %v47, 1e-06
  %v49 = vrsqrt.pop %v48
  %v50 = vmul.f32 %v36, %v49
  %v51 = vmul.f32 %v37, %v49
  %v53 = vlaneseq
  %v54 = vshrl.u32 %v53, 7
  %v55 = vsub.s32 0, %v54
  %v56 = vrot.slane %v40, %v55
  %v57 = vlaneseq
  %v58 = vshrl.u32 %v57, 7
  %v59 = vsub.s32 1, %v58
  %v60 = vrot.slane %v40, %v59
  %v63 = vmul.f32 %v50, %v56
  %v64 = vmul.f32 %v51, %v60
  %v65 = vpack.c.bf16 %v63, %v63
  %v66 = vpack.c.bf16 %v64, %v64
  %v69 = vunpack.c.l.b16 %v65
  %v70 = vunpack.c.l.b16 %v66
  %v71 = vpack.c.b16 %v70, %v69
  %73 = vst [vmem:[%s7] sm:$0xff] %v71
  %v74 = vld [vmem:[%s3] sm:$0xf]
  %v75 = vld [vmem:[%s3 + $0x4] sm:$0xf]
  %v76 = vld [vmem:[%s3 + $0x8] sm:$0xf]
  %v77 = vld [vmem:[%s3 + $0xc] sm:$0xf]
  %v78 = vld [vmem:[%s3 + $0x10] sm:$0xf]
  %v79 = vld [vmem:[%s3 + $0x14] sm:$0xf]
  %v80 = vld [vmem:[%s3 + $0x18] sm:$0xf]
  %v81 = vld [vmem:[%s3 + $0x1c] sm:$0xf]
  %v82 = vld [vmem:[%s3 + $0x20] sm:$0xf]
  %v83 = vld [vmem:[%s3 + $0x24] sm:$0xf]
  %v84 = vld [vmem:[%s3 + $0x28] sm:$0xf]
  %v85 = vld [vmem:[%s3 + $0x2c] sm:$0xf]
  %v86 = vld [vmem:[%s3 + $0x30] sm:$0xf]
  %v87 = vld [vmem:[%s3 + $0x34] sm:$0xf]
  %v88 = vld [vmem:[%s3 + $0x38] sm:$0xf]
  %v89 = vld [vmem:[%s3 + $0x3c] sm:$0xf]
  %v90 = vld [vmem:[%s3 + $0x40] sm:$0xf]
  %v91 = vld [vmem:[%s3 + $0x44] sm:$0xf]
  %v92 = vld [vmem:[%s3 + $0x48] sm:$0xf]
  %v93 = vld [vmem:[%s3 + $0x4c] sm:$0xf]
  %v94 = vld [vmem:[%s3 + $0x50] sm:$0xf]
  %v95 = vld [vmem:[%s3 + $0x54] sm:$0xf]
  %v96 = vld [vmem:[%s3 + $0x58] sm:$0xf]
  %v97 = vld [vmem:[%s3 + $0x5c] sm:$0xf]
  %v98 = vld [vmem:[%s3 + $0x60] sm:$0xf]
  %v99 = vld [vmem:[%s3 + $0x64] sm:$0xf]
  %v100 = vld [vmem:[%s3 + $0x68] sm:$0xf]
  %v101 = vld [vmem:[%s3 + $0x6c] sm:$0xf]
  %v102 = vld [vmem:[%s3 + $0x70] sm:$0xf]
  %v103 = vld [vmem:[%s3 + $0x74] sm:$0xf]
  %v104 = vld [vmem:[%s3 + $0x78] sm:$0xf]
  %v105 = vld [vmem:[%s3 + $0x7c] sm:$0xf]
  %v138 = vunpack.c.l.b16 %v74
  %v139 = vunpack.c.l.b16 %v75
  %v140 = vunpack.c.l.b16 %v76
  %v141 = vunpack.c.l.b16 %v77
  %v142 = vunpack.c.l.b16 %v78
  %v143 = vunpack.c.l.b16 %v79
  %v144 = vunpack.c.l.b16 %v80
  %v145 = vunpack.c.l.b16 %v81
  %v146 = vunpack.c.l.b16 %v82
  %v147 = vunpack.c.l.b16 %v83
  %v148 = vunpack.c.l.b16 %v84
  %v149 = vunpack.c.l.b16 %v85
  %v150 = vunpack.c.l.b16 %v86
  %v151 = vunpack.c.l.b16 %v87
  %v152 = vunpack.c.l.b16 %v88
  %v153 = vunpack.c.l.b16 %v89
  %v154 = vunpack.c.l.b16 %v90
  %v155 = vunpack.c.l.b16 %v91
  %v156 = vunpack.c.l.b16 %v92
  %v157 = vunpack.c.l.b16 %v93
  %v158 = vunpack.c.l.b16 %v94
  %v159 = vunpack.c.l.b16 %v95
  %v160 = vunpack.c.l.b16 %v96
  %v161 = vunpack.c.l.b16 %v97
  %v162 = vunpack.c.l.b16 %v98
  %v163 = vunpack.c.l.b16 %v99
  %v164 = vunpack.c.l.b16 %v100
  %v165 = vunpack.c.l.b16 %v101
  %v166 = vunpack.c.l.b16 %v102
  %v167 = vunpack.c.l.b16 %v103
  %v168 = vunpack.c.l.b16 %v104
  %v169 = vunpack.c.l.b16 %v105
  %v170 = vpack.c.b16 %v139, %v138
  %v171 = vpack.c.b16 %v141, %v140
  %v172 = vpack.c.b16 %v143, %v142
  %v173 = vpack.c.b16 %v145, %v144
  %v174 = vpack.c.b16 %v147, %v146
  %v175 = vpack.c.b16 %v149, %v148
  %v176 = vpack.c.b16 %v151, %v150
  %v177 = vpack.c.b16 %v153, %v152
  %v178 = vpack.c.b16 %v155, %v154
  %v179 = vpack.c.b16 %v157, %v156
  %v180 = vpack.c.b16 %v159, %v158
  %v181 = vpack.c.b16 %v161, %v160
  %v182 = vpack.c.b16 %v163, %v162
  %v183 = vpack.c.b16 %v165, %v164
  %v184 = vpack.c.b16 %v167, %v166
  %v185 = vpack.c.b16 %v169, %v168
  %202 = vmatprep.subr.bf16.mxu0 0
  %203 = vmatpush1.bf16.msra.mxu0 %v177
  %204 = vmatprep.subr.bf16.mxu0 0
  %205 = vmatpush1.bf16.msra.mxu0 %v176
  %206 = vmatprep.subr.bf16.mxu0 0
  %207 = vmatpush1.bf16.msra.mxu0 %v175
  %208 = vmatprep.subr.bf16.mxu0 0
  %209 = vmatpush1.bf16.msra.mxu0 %v174
  %210 = vmatprep.subr.bf16.mxu0 0
  %211 = vmatpush1.bf16.msra.mxu0 %v173
  %212 = vmatprep.subr.bf16.mxu0 0
  %213 = vmatpush1.bf16.msra.mxu0 %v172
  %214 = vmatprep.subr.bf16.mxu0 0
  %215 = vmatpush1.bf16.msra.mxu0 %v171
  %216 = vmatprep.subr.bf16.mxu0 0
  %217 = vmatpush1.bf16.msra.mxu0 %v170
  %218 = vmatprep.subr.bf16.mxu0 0
  %219 = vmatpush2.bf16.msra.mxu0 %v185
  %220 = vmatprep.subr.bf16.mxu0 0
  %221 = vmatpush2.bf16.msra.mxu0 %v184
  %222 = vmatprep.subr.bf16.mxu0 0
  %223 = vmatpush2.bf16.msra.mxu0 %v183
  %224 = vmatprep.subr.bf16.mxu0 0
  %225 = vmatpush2.bf16.msra.mxu0 %v182
  %226 = vmatprep.subr.bf16.mxu0 0
  %227 = vmatpush2.bf16.msra.mxu0 %v181
  %228 = vmatprep.subr.bf16.mxu0 0
  %229 = vmatpush2.bf16.msra.mxu0 %v180
  %230 = vmatprep.subr.bf16.mxu0 0
  %231 = vmatpush2.bf16.msra.mxu0 %v179
  %232 = vmatprep.subr.bf16.mxu0 0
  %233 = vmatpush2.bf16.msra.mxu0 %v178
  %234 = vmatprep.mubr.bf16.mxu0 %v66
  %235 = vmatmul.mubr.bf16.gmra.mxu0 %v65
  %v236 = vpop.f32.mrf.mxu0
  %v237 = vadd.f32 0.0, %v236
  %v238 = vpop.f32.mrf.mxu0
  %v239 = vpop.f32.mrf.mxu0
  %v240 = vpop.f32.mrf.mxu0
  %241 = vdwg.mxu0
  %vm242 = vcmask 31744
  %243 = vst.msk [vmem:[%s9] sm:$0xff] %vm242, %v237
  %v244 = vld [vmem:[%s4] sm:$0xff]
  %v245 = vld [vmem:[%s4 + $0x8] sm:$0xff]
  %v246 = vld [vmem:[%s4 + $0x10] sm:$0xff]
  %v247 = vld [vmem:[%s4 + $0x18] sm:$0xff]
  %v248 = vld [vmem:[%s4 + $0x20] sm:$0xff]
  %v249 = vld [vmem:[%s4 + $0x28] sm:$0xff]
  %v250 = vld [vmem:[%s4 + $0x30] sm:$0xff]
  %v251 = vld [vmem:[%s4 + $0x38] sm:$0xff]
  %v252 = vld [vmem:[%s4 + $0x40] sm:$0xff]
  %v253 = vld [vmem:[%s4 + $0x48] sm:$0xff]
  %v254 = vld [vmem:[%s4 + $0x50] sm:$0xff]
  %v255 = vld [vmem:[%s4 + $0x58] sm:$0xff]
  %v256 = vld [vmem:[%s4 + $0x60] sm:$0xff]
  %v257 = vld [vmem:[%s4 + $0x68] sm:$0xff]
  %v258 = vld [vmem:[%s4 + $0x70] sm:$0xff]
  %v259 = vld [vmem:[%s4 + $0x78] sm:$0xff]
  %v260 = vld [vmem:[%s4 + $0x80] sm:$0xff]
  %v261 = vld [vmem:[%s4 + $0x88] sm:$0xff]
  %v262 = vld [vmem:[%s4 + $0x90] sm:$0xff]
  %v263 = vld [vmem:[%s4 + $0x98] sm:$0xff]
  %v264 = vld [vmem:[%s4 + $0xa0] sm:$0xff]
  %v265 = vld [vmem:[%s4 + $0xa8] sm:$0xff]
  %v266 = vld [vmem:[%s4 + $0xb0] sm:$0xff]
  %v267 = vld [vmem:[%s4 + $0xb8] sm:$0xff]
  %v268 = vld [vmem:[%s4 + $0xc0] sm:$0xff]
  %v269 = vld [vmem:[%s4 + $0xc8] sm:$0xff]
  %v270 = vld [vmem:[%s4 + $0xd0] sm:$0xff]
  %v271 = vld [vmem:[%s4 + $0xd8] sm:$0xff]
  %v272 = vld [vmem:[%s4 + $0xe0] sm:$0xff]
  %v273 = vld [vmem:[%s4 + $0xe8] sm:$0xff]
  %v274 = vld [vmem:[%s4 + $0xf0] sm:$0xff]
  %v275 = vld [vmem:[%s4 + $0xf8] sm:$0xff]
  %v308 = vunpack.c.l.b16 %v244
  %v309 = vunpack.c.h.b16 %v244
  %v310 = vunpack.c.l.b16 %v245
  %v311 = vunpack.c.h.b16 %v245
  %v312 = vunpack.c.l.b16 %v246
  %v313 = vunpack.c.h.b16 %v246
  %v314 = vunpack.c.l.b16 %v247
  %v315 = vunpack.c.h.b16 %v247
  %v316 = vunpack.c.l.b16 %v248
  %v317 = vunpack.c.h.b16 %v248
  %v318 = vunpack.c.l.b16 %v249
  %v319 = vunpack.c.h.b16 %v249
  %v320 = vunpack.c.l.b16 %v250
  %v321 = vunpack.c.h.b16 %v250
  %v322 = vunpack.c.l.b16 %v251
  %v323 = vunpack.c.h.b16 %v251
  %v324 = vunpack.c.l.b16 %v252
  %v325 = vunpack.c.h.b16 %v252
  %v326 = vunpack.c.l.b16 %v253
  %v327 = vunpack.c.h.b16 %v253
  %v328 = vunpack.c.l.b16 %v254
  %v329 = vunpack.c.h.b16 %v254
  %v330 = vunpack.c.l.b16 %v255
  %v331 = vunpack.c.h.b16 %v255
  %v332 = vunpack.c.l.b16 %v256
  %v333 = vunpack.c.h.b16 %v256
  %v334 = vunpack.c.l.b16 %v257
  %v335 = vunpack.c.h.b16 %v257
  %v336 = vunpack.c.l.b16 %v258
  %v337 = vunpack.c.h.b16 %v258
  %v338 = vunpack.c.l.b16 %v259
  %v339 = vunpack.c.h.b16 %v259
  %v340 = vunpack.c.l.b16 %v260
  %v341 = vunpack.c.h.b16 %v260
  %v342 = vunpack.c.l.b16 %v261
  %v343 = vunpack.c.h.b16 %v261
  %v344 = vunpack.c.l.b16 %v262
  %v345 = vunpack.c.h.b16 %v262
  %v346 = vunpack.c.l.b16 %v263
  %v347 = vunpack.c.h.b16 %v263
  %v348 = vunpack.c.l.b16 %v264
  %v349 = vunpack.c.h.b16 %v264
  %v350 = vunpack.c.l.b16 %v265
  %v351 = vunpack.c.h.b16 %v265
  %v352 = vunpack.c.l.b16 %v266
  %v353 = vunpack.c.h.b16 %v266
  %v354 = vunpack.c.l.b16 %v267
  %v355 = vunpack.c.h.b16 %v267
  %v356 = vunpack.c.l.b16 %v268
  %v357 = vunpack.c.h.b16 %v268
  %v358 = vunpack.c.l.b16 %v269
  %v359 = vunpack.c.h.b16 %v269
  %v360 = vunpack.c.l.b16 %v270
  %v361 = vunpack.c.h.b16 %v270
  %v362 = vunpack.c.l.b16 %v271
  %v363 = vunpack.c.h.b16 %v271
  %v364 = vunpack.c.l.b16 %v272
  %v365 = vunpack.c.h.b16 %v272
  %v366 = vunpack.c.l.b16 %v273
  %v367 = vunpack.c.h.b16 %v273
  %v368 = vunpack.c.l.b16 %v274
  %v369 = vunpack.c.h.b16 %v274
  %v370 = vunpack.c.l.b16 %v275
  %v371 = vunpack.c.h.b16 %v275
  %v372 = vpack.c.b16 %v310, %v308
  %v373 = vpack.c.b16 %v311, %v309
  %v374 = vpack.c.b16 %v314, %v312
  %v375 = vpack.c.b16 %v315, %v313
  %v376 = vpack.c.b16 %v318, %v316
  %v377 = vpack.c.b16 %v319, %v317
  %v378 = vpack.c.b16 %v322, %v320
  %v379 = vpack.c.b16 %v323, %v321
  %v380 = vpack.c.b16 %v326, %v324
  %v381 = vpack.c.b16 %v327, %v325
  %v382 = vpack.c.b16 %v330, %v328
  %v383 = vpack.c.b16 %v331, %v329
  %v384 = vpack.c.b16 %v334, %v332
  %v385 = vpack.c.b16 %v335, %v333
  %v386 = vpack.c.b16 %v338, %v336
  %v387 = vpack.c.b16 %v339, %v337
  %v388 = vpack.c.b16 %v342, %v340
  %v389 = vpack.c.b16 %v343, %v341
  %v390 = vpack.c.b16 %v346, %v344
  %v391 = vpack.c.b16 %v347, %v345
  %v392 = vpack.c.b16 %v350, %v348
  %v393 = vpack.c.b16 %v351, %v349
  %v394 = vpack.c.b16 %v354, %v352
  %v395 = vpack.c.b16 %v355, %v353
  %v396 = vpack.c.b16 %v358, %v356
  %v397 = vpack.c.b16 %v359, %v357
  %v398 = vpack.c.b16 %v362, %v360
  %v399 = vpack.c.b16 %v363, %v361
  %v400 = vpack.c.b16 %v366, %v364
  %v401 = vpack.c.b16 %v367, %v365
  %v402 = vpack.c.b16 %v370, %v368
  %v403 = vpack.c.b16 %v371, %v369
  %436 = vmatprep.subr.bf16.mxu0 %v387
  %437 = vmatpush1.bf16.msra.mxu0 %v386
  %438 = vmatprep.subr.bf16.mxu0 %v385
  %439 = vmatpush1.bf16.msra.mxu0 %v384
  %440 = vmatprep.subr.bf16.mxu0 %v383
  %441 = vmatpush1.bf16.msra.mxu0 %v382
  %442 = vmatprep.subr.bf16.mxu0 %v381
  %443 = vmatpush1.bf16.msra.mxu0 %v380
  %444 = vmatprep.subr.bf16.mxu0 %v379
  %445 = vmatpush1.bf16.msra.mxu0 %v378
  %446 = vmatprep.subr.bf16.mxu0 %v377
  %447 = vmatpush1.bf16.msra.mxu0 %v376
  %448 = vmatprep.subr.bf16.mxu0 %v375
  %449 = vmatpush1.bf16.msra.mxu0 %v374
  %450 = vmatprep.subr.bf16.mxu0 %v373
  %451 = vmatpush1.bf16.msra.mxu0 %v372
  %452 = vmatprep.subr.bf16.mxu0 %v403
  %453 = vmatpush2.bf16.msra.mxu0 %v402
  %454 = vmatprep.subr.bf16.mxu0 %v401
  %455 = vmatpush2.bf16.msra.mxu0 %v400
  %456 = vmatprep.subr.bf16.mxu0 %v399
  %457 = vmatpush2.bf16.msra.mxu0 %v398
  %458 = vmatprep.subr.bf16.mxu0 %v397
  %459 = vmatpush2.bf16.msra.mxu0 %v396
  %460 = vmatprep.subr.bf16.mxu0 %v395
  %461 = vmatpush2.bf16.msra.mxu0 %v394
  %462 = vmatprep.subr.bf16.mxu0 %v393
  %463 = vmatpush2.bf16.msra.mxu0 %v392
  %464 = vmatprep.subr.bf16.mxu0 %v391
  %465 = vmatpush2.bf16.msra.mxu0 %v390
  %466 = vmatprep.subr.bf16.mxu0 %v389
  %467 = vmatpush2.bf16.msra.mxu0 %v388
  %468 = vmatprep.mubr.bf16.mxu0 %v66
  %469 = vmatmul.mubr.bf16.gmra.mxu0 %v65
  %v470 = vpop.f32.mrf.mxu0
  %v471 = vadd.f32 0.0, %v470
  %v472 = vpop.f32.mrf.mxu0
  %v473 = vadd.f32 0.0, %v472
  %v474 = vpop.f32.mrf.mxu0
  %v475 = vpop.f32.mrf.mxu0
  %476 = vdwg.mxu0
  %v477 = vsub.f32 0.0, %v471
  %v478 = vmul.f32 %v477, 1.442695
  %v479 = vpow.pop %v478
  %v480 = vadd.f32 %v479, 1.0
  %v481 = vrcp.pop %v480
  %v482 = vmul.f32 1.0, %v481
  %v483 = vmul.f32 %v471, %v482
  %v484 = vmul.f32 %v483, %v473
  %v485 = vpack.c.bf16 %v484, %v484
  %v486 = vld [vmem:[%s5] sm:$0xff]
  %v487 = vld [vmem:[%s5 + $0x8] sm:$0xff]
  %v488 = vld [vmem:[%s5 + $0x10] sm:$0xff]
  %v489 = vld [vmem:[%s5 + $0x18] sm:$0xff]
  %v490 = vld [vmem:[%s5 + $0x20] sm:$0xff]
  %v491 = vld [vmem:[%s5 + $0x28] sm:$0xff]
  %v492 = vld [vmem:[%s5 + $0x30] sm:$0xff]
  %v493 = vld [vmem:[%s5 + $0x38] sm:$0xff]
  %v494 = vld [vmem:[%s5 + $0x40] sm:$0xff]
  %v495 = vld [vmem:[%s5 + $0x48] sm:$0xff]
  %v496 = vld [vmem:[%s5 + $0x50] sm:$0xff]
  %v497 = vld [vmem:[%s5 + $0x58] sm:$0xff]
  %v498 = vld [vmem:[%s5 + $0x60] sm:$0xff]
  %v499 = vld [vmem:[%s5 + $0x68] sm:$0xff]
  %v500 = vld [vmem:[%s5 + $0x70] sm:$0xff]
  %v501 = vld [vmem:[%s5 + $0x78] sm:$0xff]
  %v518 = vunpack.c.l.b16 %v486
  %v519 = vunpack.c.h.b16 %v486
  %v520 = vunpack.c.l.b16 %v487
  %v521 = vunpack.c.h.b16 %v487
  %v522 = vunpack.c.l.b16 %v488
  %v523 = vunpack.c.h.b16 %v488
  %v524 = vunpack.c.l.b16 %v489
  %v525 = vunpack.c.h.b16 %v489
  %v526 = vunpack.c.l.b16 %v490
  %v527 = vunpack.c.h.b16 %v490
  %v528 = vunpack.c.l.b16 %v491
  %v529 = vunpack.c.h.b16 %v491
  %v530 = vunpack.c.l.b16 %v492
  %v531 = vunpack.c.h.b16 %v492
  %v532 = vunpack.c.l.b16 %v493
  %v533 = vunpack.c.h.b16 %v493
  %v534 = vunpack.c.l.b16 %v494
  %v535 = vunpack.c.h.b16 %v494
  %v536 = vunpack.c.l.b16 %v495
  %v537 = vunpack.c.h.b16 %v495
  %v538 = vunpack.c.l.b16 %v496
  %v539 = vunpack.c.h.b16 %v496
  %v540 = vunpack.c.l.b16 %v497
  %v541 = vunpack.c.h.b16 %v497
  %v542 = vunpack.c.l.b16 %v498
  %v543 = vunpack.c.h.b16 %v498
  %v544 = vunpack.c.l.b16 %v499
  %v545 = vunpack.c.h.b16 %v499
  %v546 = vunpack.c.l.b16 %v500
  %v547 = vunpack.c.h.b16 %v500
  %v548 = vunpack.c.l.b16 %v501
  %v549 = vunpack.c.h.b16 %v501
  %v550 = vpack.c.b16 %v520, %v518
  %v551 = vpack.c.b16 %v521, %v519
  %v552 = vpack.c.b16 %v524, %v522
  %v553 = vpack.c.b16 %v525, %v523
  %v554 = vpack.c.b16 %v528, %v526
  %v555 = vpack.c.b16 %v529, %v527
  %v556 = vpack.c.b16 %v532, %v530
  %v557 = vpack.c.b16 %v533, %v531
  %v558 = vpack.c.b16 %v536, %v534
  %v559 = vpack.c.b16 %v537, %v535
  %v560 = vpack.c.b16 %v540, %v538
  %v561 = vpack.c.b16 %v541, %v539
  %v562 = vpack.c.b16 %v544, %v542
  %v563 = vpack.c.b16 %v545, %v543
  %v564 = vpack.c.b16 %v548, %v546
  %v565 = vpack.c.b16 %v549, %v547
  %582 = vmatprep.subr.bf16.mxu0 %v565
  %583 = vmatpush1.bf16.msra.mxu0 %v564
  %584 = vmatprep.subr.bf16.mxu0 %v563
  %585 = vmatpush1.bf16.msra.mxu0 %v562
  %586 = vmatprep.subr.bf16.mxu0 %v561
  %587 = vmatpush1.bf16.msra.mxu0 %v560
  %588 = vmatprep.subr.bf16.mxu0 %v559
  %589 = vmatpush1.bf16.msra.mxu0 %v558
  %590 = vmatprep.subr.bf16.mxu0 %v557
  %591 = vmatpush1.bf16.msra.mxu0 %v556
  %592 = vmatprep.subr.bf16.mxu0 %v555
  %593 = vmatpush1.bf16.msra.mxu0 %v554
  %594 = vmatprep.subr.bf16.mxu0 %v553
  %595 = vmatpush1.bf16.msra.mxu0 %v552
  %596 = vmatprep.subr.bf16.mxu0 %v551
  %597 = vmatpush1.bf16.msra.mxu0 %v550
  %598 = vmatprep.subr.bf16.mxu0 0
  %599 = vmatpush2.bf16.msra.mxu0 0
  %600 = vmatprep.subr.bf16.mxu0 0
  %601 = vmatpush2.bf16.msra.mxu0 0
  %602 = vmatprep.subr.bf16.mxu0 0
  %603 = vmatpush2.bf16.msra.mxu0 0
  %604 = vmatprep.subr.bf16.mxu0 0
  %605 = vmatpush2.bf16.msra.mxu0 0
  %606 = vmatprep.subr.bf16.mxu0 0
  %607 = vmatpush2.bf16.msra.mxu0 0
  %608 = vmatprep.subr.bf16.mxu0 0
  %609 = vmatpush2.bf16.msra.mxu0 0
  %610 = vmatprep.subr.bf16.mxu0 0
  %611 = vmatpush2.bf16.msra.mxu0 0
  %612 = vmatprep.subr.bf16.mxu0 0
  %613 = vmatpush2.bf16.msra.mxu0 0
  %614 = vmatprep.mubr.bf16.mxu0 0
  %615 = vmatmul.mubr.bf16.gmra.mxu0 %v485
  %v616 = vpop.f32.mrf.mxu0
  %v617 = vadd.f32 0.0, %v616
  %v618 = vpop.f32.mrf.mxu0
  %v619 = vadd.f32 0.0, %v618
  %v620 = vpop.f32.mrf.mxu0
  %v621 = vpop.f32.mrf.mxu0
  %622 = vdwg.mxu0
  %v623 = vld [vmem:[%s6] sm:$0x3]
  %v625 = vlaneseq
  %v626 = vshrl.u32 %v625, 7
  %v627 = vsub.s32 0, %v626
  %v628 = vrot.slane %v623, %v627
  %v629 = vlaneseq
  %v630 = vshrl.u32 %v629, 7
  %v631 = vsub.s32 1, %v630
  %v632 = vrot.slane %v623, %v631
  %v635 = vmul.f32 %v63, %v628
  %v636 = vmul.f32 %v64, %v632
  %v637 = vadd.f32 %v635, %v636
  %638 = vadd.xlane.f32.xlu0 %v637
  %v639 = vpop.xlane.xlu0 %638
  %v640 = vsub.f32 0.0, %v639
  %v641 = vmul.f32 %v640, 1.442695
  %v642 = vpow.pop %v641
  %v643 = vadd.f32 %v642, 1.0
  %v644 = vrcp.pop %v643
  %v645 = vmul.f32 1.0, %v644
  %v646 = vmul.f32 %v645, %v617
  %v647 = vmul.f32 %v645, %v619
  %648 = vst [vmem:[%s10] sm:$0xff] %v646
  %649 = vst [vmem:[%s10 + $0x8] sm:$0xff] %v647
  // Predicated region
  $region30: #{qwen2_moe_forward.13} parent=0 // pred_check
    _
  $region31: #{qwen2_moe_forward.13} parent=0 // pred_check_branch
    %651 = sbr.rel (0) target = $region33
  $region32: #{qwen2_moe_forward.13} parent=0 // pred_region
    _
  $region33: #{qwen2_moe_forward.13} parent=0 // pred_fallthru
    _
  // Predicated region
  $region34: #{qwen2_moe_forward.13} parent=0 // pred_check
    _
  $region35: #{qwen2_moe_forward.13} parent=0 // pred_check_branch
    %653 = sbr.rel (0) target = $region37
  $region36: #{qwen2_moe_forward.13} parent=0 // pred_region
    _
  $region37: #{qwen2_moe_forward.13} parent=0 // pred_fallthru
    _
  // Predicated region
  $region38: #{qwen2_moe_forward.13} parent=0 // pred_check
    _
  $region39: #{qwen2_moe_forward.13} parent=0 // pred_check_branch
    %655 = sbr.rel (0) target = $region41
  $region40: #{qwen2_moe_forward.13} parent=0 // pred_region
    _
  $region41: #{qwen2_moe_forward.13} parent=0 // pred_fallthru
    _
  // Predicated region
  $region42: #{qwen2_moe_forward.13} parent=0 // pred_check
    _
  $region43: #{qwen2_moe_forward.13} parent=0 // pred_check_branch
    %657 = sbr.rel (0) target = $region45
  $region44: #{qwen2_moe_forward.13} parent=0 // pred_region
    _
  $region45: #{qwen2_moe_forward.13} parent=0 // pred_fallthru
    _
  // Predicated region
  $region46: #{qwen2_moe_forward.13} parent=0 // pred_check
    _
  $region47: #{qwen2_moe_forward.13} parent=0 // pred_check_branch
    %659 = sbr.rel (0) target = $region49
  $region48: #{qwen2_moe_forward.13} parent=0 // pred_region
    _
  $region49: #{qwen2_moe_forward.13} parent=0 // pred_fallthru
    _
  // Predicated region
  $region50: #{qwen2_moe_forward.13} parent=0 // pred_check
    _
  $region51: #{qwen2_moe_forward.13} parent=0 // pred_check_branch
    %661 = sbr.rel (0) target = $region53
  $region52: #{qwen2_moe_forward.13} parent=0 // pred_region
    _
  $region53: #{qwen2_moe_forward.13} parent=0 // pred_fallthru
    _
  // Predicated region
  $region54: #{qwen2_moe_forward.13} parent=0 // pred_check
    _
  $region55: #{qwen2_moe_forward.13} parent=0 // pred_check_branch
    %663 = sbr.rel (0) target = $region57
  $region56: #{qwen2_moe_forward.13} parent=0 // pred_region
    _
  $region57: #{qwen2_moe_forward.13} parent=0 // pred_fallthru
    _
  // Predicated region
  $region58: #{qwen2_moe_forward.13} parent=0 // pred_check
    _
  $region59: #{qwen2_moe_forward.13} parent=0 // pred_check_branch
    %665 = sbr.rel (0) target = $region61
  $region60: #{qwen2_moe_forward.13} parent=0 // pred_region
    _
  $region61: #{qwen2_moe_forward.13} parent=0 // pred_fallthru
    _

// kernel: qwen2_moe_forward.15
$region0: #{qwen2_moe_forward.15}
  #allocation0 [shape = 'u32[]', space=smem, size = 0x4, offset = 0x4, fixed_abs, tag = 'smem constant byte address 0x4 - core index']
  #allocation1 [shape = 'u32[144,128]{1,0:T(1,128)}', space=vmem, size = 0x12000, scoped, tag = 'internal scratch']
  %s0 = inlined_call_operand.vmem [shape: bf16[8,256], index: 0, kind: input, shape index: {}]
  %s1 = inlined_call_operand.vmem [shape: f32[8,256], index: 1, kind: input, shape index: {}]
  %s2 = inlined_call_operand.vmem [shape: f32[1,256], index: 2, kind: input, shape index: {}]
  %s3 = inlined_call_operand.hbm [shape: f32[8,256], index: 3, kind: output, shape index: {}]
  %s4 = sld [smem:[#allocation0]]
  $region22: #{qwen2_moe_forward.15} parent=0
    _
  %s6 = ssub.s32 1, %s4
  %s7 = scalar_select 0, %s6, %s4
  $region1: #{qwen2_moe_forward.15} parent=0
    #allocation2 [shape = 'u8[8192]{0}', space=vmem, size = 0x2000, scoped, tag = 'output window, operand 0, single buffered']
    #allocation3 [shape = 's32[1]{0}', space=sflag, size = 0x4, scoped, tag = 'scoped memory for qwen2_moe_forward.15']
    %8 = vsyncpa [#allocation3], 0
    // Predicated region
    $region2: #{qwen2_moe_forward.15} parent=1 // pred_check
      _
    $region3: #{qwen2_moe_forward.15} parent=1 // pred_check_branch
      %10 = sbr.rel (0) target = $region5
    $region4: #{qwen2_moe_forward.15} parent=1 // pred_region
      _
    $region5: #{qwen2_moe_forward.15} parent=1 // pred_fallthru
      _
    // Predicated region
    $region6: #{qwen2_moe_forward.15} parent=1 // pred_check
      _
    $region7: #{qwen2_moe_forward.15} parent=1 // pred_check_branch
      %12 = sbr.rel (0) target = $region9
    $region8: #{qwen2_moe_forward.15} parent=1 // pred_region
      _
    $region9: #{qwen2_moe_forward.15} parent=1 // pred_fallthru
      _
    // Predicated region
    $region10: #{qwen2_moe_forward.15} parent=1 // pred_check
      _
    $region11: #{qwen2_moe_forward.15} parent=1 // pred_check_branch
      %14 = sbr.rel (0) target = $region13
    $region12: #{qwen2_moe_forward.15} parent=1 // pred_region
      _
    $region13: #{qwen2_moe_forward.15} parent=1 // pred_fallthru
      _
    %v15 = vld [vmem:[%s0] sm:$0xff]
    %v16 = vunpack.c.l.bf16 %v15
    %v17 = vunpack.c.h.bf16 %v15
    %v18 = vld [vmem:[%s1] sm:$0xff]
    %v19 = vld [vmem:[%s1 + $0x8] sm:$0xff]
    %v20 = vadd.f32 %v16, %v18
    %v21 = vadd.f32 %v17, %v19
    %v22 = vld [vmem:[%s2] sm:$0x3]
    %v23 = vmul.f32 %v20, %v20
    %v24 = vmul.f32 %v21, %v21
    %v25 = vadd.f32 %v23, %v24
    %26 = vadd.xlane.f32.xlu0 %v25
    %v27 = vpop.xlane.xlu0 %26
    %v28 = vrcp.pop 256.0
    %v29 = vmul.f32 %v27, %v28
    %v30 = vadd.f32 %v29, 1e-06
    %v31 = vrsqrt.pop %v30
    %v32 = vmul.f32 %v20, %v31
    %v33 = vmul.f32 %v21, %v31
    %v35 = vlaneseq
    %v36 = vshrl.u32 %v35, 7
    %v37 = vsub.s32 0, %v36
    %v38 = vrot.slane %v22, %v37
    %v39 = vlaneseq
    %v40 = vshrl.u32 %v39, 7
    %v41 = vsub.s32 1, %v40
    %v42 = vrot.slane %v22, %v41
    %v45 = vmul.f32 %v32, %v38
    %v46 = vmul.f32 %v33, %v42
    %47 = vst [vmem:[#allocation2] sm:$0xff] %v45
    %48 = vst [vmem:[#allocation2 + $0x8] sm:$0xff] %v46
    // Predicated region
    $region14: #{qwen2_moe_forward.15} parent=1 // pred_check
      _
    $region15: #{qwen2_moe_forward.15} parent=1 // pred_check_branch
      %50 = sbr.rel (0) target = $region17
    $region16: #{qwen2_moe_forward.15} parent=1 // pred_region
      %s52 = ssub.s32 256, 256
      %53 = vsyncadd [#allocation3], %s52
      %s55 = sshll.u32 [#allocation2], 4
      %s56 = int_to_ptr.vmem [resolvable:$true] %s55
      %58 = dma.vmem_to_hbm [thread:$0]  %s56, 256, %s3, [#allocation3]
    $region17: #{qwen2_moe_forward.15} parent=1 // pred_fallthru
      _
    // Predicated region
    $region18: #{qwen2_moe_forward.15} parent=1 // pred_check
      _
    $region19: #{qwen2_moe_forward.15} parent=1 // pred_check_branch
      %60 = sbr.rel (0) target = $region21
    $region20: #{qwen2_moe_forward.15} parent=1 // pred_region
      %61 = dma.done [#allocation3], 256
    $region21: #{qwen2_moe_forward.15} parent=1 // pred_fallthru
      _
    %62 = vsyncpa [#allocation3], 1

// kernel: qwen2_moe_forward.14
$region0: #{qwen2_moe_forward.14}
  #allocation0 [shape = 'u32[]', space=smem, size = 0x4, offset = 0x4, fixed_abs, tag = 'smem constant byte address 0x4 - core index']
  #allocation1 [shape = 'u32[144,128]{1,0:T(1,128)}', space=vmem, size = 0x12000, scoped, tag = 'internal scratch']
  #allocation2 [shape = 'f32[8,256]{1,0:T(8,128)}', space=vmem, size = 0x2000, scoped, tag = 'scratch operand']
  #allocation3 [shape = 's32[1]{0}', space=sflag, size = 0x4, scoped, tag = 'scoped memory for qwen2_moe_forward.14']
  #allocation4 [shape = 'u8[512]{0}', space=smem, size = 0x200, scoped, tag = 'prefetched SMEM operand 0']
  #allocation5 [shape = 's32[1]{0:T(128)S(6)}', space=smem, size = 0x200, scoped, tag = 'prefetched SMEM operand 1']
  %s0 = inlined_call_operand.vmem [shape: s32[4], index: 0, kind: input, shape index: {}]
  %s1 = inlined_call_operand.<no memory space> [shape: s32[1], index: 1, kind: input, shape index: {}]
  %s2 = inlined_call_operand.vmem [shape: bf16[8,256], index: 2, kind: input, shape index: {}]
  %s3 = inlined_call_operand.vmem [shape: bf16[4,256,256], index: 3, kind: input, shape index: {}]
  %s4 = inlined_call_operand.vmem [shape: bf16[4,128,256], index: 4, kind: input, shape index: {}]
  %s5 = inlined_call_operand.vmem [shape: f32[4,8,1], index: 5, kind: input, shape index: {}]
  %s6 = inlined_call_operand.vmem [shape: f32[8,256], index: 6, kind: input, shape index: {}]
  %s7 = inlined_call_operand.vmem [shape: bf16[8,256], index: 7, kind: output, shape index: {}]
  %s8 = sld [smem:[#allocation0]]
  $region65: #{qwen2_moe_forward.14} parent=0
    _
  %s10 = ssub.s32 1, %s8
  %s11 = scalar_select 0, %s10, %s8
  %s12 = sshll.u32 %s0, 4
  %s13 = int_to_ptr.vmem [resolvable:$true] %s12
  %15 = dma.vmem_to_smem %s13, 16, [#allocation4], [#allocation3]
  %16 = sst [smem:[#allocation5]] %s1
  %17 = dma.done [#allocation3], 16
  %18 = sfence
  loop: start=0, step=1, limit=6
  $region2: #{qwen2_moe_forward.14} parent=0 // loop_pre_header
    _
  $region3: #{qwen2_moe_forward.14} parent=0 // loop_header
    %s20 = sphi 0, %s24
    %p21 = scmp.ge.s32.totalorder %s20, 6
    %s27 = sphi 0, %s39
    %s28 = sphi 0, %s35
    %s29 = sphi 0, %s27
    %s30 = sphi 0, %s28
    %s31 = sphi 0, %s29
    %s32 = sphi 0, %s30
    %s42 = sphi 0, %s44
    %s45 = sphi 0, %s42
    %s46 = sphi 0, %s45
    %s62 = sphi 0, %s46
    %s70 = sphi 0, %s72
    %s73 = sphi 0, %s70
    %s74 = sphi 0, %s73
    %s90 = sphi 0, %s74
    %s98 = sphi 0, %s100
    %s101 = sphi 0, %s98
    %s102 = sphi 0, %s101
    %s118 = sphi 0, %s102
    %s128 = sphi 0, %s130
    %s131 = sphi 0, %s128
    %s132 = sphi 0, %s131
    %s148 = sphi 0, %s132
    %s154 = sphi 0, %s156
    %s157 = sphi 0, %s154
    %s158 = sphi 0, %s157
    %s174 = sphi 0, %s158
    %s180 = sphi 0, %s182
    %s183 = sphi 0, %s180
    %s184 = sphi 0, %s183
    %s200 = sphi 0, %s184
  $region4: #{qwen2_moe_forward.14} parent=0 // loop_header_branch
    %23 = sbr.rel (%p21) target = $region8
  $region5: #{qwen2_moe_forward.14} parent=0 // loop_body
    %s25 = ssub.s32 %s20, 1
    %s26 = ssub.s32 %s20, 2
    %s33 = sadd.s32 1, %s28
    %p34 = scmp.ge.s32.totalorder %s33, 4
    %s35 = scalar_select %p34, 0, %s33
    %s36 = sadd.s32 1, %s27
    %s37 = scalar_select %p34, %s36, %s27
    %p38 = scmp.ge.s32.totalorder %s37, 1
    %s39 = scalar_select %p38, 0, %s37
    %s40 = ssub.s32 %s27, %s39
    %p41 = scmp.eq.s32.totalorder %s40, 0
    %s43 = sadd.s32 %s42, 1
    %s44 = scalar_select %p41, %s42, %s43
    %p47 = pneg %p41
    %p48 = scmp.eq.s32.totalorder %s20, 3
    %p49 = por %p47, %p48
    %p50 = scmp.ne.s32.totalorder %s42, %s45
    %p51 = scmp.eq.s32.totalorder %s20, 0
    %p52 = por %p50, %p51
    %p53 = scmp.ne.s32.totalorder %s42, %s45
    %p54 = scmp.eq.s32.totalorder %s25, 3
    %p55 = por %p53, %p54
    %p56 = scmp.ne.s32.totalorder %s45, %s46
    %p57 = scmp.eq.s32.totalorder %s25, 0
    %p58 = por %p56, %p57
    %p59 = scmp.ne.s32.totalorder %s45, %s46
    %p60 = scmp.eq.s32.totalorder %s26, 3
    %p61 = por %p59, %p60
    %p63 = scmp.ne.s32.totalorder %s46, %s62
    %p64 = scmp.eq.s32.totalorder %s26, 0
    %p65 = por %p63, %p64
    %s66 = sld [smem:[#allocation4 + %s28]]
    %s67 = sld [smem:[#allocation4 + %s35]]
    %s68 = ssub.s32 %s66, %s67
    %p69 = scmp.eq.s32.totalorder %s68, 0
    %s71 = sadd.s32 %s70, 1
    %s72 = scalar_select %p69, %s70, %s71
    %p75 = pneg %p69
    %p76 = scmp.eq.s32.totalorder %s20, 3
    %p77 = por %p75, %p76
    %p78 = scmp.ne.s32.totalorder %s70, %s73
    %p79 = scmp.eq.s32.totalorder %s20, 0
    %p80 = por %p78, %p79
    %p81 = scmp.ne.s32.totalorder %s70, %s73
    %p82 = scmp.eq.s32.totalorder %s25, 3
    %p83 = por %p81, %p82
    %p84 = scmp.ne.s32.totalorder %s73, %s74
    %p85 = scmp.eq.s32.totalorder %s25, 0
    %p86 = por %p84, %p85
    %p87 = scmp.ne.s32.totalorder %s73, %s74
    %p88 = scmp.eq.s32.totalorder %s26, 3
    %p89 = por %p87, %p88
    %p91 = scmp.ne.s32.totalorder %s74, %s90
    %p92 = scmp.eq.s32.totalorder %s26, 0
    %p93 = por %p91, %p92
    %s94 = sld [smem:[#allocation4 + %s28]]
    %s95 = sld [smem:[#allocation4 + %s35]]
    %s96 = ssub.s32 %s94, %s95
    %p97 = scmp.eq.s32.totalorder %s96, 0
    %s99 = sadd.s32 %s98, 1
    %s100 = scalar_select %p97, %s98, %s99
    %p103 = pneg %p97
    %p104 = scmp.eq.s32.totalorder %s20, 3
    %p105 = por %p103, %p104
    %p106 = scmp.ne.s32.totalorder %s98, %s101
    %p107 = scmp.eq.s32.totalorder %s20, 0
    %p108 = por %p106, %p107
    %p109 = scmp.ne.s32.totalorder %s98, %s101
    %p110 = scmp.eq.s32.totalorder %s25, 3
    %p111 = por %p109, %p110
    %p112 = scmp.ne.s32.totalorder %s101, %s102
    %p113 = scmp.eq.s32.totalorder %s25, 0
    %p114 = por %p112, %p113
    %p115 = scmp.ne.s32.totalorder %s101, %s102
    %p116 = scmp.eq.s32.totalorder %s26, 3
    %p117 = por %p115, %p116
    %p119 = scmp.ne.s32.totalorder %s102, %s118
    %p120 = scmp.eq.s32.totalorder %s26, 0
    %p121 = por %p119, %p120
    %s122 = sld [smem:[#allocation4 + %s28]]
    %s123 = sld [smem:[#allocation4 + %s35]]
    %s124 = ssub.s32 %s122, %s123
    %s125 = ssub.s32 %s27, %s39
    %s126 = sor.u32 %s124, %s125
    %p127 = scmp.eq.s32.totalorder %s126, 0
    %s129 = sadd.s32 %s128, 1
    %s130 = scalar_select %p127, %s128, %s129
    %p133 = pneg %p127
    %p134 = scmp.eq.s32.totalorder %s20, 3
    %p135 = por %p133, %p134
    %p136 = scmp.ne.s32.totalorder %s128, %s131
    %p137 = scmp.eq.s32.totalorder %s20, 0
    %p138 = por %p136, %p137
    %p139 = scmp.ne.s32.totalorder %s128, %s131
    %p140 = scmp.eq.s32.totalorder %s25, 3
    %p141 = por %p139, %p140
    %p142 = scmp.ne.s32.totalorder %s131, %s132
    %p143 = scmp.eq.s32.totalorder %s25, 0
    %p144 = por %p142, %p143
    %p145 = scmp.ne.s32.totalorder %s131, %s132
    %p146 = scmp.eq.s32.totalorder %s26, 3
    %p147 = por %p145, %p146
    %p149 = scmp.ne.s32.totalorder %s132, %s148
    %p150 = scmp.eq.s32.totalorder %s26, 0
    %p151 = por %p149, %p150
    %s152 = ssub.s32 %s27, %s39
    %p153 = scmp.eq.s32.totalorder %s152, 0
    %s155 = sadd.s32 %s154, 1
    %s156 = scalar_select %p153, %s154, %s155
    %p159 = pneg %p153
    %p160 = scmp.eq.s32.totalorder %s20, 3
    %p161 = por %p159, %p160
    %p162 = scmp.ne.s32.totalorder %s154, %s157
    %p163 = scmp.eq.s32.totalorder %s20, 0
    %p164 = por %p162, %p163
    %p165 = scmp.ne.s32.totalorder %s154, %s157
    %p166 = scmp.eq.s32.totalorder %s25, 3
    %p167 = por %p165, %p166
    %p168 = scmp.ne.s32.totalorder %s157, %s158
    %p169 = scmp.eq.s32.totalorder %s25, 0
    %p170 = por %p168, %p169
    %p171 = scmp.ne.s32.totalorder %s157, %s158
    %p172 = scmp.eq.s32.totalorder %s26, 3
    %p173 = por %p171, %p172
    %p175 = scmp.ne.s32.totalorder %s158, %s174
    %p176 = scmp.eq.s32.totalorder %s26, 0
    %p177 = por %p175, %p176
    %s178 = ssub.s32 %s27, %s39
    %p179 = scmp.eq.s32.totalorder %s178, 0
    %s181 = sadd.s32 %s180, 1
    %s182 = scalar_select %p179, %s180, %s181
    %p185 = pneg %p179
    %p186 = scmp.eq.s32.totalorder %s20, 3
    %p187 = por %p185, %p186
    %p188 = scmp.ne.s32.totalorder %s180, %s183
    %p189 = scmp.eq.s32.totalorder %s20, 0
    %p190 = por %p188, %p189
    %p191 = scmp.ne.s32.totalorder %s180, %s183
    %p192 = scmp.eq.s32.totalorder %s25, 3
    %p193 = por %p191, %p192
    %p194 = scmp.ne.s32.totalorder %s183, %s184
    %p195 = scmp.eq.s32.totalorder %s25, 0
    %p196 = por %p194, %p195
    %p197 = scmp.ne.s32.totalorder %s183, %s184
    %p198 = scmp.eq.s32.totalorder %s26, 3
    %p199 = por %p197, %p198
    %p201 = scmp.ne.s32.totalorder %s184, %s200
    %p202 = scmp.eq.s32.totalorder %s26, 0
    %p203 = por %p201, %p202
    %p204 = scmp.le.s32.totalorder 1, %s20
    %p205 = scmp.lt.s32.totalorder %s20, 5
    %p206 = pnand %p204, %p205
    %p207 = pneg %p206
    // Predicated region
    $region9: #{qwen2_moe_forward.14} parent=5 // pred_check
      _
    $region10: #{qwen2_moe_forward.14} parent=5 // pred_check_branch
      %209 = sbr.rel (%p206) target = $region12
    $region11: #{qwen2_moe_forward.14} parent=5 // pred_region
      %s210 = ssub.s32 %s20, 1
      // Predicated region
      $region13: #{qwen2_moe_forward.14} parent=11 // pred_check
        %p211 = pneg %p58
      $region14: #{qwen2_moe_forward.14} parent=11 // pred_check_branch
        %213 = sbr.rel (%p211) target = $region16
      $region15: #{qwen2_moe_forward.14} parent=11 // pred_region
        %p214 = scmp.lt.s32.totalorder %s29, 0
        %s215 = scalar_select %p214, %s29, 0
        %s216 = smul.addr %s215, 2
        %s217 = smul.addr %s216, 4
        %s218 = scalar_lea.vmem %s2, %s217
      $region16: #{qwen2_moe_forward.14} parent=11 // pred_fallthru
        _
      // Predicated region
      $region17: #{qwen2_moe_forward.14} parent=11 // pred_check
        %p219 = pneg %p170
      $region18: #{qwen2_moe_forward.14} parent=11 // pred_check_branch
        %221 = sbr.rel (%p219) target = $region20
      $region19: #{qwen2_moe_forward.14} parent=11 // pred_region
        %p222 = scmp.lt.s32.totalorder %s29, 0
        %s223 = scalar_select %p222, %s29, 0
        %s224 = smul.addr %s223, 2
        %s225 = smul.addr %s224, 8
        %s226 = scalar_lea.vmem %s6, %s225
      $region20: #{qwen2_moe_forward.14} parent=11 // pred_fallthru
        _
    $region12: #{qwen2_moe_forward.14} parent=5 // pred_fallthru
      _
    %p227 = scmp.lt.s32.totalorder %s20, 4
    // Predicated region
    $region21: #{qwen2_moe_forward.14} parent=5 // pred_check
      %p228 = pneg %p227
    $region22: #{qwen2_moe_forward.14} parent=5 // pred_check_branch
      %230 = sbr.rel (%p228) target = $region24
    $region23: #{qwen2_moe_forward.14} parent=5 // pred_region
      // Predicated region
      $region25: #{qwen2_moe_forward.14} parent=23 // pred_check
        %p231 = pneg %p80
      $region26: #{qwen2_moe_forward.14} parent=23 // pred_check_branch
        %233 = sbr.rel (%p231) target = $region28
      $region27: #{qwen2_moe_forward.14} parent=23 // pred_region
        %s234 = sld [smem:[#allocation4 + %s28]]
        %p235 = scmp.lt.s32.totalorder %s234, 3
        %s236 = scalar_select %p235, %s234, 3
        %s237 = smul.addr %s236, 64
        %s238 = smul.addr %s237, 4
        %s239 = scalar_lea.vmem %s3, %s238
        %s240 = sld [smem:[#allocation4 + %s28]]
      $region28: #{qwen2_moe_forward.14} parent=23 // pred_fallthru
        _
      // Predicated region
      $region29: #{qwen2_moe_forward.14} parent=23 // pred_check
        %p241 = pneg %p108
      $region30: #{qwen2_moe_forward.14} parent=23 // pred_check_branch
        %243 = sbr.rel (%p241) target = $region32
      $region31: #{qwen2_moe_forward.14} parent=23 // pred_region
        %s244 = sld [smem:[#allocation4 + %s28]]
        %p245 = scmp.lt.s32.totalorder %s244, 3
        %s246 = scalar_select %p245, %s244, 3
        %s247 = smul.addr %s246, 32
        %s248 = smul.addr %s247, 4
        %s249 = scalar_lea.vmem %s4, %s248
        %s250 = sld [smem:[#allocation4 + %s28]]
      $region32: #{qwen2_moe_forward.14} parent=23 // pred_fallthru
        _
      // Predicated region
      $region33: #{qwen2_moe_forward.14} parent=23 // pred_check
        %p251 = pneg %p138
      $region34: #{qwen2_moe_forward.14} parent=23 // pred_check_branch
        %253 = sbr.rel (%p251) target = $region36
      $region35: #{qwen2_moe_forward.14} parent=23 // pred_region
        %s254 = sld [smem:[#allocation4 + %s28]]
        %p255 = scmp.lt.s32.totalorder %s254, 3
        %s256 = scalar_select %p255, %s254, 3
        %p257 = scmp.lt.s32.totalorder %s27, 0
        %s258 = scalar_select %p257, %s27, 0
        %s259 = sadd.s32 %s258, %s256
        %s260 = smul.addr %s259, 8
        %s261 = scalar_lea.vmem %s5, %s260
        %s262 = sld [smem:[#allocation4 + %s28]]
      $region36: #{qwen2_moe_forward.14} parent=23 // pred_fallthru
        _
    $region24: #{qwen2_moe_forward.14} parent=5 // pred_fallthru
      _
    %p263 = scmp.le.s32.totalorder 1, %s20
    %p264 = scmp.lt.s32.totalorder %s20, 5
    %p265 = pnand %p263, %p264
    %p266 = pneg %p265
    // Predicated region
    $region37: #{qwen2_moe_forward.14} parent=5 // pred_check
      _
    $region38: #{qwen2_moe_forward.14} parent=5 // pred_check_branch
      %268 = sbr.rel (%p265) target = $region40
    $region39: #{qwen2_moe_forward.14} parent=5 // pred_region
      %s269 = ssub.s32 %s20, 1
      %p270 = scmp.lt.s32.totalorder %s29, 0
      %s271 = scalar_select %p270, %s29, 0
      %s272 = smul.addr %s271, 2
      %s273 = smul.addr %s272, 4
      %s274 = scalar_lea.vmem %s2, %s273
      %p275 = pneg %p58
      %p276 = pneg %p55
      %s277 = sld [smem:[#allocation4 + %s30]]
      %p278 = scmp.lt.s32.totalorder %s277, 3
      %s279 = scalar_select %p278, %s277, 3
      %s280 = smul.addr %s279, 64
      %s281 = smul.addr %s280, 4
      %s282 = scalar_lea.vmem %s3, %s281
      %p283 = pneg %p86
      %p284 = pneg %p83
      %s285 = sld [smem:[#allocation4 + %s30]]
      %p286 = scmp.lt.s32.totalorder %s285, 3
      %s287 = scalar_select %p286, %s285, 3
      %s288 = smul.addr %s287, 32
      %s289 = smul.addr %s288, 4
      %s290 = scalar_lea.vmem %s4, %s289
      %p291 = pneg %p114
      %p292 = pneg %p111
      %s293 = sld [smem:[#allocation4 + %s30]]
      %p294 = scmp.lt.s32.totalorder %s293, 3
      %s295 = scalar_select %p294, %s293, 3
      %p296 = scmp.lt.s32.totalorder %s29, 0
      %s297 = scalar_select %p296, %s29, 0
      %s298 = sadd.s32 %s297, %s295
      %s299 = smul.addr %s298, 8
      %s300 = scalar_lea.vmem %s5, %s299
      %p301 = pneg %p144
      %p302 = pneg %p141
      %p303 = scmp.lt.s32.totalorder %s29, 0
      %s304 = scalar_select %p303, %s29, 0
      %s305 = smul.addr %s304, 2
      %s306 = smul.addr %s305, 8
      %s307 = scalar_lea.vmem %s6, %s306
      %p308 = pneg %p170
      %p309 = pneg %p167
      %p310 = pneg %p196
      %p311 = pneg %p193
      %p312 = scmp.lt.s32.totalorder %s29, 0
      %s313 = scalar_select %p312, %s29, 0
      %s314 = smul.addr %s313, 2
      %s315 = smul.addr %s314, 4
      %s316 = scalar_lea.vmem %s7, %s315
      %p317 = scmp.lt.s32.totalorder %s29, 0
      %s318 = scalar_select %p317, %s29, 0
      %s319 = smul.addr %s318, 2
      %s320 = smul.addr %s319, 4
      %s321 = scalar_lea.vmem %s2, %s320
      %s322 = sld [smem:[#allocation4 + %s30]]
      %p323 = scmp.lt.s32.totalorder %s322, 3
      %s324 = scalar_select %p323, %s322, 3
      %s325 = smul.addr %s324, 64
      %s326 = smul.addr %s325, 4
      %s327 = scalar_lea.vmem %s3, %s326
      %s328 = sld [smem:[#allocation4 + %s30]]
      %s329 = sld [smem:[#allocation4 + %s30]]
      %p330 = scmp.lt.s32.totalorder %s329, 3
      %s331 = scalar_select %p330, %s329, 3
      %s332 = smul.addr %s331, 32
      %s333 = smul.addr %s332, 4
      %s334 = scalar_lea.vmem %s4, %s333
      %s335 = sld [smem:[#allocation4 + %s30]]
      %s336 = sld [smem:[#allocation4 + %s30]]
      %p337 = scmp.lt.s32.totalorder %s336, 3
      %s338 = scalar_select %p337, %s336, 3
      %p339 = scmp.lt.s32.totalorder %s29, 0
      %s340 = scalar_select %p339, %s29, 0
      %s341 = sadd.s32 %s340, %s338
      %s342 = smul.addr %s341, 8
      %s343 = scalar_lea.vmem %s5, %s342
      %s344 = sld [smem:[#allocation4 + %s30]]
      %p345 = scmp.lt.s32.totalorder %s29, 0
      %s346 = scalar_select %p345, %s29, 0
      %s347 = smul.addr %s346, 2
      %s348 = smul.addr %s347, 8
      %s349 = scalar_lea.vmem %s6, %s348
      %p350 = scmp.lt.s32.totalorder %s29, 0
      %s351 = scalar_select %p350, %s29, 0
      %s352 = smul.addr %s351, 2
      %s353 = smul.addr %s352, 4
      %s354 = scalar_lea.vmem %s7, %s353
      %p356 = scmp.eq.s32.totalorder %s30, 0
      // Predicated region
      $region41: #{qwen2_moe_forward.14} parent=39 // pred_check
        %p357 = pneg %p356
      $region42: #{qwen2_moe_forward.14} parent=39 // pred_check_branch
        %359 = sbr.rel (%p357) target = $region44
      $region43: #{qwen2_moe_forward.14} parent=39 // pred_region
        %360 = vst [vmem:[#allocation2] sm:$0xff] 0.0
        %361 = vst [vmem:[#allocation2 + $0x8] sm:$0xff] 0.0
      $region44: #{qwen2_moe_forward.14} parent=39 // pred_fallthru
        _
      %s362 = sld [smem:[#allocation5]]
      %p363 = scmp.lt.s32.totalorder %s30, %s362
      // Predicated region
      $region45: #{qwen2_moe_forward.14} parent=39 // pred_check
        %p364 = pneg %p363
      $region46: #{qwen2_moe_forward.14} parent=39 // pred_check_branch
        %366 = sbr.rel (%p364) target = $region48
      $region47: #{qwen2_moe_forward.14} parent=39 // pred_region
        %v367 = vld [vmem:[%s321] sm:$0xff]
        %v368 = vld [vmem:[%s327] sm:$0xff]
        %v369 = vld [vmem:[%s327 + $0x8] sm:$0xff]
        %v370 = vld [vmem:[%s327 + $0x10] sm:$0xff]
        %v371 = vld [vmem:[%s327 + $0x18] sm:$0xff]
        %v372 = vld [vmem:[%s327 + $0x20] sm:$0xff]
        %v373 = vld [vmem:[%s327 + $0x28] sm:$0xff]
        %v374 = vld [vmem:[%s327 + $0x30] sm:$0xff]
        %v375 = vld [vmem:[%s327 + $0x38] sm:$0xff]
        %v376 = vld [vmem:[%s327 + $0x40] sm:$0xff]
        %v377 = vld [vmem:[%s327 + $0x48] sm:$0xff]
        %v378 = vld [vmem:[%s327 + $0x50] sm:$0xff]
        %v379 = vld [vmem:[%s327 + $0x58] sm:$0xff]
        %v380 = vld [vmem:[%s327 + $0x60] sm:$0xff]
        %v381 = vld [vmem:[%s327 + $0x68] sm:$0xff]
        %v382 = vld [vmem:[%s327 + $0x70] sm:$0xff]
        %v383 = vld [vmem:[%s327 + $0x78] sm:$0xff]
        %v384 = vld [vmem:[%s327 + $0x80] sm:$0xff]
        %v385 = vld [vmem:[%s327 + $0x88] sm:$0xff]
        %v386 = vld [vmem:[%s327 + $0x90] sm:$0xff]
        %v387 = vld [vmem:[%s327 + $0x98] sm:$0xff]
        %v388 = vld [vmem:[%s327 + $0xa0] sm:$0xff]
        %v389 = vld [vmem:[%s327 + $0xa8] sm:$0xff]
        %v390 = vld [vmem:[%s327 + $0xb0] sm:$0xff]
        %v391 = vld [vmem:[%s327 + $0xb8] sm:$0xff]
        %v392 = vld [vmem:[%s327 + $0xc0] sm:$0xff]
        %v393 = vld [vmem:[%s327 + $0xc8] sm:$0xff]
        %v394 = vld [vmem:[%s327 + $0xd0] sm:$0xff]
        %v395 = vld [vmem:[%s327 + $0xd8] sm:$0xff]
        %v396 = vld [vmem:[%s327 + $0xe0] sm:$0xff]
        %v397 = vld [vmem:[%s327 + $0xe8] sm:$0xff]
        %v398 = vld [vmem:[%s327 + $0xf0] sm:$0xff]
        %v399 = vld [vmem:[%s327 + $0xf8] sm:$0xff]
        %v401 = vunpack.c.l.b16 %v367
        %v402 = vunpack.c.h.b16 %v367
        %v403 = vpack.c.b16 %v401, %v401
        %v404 = vpack.c.b16 %v402, %v402
        %v439 = vunpack.c.l.b16 %v368
        %v440 = vunpack.c.h.b16 %v368
        %v441 = vunpack.c.l.b16 %v369
        %v442 = vunpack.c.h.b16 %v369
        %v443 = vunpack.c.l.b16 %v370
        %v444 = vunpack.c.h.b16 %v370
        %v445 = vunpack.c.l.b16 %v371
        %v446 = vunpack.c.h.b16 %v371
        %v447 = vunpack.c.l.b16 %v372
        %v448 = vunpack.c.h.b16 %v372
        %v449 = vunpack.c.l.b16 %v373
        %v450 = vunpack.c.h.b16 %v373
        %v451 = vunpack.c.l.b16 %v374
        %v452 = vunpack.c.h.b16 %v374
        %v453 = vunpack.c.l.b16 %v375
        %v454 = vunpack.c.h.b16 %v375
        %v455 = vunpack.c.l.b16 %v376
        %v456 = vunpack.c.h.b16 %v376
        %v457 = vunpack.c.l.b16 %v377
        %v458 = vunpack.c.h.b16 %v377
        %v459 = vunpack.c.l.b16 %v378
        %v460 = vunpack.c.h.b16 %v378
        %v461 = vunpack.c.l.b16 %v379
        %v462 = vunpack.c.h.b16 %v379
        %v463 = vunpack.c.l.b16 %v380
        %v464 = vunpack.c.h.b16 %v380
        %v465 = vunpack.c.l.b16 %v381
        %v466 = vunpack.c.h.b16 %v381
        %v467 = vunpack.c.l.b16 %v382
        %v468 = vunpack.c.h.b16 %v382
        %v469 = vunpack.c.l.b16 %v383
        %v470 = vunpack.c.h.b16 %v383
        %v471 = vunpack.c.l.b16 %v384
        %v472 = vunpack.c.h.b16 %v384
        %v473 = vunpack.c.l.b16 %v385
        %v474 = vunpack.c.h.b16 %v385
        %v475 = vunpack.c.l.b16 %v386
        %v476 = vunpack.c.h.b16 %v386
        %v477 = vunpack.c.l.b16 %v387
        %v478 = vunpack.c.h.b16 %v387
        %v479 = vunpack.c.l.b16 %v388
        %v480 = vunpack.c.h.b16 %v388
        %v481 = vunpack.c.l.b16 %v389
        %v482 = vunpack.c.h.b16 %v389
        %v483 = vunpack.c.l.b16 %v390
        %v484 = vunpack.c.h.b16 %v390
        %v485 = vunpack.c.l.b16 %v391
        %v486 = vunpack.c.h.b16 %v391
        %v487 = vunpack.c.l.b16 %v392
        %v488 = vunpack.c.h.b16 %v392
        %v489 = vunpack.c.l.b16 %v393
        %v490 = vunpack.c.h.b16 %v393
        %v491 = vunpack.c.l.b16 %v394
        %v492 = vunpack.c.h.b16 %v394
        %v493 = vunpack.c.l.b16 %v395
        %v494 = vunpack.c.h.b16 %v395
        %v495 = vunpack.c.l.b16 %v396
        %v496 = vunpack.c.h.b16 %v396
        %v497 = vunpack.c.l.b16 %v397
        %v498 = vunpack.c.h.b16 %v397
        %v499 = vunpack.c.l.b16 %v398
        %v500 = vunpack.c.h.b16 %v398
        %v501 = vunpack.c.l.b16 %v399
        %v502 = vunpack.c.h.b16 %v399
        %v503 = vpack.c.b16 %v441, %v439
        %v504 = vpack.c.b16 %v442, %v440
        %v505 = vpack.c.b16 %v445, %v443
        %v506 = vpack.c.b16 %v446, %v444
        %v507 = vpack.c.b16 %v449, %v447
        %v508 = vpack.c.b16 %v450, %v448
        %v509 = vpack.c.b16 %v453, %v451
        %v510 = vpack.c.b16 %v454, %v452
        %v511 = vpack.c.b16 %v457, %v455
        %v512 = vpack.c.b16 %v458, %v456
        %v513 = vpack.c.b16 %v461, %v459
        %v514 = vpack.c.b16 %v462, %v460
        %v515 = vpack.c.b16 %v465, %v463
        %v516 = vpack.c.b16 %v466, %v464
        %v517 = vpack.c.b16 %v469, %v467
        %v518 = vpack.c.b16 %v470, %v468
        %v519 = vpack.c.b16 %v473, %v471
        %v520 = vpack.c.b16 %v474, %v472
        %v521 = vpack.c.b16 %v477, %v475
        %v522 = vpack.c.b16 %v478, %v476
        %v523 = vpack.c.b16 %v481, %v479
        %v524 = vpack.c.b16 %v482, %v480
        %v525 = vpack.c.b16 %v485, %v483
        %v526 = vpack.c.b16 %v486, %v484
        %v527 = vpack.c.b16 %v489, %v487
        %v528 = vpack.c.b16 %v490, %v488
        %v529 = vpack.c.b16 %v493, %v491
        %v530 = vpack.c.b16 %v494, %v492
        %v531 = vpack.c.b16 %v497, %v495
        %v532 = vpack.c.b16 %v498, %v496
        %v533 = vpack.c.b16 %v501, %v499
        %v534 = vpack.c.b16 %v502, %v500
        %567 = vmatprep.subr.bf16.mxu0 %v518
        %568 = vmatpush1.bf16.msra.mxu0 %v517
        %569 = vmatprep.subr.bf16.mxu0 %v516
        %570 = vmatpush1.bf16.msra.mxu0 %v515
        %571 = vmatprep.subr.bf16.mxu0 %v514
        %572 = vmatpush1.bf16.msra.mxu0 %v513
        %573 = vmatprep.subr.bf16.mxu0 %v512
        %574 = vmatpush1.bf16.msra.mxu0 %v511
        %575 = vmatprep.subr.bf16.mxu0 %v510
        %576 = vmatpush1.bf16.msra.mxu0 %v509
        %577 = vmatprep.subr.bf16.mxu0 %v508
        %578 = vmatpush1.bf16.msra.mxu0 %v507
        %579 = vmatprep.subr.bf16.mxu0 %v506
        %580 = vmatpush1.bf16.msra.mxu0 %v505
        %581 = vmatprep.subr.bf16.mxu0 %v504
        %582 = vmatpush1.bf16.msra.mxu0 %v503
        %583 = vmatprep.subr.bf16.mxu0 %v534
        %584 = vmatpush2.bf16.msra.mxu0 %v533
        %585 = vmatprep.subr.bf16.mxu0 %v532
        %586 = vmatpush2.bf16.msra.mxu0 %v531
        %587 = vmatprep.subr.bf16.mxu0 %v530
        %588 = vmatpush2.bf16.msra.mxu0 %v529
        %589 = vmatprep.subr.bf16.mxu0 %v528
        %590 = vmatpush2.bf16.msra.mxu0 %v527
        %591 = vmatprep.subr.bf16.mxu0 %v526
        %592 = vmatpush2.bf16.msra.mxu0 %v525
        %593 = vmatprep.subr.bf16.mxu0 %v524
        %594 = vmatpush2.bf16.msra.mxu0 %v523
        %595 = vmatprep.subr.bf16.mxu0 %v522
        %596 = vmatpush2.bf16.msra.mxu0 %v521
        %597 = vmatprep.subr.bf16.mxu0 %v520
        %598 = vmatpush2.bf16.msra.mxu0 %v519
        %599 = vmatprep.mubr.bf16.mxu0 %v404
        %600 = vmatmul.mubr.bf16.gmra.mxu0 %v403
        %v601 = vpop.f32.mrf.mxu0
        %v602 = vadd.f32 0.0, %v601
        %v603 = vpop.f32.mrf.mxu0
        %v604 = vadd.f32 0.0, %v603
        %v605 = vpop.f32.mrf.mxu0
        %v606 = vpop.f32.mrf.mxu0
        %607 = vdwg.mxu0
        %v608 = vsub.f32 0.0, %v602
        %v609 = vmul.f32 %v608, 1.442695
        %v610 = vpow.pop %v609
        %v611 = vadd.f32 %v610, 1.0
        %v612 = vrcp.pop %v611
        %v613 = vmul.f32 1.0, %v612
        %v614 = vmul.f32 %v602, %v613
        %v615 = vmul.f32 %v614, %v604
        %v616 = vld [vmem:[%s343] sm:$0xff]
        %618 = vset.pattern.permute.xlu0 0
        %619 = vperm.xlu0 %618, %v616
        %v620 = vpop.permute.xlu0 %619
        %v622 = vmul.f32 %v615, %v620
        %v623 = vld [vmem:[#allocation2] sm:$0xff]
        %v624 = vld [vmem:[#allocation2 + $0x8] sm:$0xff]
        %v625 = vpack.c.bf16 %v622, %v622
        %v626 = vld [vmem:[%s334] sm:$0xff]
        %v627 = vld [vmem:[%s334 + $0x8] sm:$0xff]
        %v628 = vld [vmem:[%s334 + $0x10] sm:$0xff]
        %v629 = vld [vmem:[%s334 + $0x18] sm:$0xff]
        %v630 = vld [vmem:[%s334 + $0x20] sm:$0xff]
        %v631 = vld [vmem:[%s334 + $0x28] sm:$0xff]
        %v632 = vld [vmem:[%s334 + $0x30] sm:$0xff]
        %v633 = vld [vmem:[%s334 + $0x38] sm:$0xff]
        %v634 = vld [vmem:[%s334 + $0x40] sm:$0xff]
        %v635 = vld [vmem:[%s334 + $0x48] sm:$0xff]
        %v636 = vld [vmem:[%s334 + $0x50] sm:$0xff]
        %v637 = vld [vmem:[%s334 + $0x58] sm:$0xff]
        %v638 = vld [vmem:[%s334 + $0x60] sm:$0xff]
        %v639 = vld [vmem:[%s334 + $0x68] sm:$0xff]
        %v640 = vld [vmem:[%s334 + $0x70] sm:$0xff]
        %v641 = vld [vmem:[%s334 + $0x78] sm:$0xff]
        %v658 = vunpack.c.l.b16 %v626
        %v659 = vunpack.c.h.b16 %v626
        %v660 = vunpack.c.l.b16 %v627
        %v661 = vunpack.c.h.b16 %v627
        %v662 = vunpack.c.l.b16 %v628
        %v663 = vunpack.c.h.b16 %v628
        %v664 = vunpack.c.l.b16 %v629
        %v665 = vunpack.c.h.b16 %v629
        %v666 = vunpack.c.l.b16 %v630
        %v667 = vunpack.c.h.b16 %v630
        %v668 = vunpack.c.l.b16 %v631
        %v669 = vunpack.c.h.b16 %v631
        %v670 = vunpack.c.l.b16 %v632
        %v671 = vunpack.c.h.b16 %v632
        %v672 = vunpack.c.l.b16 %v633
        %v673 = vunpack.c.h.b16 %v633
        %v674 = vunpack.c.l.b16 %v634
        %v675 = vunpack.c.h.b16 %v634
        %v676 = vunpack.c.l.b16 %v635
        %v677 = vunpack.c.h.b16 %v635
        %v678 = vunpack.c.l.b16 %v636
        %v679 = vunpack.c.h.b16 %v636
        %v680 = vunpack.c.l.b16 %v637
        %v681 = vunpack.c.h.b16 %v637
        %v682 = vunpack.c.l.b16 %v638
        %v683 = vunpack.c.h.b16 %v638
        %v684 = vunpack.c.l.b16 %v639
        %v685 = vunpack.c.h.b16 %v639
        %v686 = vunpack.c.l.b16 %v640
        %v687 = vunpack.c.h.b16 %v640
        %v688 = vunpack.c.l.b16 %v641
        %v689 = vunpack.c.h.b16 %v641
        %v690 = vpack.c.b16 %v660, %v658
        %v691 = vpack.c.b16 %v661, %v659
        %v692 = vpack.c.b16 %v664, %v662
        %v693 = vpack.c.b16 %v665, %v663
        %v694 = vpack.c.b16 %v668, %v666
        %v695 = vpack.c.b16 %v669, %v667
        %v696 = vpack.c.b16 %v672, %v670
        %v697 = vpack.c.b16 %v673, %v671
        %v698 = vpack.c.b16 %v676, %v674
        %v699 = vpack.c.b16 %v677, %v675
        %v700 = vpack.c.b16 %v680, %v678
        %v701 = vpack.c.b16 %v681, %v679
        %v702 = vpack.c.b16 %v684, %v682
        %v703 = vpack.c.b16 %v685, %v683
        %v704 = vpack.c.b16 %v688, %v686
        %v705 = vpack.c.b16 %v689, %v687
        %722 = vmatprep.subr.bf16.mxu0 %v705
        %723 = vmatpush1.bf16.msra.mxu0 %v704
        %724 = vmatprep.subr.bf16.mxu0 %v703
        %725 = vmatpush1.bf16.msra.mxu0 %v702
        %726 = vmatprep.subr.bf16.mxu0 %v701
        %727 = vmatpush1.bf16.msra.mxu0 %v700
        %728 = vmatprep.subr.bf16.mxu0 %v699
        %729 = vmatpush1.bf16.msra.mxu0 %v698
        %730 = vmatprep.subr.bf16.mxu0 %v697
        %731 = vmatpush1.bf16.msra.mxu0 %v696
        %732 = vmatprep.subr.bf16.mxu0 %v695
        %733 = vmatpush1.bf16.msra.mxu0 %v694
        %734 = vmatprep.subr.bf16.mxu0 %v693
        %735 = vmatpush1.bf16.msra.mxu0 %v692
        %736 = vmatprep.subr.bf16.mxu0 %v691
        %737 = vmatpush1.bf16.msra.mxu0 %v690
        %738 = vmatprep.subr.bf16.mxu0 0
        %739 = vmatpush2.bf16.msra.mxu0 0
        %740 = vmatprep.subr.bf16.mxu0 0
        %741 = vmatpush2.bf16.msra.mxu0 0
        %742 = vmatprep.subr.bf16.mxu0 0
        %743 = vmatpush2.bf16.msra.mxu0 0
        %744 = vmatprep.subr.bf16.mxu0 0
        %745 = vmatpush2.bf16.msra.mxu0 0
        %746 = vmatprep.subr.bf16.mxu0 0
        %747 = vmatpush2.bf16.msra.mxu0 0
        %748 = vmatprep.subr.bf16.mxu0 0
        %749 = vmatpush2.bf16.msra.mxu0 0
        %750 = vmatprep.subr.bf16.mxu0 0
        %751 = vmatpush2.bf16.msra.mxu0 0
        %752 = vmatprep.subr.bf16.mxu0 0
        %753 = vmatpush2.bf16.msra.mxu0 0
        %754 = vmatprep.mubr.bf16.mxu0 0
        %755 = vmatmul.mubr.bf16.gmra.mxu0 %v625
        %v756 = vpop.f32.mrf.mxu0
        %v757 = vadd.f32 0.0, %v756
        %v758 = vpop.f32.mrf.mxu0
        %v759 = vadd.f32 0.0, %v758
        %v760 = vpop.f32.mrf.mxu0
        %v761 = vpop.f32.mrf.mxu0
        %762 = vdwg.mxu0
        %v763 = vadd.f32 %v623, %v757
        %v764 = vadd.f32 %v624, %v759
        %765 = vst [vmem:[#allocation2] sm:$0xff] %v763
        %766 = vst [vmem:[#allocation2 + $0x8] sm:$0xff] %v764
      $region48: #{qwen2_moe_forward.14} parent=39 // pred_fallthru
        _
      %p767 = scmp.eq.s32.totalorder %s30, 3
      // Predicated region
      $region49: #{qwen2_moe_forward.14} parent=39 // pred_check
        %p768 = pneg %p767
      $region50: #{qwen2_moe_forward.14} parent=39 // pred_check_branch
        %770 = sbr.rel (%p768) target = $region52
      $region51: #{qwen2_moe_forward.14} parent=39 // pred_region
        %v771 = vld [vmem:[#allocation2] sm:$0xff]
        %v772 = vld [vmem:[#allocation2 + $0x8] sm:$0xff]
        %v773 = vld [vmem:[%s349] sm:$0xff]
        %v774 = vld [vmem:[%s349 + $0x8] sm:$0xff]
        %v775 = vadd.f32 %v771, %v773
        %v776 = vadd.f32 %v772, %v774
        %v777 = vpack.c.bf16 %v775, %v775
        %v778 = vpack.c.bf16 %v776, %v776
        %v781 = vunpack.c.l.b16 %v777
        %v782 = vunpack.c.l.b16 %v778
        %v783 = vpack.c.b16 %v782, %v781
        %785 = vst [vmem:[%s354] sm:$0xff] %v783
      $region52: #{qwen2_moe_forward.14} parent=39 // pred_fallthru
        _
      %p786 = scmp.lt.s32.totalorder %s29, 0
      %s787 = scalar_select %p786, %s29, 0
      %s788 = smul.addr %s787, 2
      %s789 = smul.addr %s788, 4
      %s790 = scalar_lea.vmem %s7, %s789
      // Predicated region
      $region53: #{qwen2_moe_forward.14} parent=39 // pred_check
        %p791 = pneg %p193
      $region54: #{qwen2_moe_forward.14} parent=39 // pred_check_branch
        %793 = sbr.rel (%p791) target = $region56
      $region55: #{qwen2_moe_forward.14} parent=39 // pred_region
        _
      $region56: #{qwen2_moe_forward.14} parent=39 // pred_fallthru
        _
      // Predicated region
      $region57: #{qwen2_moe_forward.14} parent=39 // pred_check
        %p794 = pneg %p193
      $region58: #{qwen2_moe_forward.14} parent=39 // pred_check_branch
        %796 = sbr.rel (%p794) target = $region60
      $region59: #{qwen2_moe_forward.14} parent=39 // pred_region
        %p797 = scmp.lt.s32.totalorder %s29, 0
        %s798 = scalar_select %p797, %s29, 0
        %s799 = smul.addr %s798, 2
        %s800 = smul.addr %s799, 4
        %s801 = scalar_lea.vmem %s7, %s800
      $region60: #{qwen2_moe_forward.14} parent=39 // pred_fallthru
        _
    $region40: #{qwen2_moe_forward.14} parent=5 // pred_fallthru
      _
    %p802 = scmp.le.s32.totalorder 2, %s20
    // Predicated region
    $region61: #{qwen2_moe_forward.14} parent=5 // pred_check
      %p803 = pneg %p802
    $region62: #{qwen2_moe_forward.14} parent=5 // pred_check_branch
      %805 = sbr.rel (%p803) target = $region64
    $region63: #{qwen2_moe_forward.14} parent=5 // pred_region
      %s806 = ssub.s32 %s20, 2
    $region64: #{qwen2_moe_forward.14} parent=5 // pred_fallthru
      _
  $region6: #{qwen2_moe_forward.14} parent=0 // loop_footer
    %s24 = sadd.s32 1, %s20
  $region7: #{qwen2_moe_forward.14} parent=0 // loop_footer_branch
    %19 = sbr.rel target = $region3
  $region8: #{qwen2_moe_forward.14} parent=0 // loop_exit
    _

</llo_original>
